<compile_context>
chip_gen: v7x
topology: tpu7x:2x2x1
jax: 0.10.0
libtpu: 0.0.40
codegen_flags: <defaults>
</compile_context>

<pallas_src>
import functools

import jax
import jax.numpy as jnp
from jax.experimental import pallas as pl
from jax.experimental.pallas import tpu as pltpu

LN_EPS = 1e-5


def _layernorm(x, w, b, eps=LN_EPS):
    mu = jnp.mean(x, axis=-1, keepdims=True)
    var = jnp.mean((x - mu) ** 2, axis=-1, keepdims=True)
    return (x - mu) * jax.lax.rsqrt(var + eps) * w + b


def _mha_out(q, k, v, wo, bo, nhead):
    """Multi-head softmax attention + output projection.

    q: (Tq, D) already scaled by 1/sqrt(dh) (folded into weights host-side).
    k, v: (Tk, D); wo: (D, D); bo: (1, D).
    Per-head outputs are accumulated through the corresponding slice of the
    output projection — no concatenate.
    """
    Tq, D = q.shape
    dh = D // nhead
    y = None
    for h in range(nhead):              # static unroll, nhead is small
        sl = slice(h * dh, (h + 1) * dh)
        s = jnp.dot(q[:, sl], k[:, sl].T, preferred_element_type=jnp.float32)
        s = s - jnp.max(s, axis=-1, keepdims=True)
        p = jnp.exp(s)
        p = p * pl.reciprocal(jnp.sum(p, axis=-1, keepdims=True), approx=True)
        oh = jnp.dot(p, v[:, sl], preferred_element_type=jnp.float32)
        contrib = jnp.dot(oh, wo[sl, :], preferred_element_type=jnp.float32)
        y = contrib if y is None else y + contrib
    return y + bo


# ----------------------------------------------------------------------------
# Fused kernel: one grid step per batch element.
# ----------------------------------------------------------------------------
def decoder_layer_kernel(xq_ref, mem_ref,
                         w_qkv_sa_ref, b_qkv_sa_ref, wo_sa_ref, bo_sa_ref,
                         ln1w_ref, ln1b_ref,
                         wq_ca_ref, bq_ca_ref, w_kv_ca_ref, b_kv_ca_ref,
                         wo_ca_ref, bo_ca_ref,
                         ln2w_ref, ln2b_ref,
                         w1_ref, b1_ref, w2_ref, b2_ref,
                         ln3w_ref, ln3b_ref,
                         o_ref, *, nhead):
    x = xq_ref[0]        # (T, D) float32
    mem = mem_ref[0]     # (S, D) float32
    D = x.shape[-1]

    # --- Stage 1: self-attention + residual + LayerNorm -----------------------
    qkv = jnp.dot(x, w_qkv_sa_ref[...],
                  preferred_element_type=jnp.float32) + b_qkv_sa_ref[...]
    y = _mha_out(qkv[:, 0:D], qkv[:, D:2 * D], qkv[:, 2 * D:3 * D],
                 wo_sa_ref[...], bo_sa_ref[...], nhead)
    x = _layernorm(x + y, ln1w_ref[...], ln1b_ref[...])

    # --- Stage 2: cross-attention + residual + LayerNorm ----------------------
    q = jnp.dot(x, wq_ca_ref[...],
                preferred_element_type=jnp.float32) + bq_ca_ref[...]
    kv = jnp.dot(mem, w_kv_ca_ref[...],
                 preferred_element_type=jnp.float32) + b_kv_ca_ref[...]
    y = _mha_out(q, kv[:, 0:D], kv[:, D:2 * D],
                 wo_ca_ref[...], bo_ca_ref[...], nhead)
    x = _layernorm(x + y, ln2w_ref[...], ln2b_ref[...])

    # --- Stage 3: feed-forward + residual + LayerNorm --------------------------
    h = jnp.dot(x, w1_ref[...], preferred_element_type=jnp.float32) + b1_ref[...]
    h = jnp.maximum(h, 0.0)                                  # ReLU
    y = jnp.dot(h, w2_ref[...], preferred_element_type=jnp.float32) + b2_ref[...]
    x = _layernorm(x + y, ln3w_ref[...], ln3b_ref[...])

    o_ref[0] = x.astype(o_ref.dtype)


def _full_spec(shape):
    nd = len(shape)
    return pl.BlockSpec(shape, lambda i, _nd=nd: (0,) * _nd)


def transformer_decoder_layer(tgt, memory, packed, nhead):
    """tgt: (T, B, D), memory: (S, B, D).  Returns (T, B, D)."""
    xq = jnp.transpose(tgt, (1, 0, 2))      # (B, T, D) — contiguous per-batch tiles
    mem = jnp.transpose(memory, (1, 0, 2))  # (B, S, D)
    B, T, D = xq.shape
    S = mem.shape[1]
    F = packed["w1"].shape[1]

    kernel = functools.partial(decoder_layer_kernel, nhead=nhead)
    out = pl.pallas_call(
        kernel,
        out_shape=jax.ShapeDtypeStruct((B, T, D), xq.dtype),
        grid=(B,),
        in_specs=[
            pl.BlockSpec((1, T, D), lambda i: (i, 0, 0)),
            pl.BlockSpec((1, S, D), lambda i: (i, 0, 0)),
            _full_spec((D, 3 * D)), _full_spec((1, 3 * D)),     # SA packed QKV
            _full_spec((D, D)), _full_spec((1, D)),             # SA out proj
            _full_spec((1, D)), _full_spec((1, D)),             # LN1
            _full_spec((D, D)), _full_spec((1, D)),             # CA Q proj
            _full_spec((D, 2 * D)), _full_spec((1, 2 * D)),     # CA packed KV
            _full_spec((D, D)), _full_spec((1, D)),             # CA out proj
            _full_spec((1, D)), _full_spec((1, D)),             # LN2
            _full_spec((D, F)), _full_spec((1, F)),             # linear1
            _full_spec((F, D)), _full_spec((1, D)),             # linear2
            _full_spec((1, D)), _full_spec((1, D)),             # LN3
        ],
        out_specs=pl.BlockSpec((1, T, D), lambda i: (i, 0, 0)),
        compiler_params=pltpu.CompilerParams(
            dimension_semantics=("parallel",)),
    )(xq, mem,
      packed["w_qkv_sa"], packed["b_qkv_sa"], packed["wo_sa"], packed["bo_sa"],
      packed["ln1_w"], packed["ln1_b"],
      packed["wq_ca"], packed["bq_ca"], packed["w_kv_ca"], packed["b_kv_ca"],
      packed["wo_ca"], packed["bo_ca"],
      packed["ln2_w"], packed["ln2_b"],
      packed["w1"], packed["b1"], packed["w2"], packed["b2"],
      packed["ln3_w"], packed["ln3_b"])
    return jnp.transpose(out, (1, 0, 2))


# ----------------------------------------------------------------------------
# Parameter construction (raw = PyTorch-layout weights) and kernel-side packing
# (QKV concatenation + 1/sqrt(dh) folded into the Q projection).
# ----------------------------------------------------------------------------
def _make_params(key, d_model, nhead, dim_ff):
    ks = jax.random.split(key, 10)
    scale = 0.05

    def rnd(k, shape):
        return (scale * jax.random.normal(k, shape)).astype(jnp.float32)

    def attn_params(k0, k1, k2):
        # Mirrors nn.MultiheadAttention: in_proj (3D x D), out_proj (D x D).
        in_proj_w = rnd(k0, (3 * d_model, d_model))     # PyTorch layout (3D, D)
        in_proj_b = rnd(k1, (3 * d_model,))
        wq = in_proj_w[0 * d_model:1 * d_model].T       # x @ Wq.T -> x @ wq
        wk = in_proj_w[1 * d_model:2 * d_model].T
        wv = in_proj_w[2 * d_model:3 * d_model].T
        bq = in_proj_b[0 * d_model:1 * d_model].reshape(1, d_model)
        bk = in_proj_b[1 * d_model:2 * d_model].reshape(1, d_model)
        bv = in_proj_b[2 * d_model:3 * d_model].reshape(1, d_model)
        wo = rnd(k2, (d_model, d_model)).T
        bo = jnp.zeros((1, d_model), jnp.float32)
        return (wq, wk, wv, bq, bk, bv, wo, bo)

    return {
        "sa": attn_params(ks[0], ks[1], ks[2]),
        "ca": attn_params(ks[3], ks[4], ks[5]),
        "w1": rnd(ks[6], (dim_ff, d_model)).T,           # linear1: x @ W1.T
        "b1": rnd(ks[7], (dim_ff,)).reshape(1, dim_ff),
        "w2": rnd(ks[8], (d_model, dim_ff)).T,           # linear2
        "b2": rnd(ks[9], (d_model,)).reshape(1, d_model),
        "ln1_w": jnp.ones((1, d_model), jnp.float32),
        "ln1_b": jnp.zeros((1, d_model), jnp.float32),
        "ln2_w": jnp.ones((1, d_model), jnp.float32),
        "ln2_b": jnp.zeros((1, d_model), jnp.float32),
        "ln3_w": jnp.ones((1, d_model), jnp.float32),
        "ln3_b": jnp.zeros((1, d_model), jnp.float32),
    }


def _pack_params(raw, d_model, nhead):
    dh = d_model // nhead
    qscale = 1.0 / (dh ** 0.5)
    wq, wk, wv, bq, bk, bv, wo, bo = raw["sa"]
    wq_c, wk_c, wv_c, bq_c, bk_c, bv_c, wo_c, bo_c = raw["ca"]
    return {
        # self-attention: packed QKV, softmax scale folded into Q weight+bias
        "w_qkv_sa": jnp.concatenate([wq * qscale, wk, wv], axis=1),   # (D, 3D)
        "b_qkv_sa": jnp.concatenate([bq * qscale, bk, bv], axis=1),   # (1, 3D)
        "wo_sa": wo, "bo_sa": bo,
        "ln1_w": raw["ln1_w"], "ln1_b": raw["ln1_b"],
        # cross-attention: Q from x (scaled), packed KV from memory
        "wq_ca": wq_c * qscale, "bq_ca": bq_c * qscale,
        "w_kv_ca": jnp.concatenate([wk_c, wv_c], axis=1),             # (D, 2D)
        "b_kv_ca": jnp.concatenate([bk_c, bv_c], axis=1),             # (1, 2D)
        "wo_ca": wo_c, "bo_ca": bo_c,
        "ln2_w": raw["ln2_w"], "ln2_b": raw["ln2_b"],
        # FFN
        "w1": raw["w1"], "b1": raw["b1"],
        "w2": raw["w2"], "b2": raw["b2"],
        "ln3_w": raw["ln3_w"], "ln3_b": raw["ln3_b"],
    }


# ----------------------------------------------------------------------------
# Pure-JAX reference (mirrors PyTorch semantics, uses raw unpacked params).
# ----------------------------------------------------------------------------
def _ref_forward(tgt, memory, params, nhead):
    def ln(x, w, b):
        mu = x.mean(-1, keepdims=True)
        var = ((x - mu) ** 2).mean(-1, keepdims=True)
        return (x - mu) / jnp.sqrt(var + LN_EPS) * w + b

    def mha(xq, xkv, wq, wk, wv, bq, bk, bv, wo, bo):
        B, Tq, D = xq.shape
        Tk = xkv.shape[1]
        dh = D // nhead
        q = (xq @ wq + bq).reshape(B, Tq, nhead, dh).transpose(0, 2, 1, 3)
        k = (xkv @ wk + bk).reshape(B, Tk, nhead, dh).transpose(0, 2, 1, 3)
        v = (xkv @ wv + bv).reshape(B, Tk, nhead, dh).transpose(0, 2, 1, 3)
        s = jnp.einsum("bhqd,bhkd->bhqk", q, k) / (dh ** 0.5)
        p = jax.nn.softmax(s, axis=-1)
        o = jnp.einsum("bhqk,bhkd->bhqd", p, v).transpose(0, 2, 1, 3).reshape(B, Tq, D)
        return o @ wo + bo

    x = jnp.transpose(tgt, (1, 0, 2))
    mem = jnp.transpose(memory, (1, 0, 2))
    x = ln(x + mha(x, x, *params["sa"]), params["ln1_w"][0], params["ln1_b"][0])
    x = ln(x + mha(x, mem, *params["ca"]), params["ln2_w"][0], params["ln2_b"][0])
    h = jnp.maximum(x @ params["w1"] + params["b1"][0], 0.0)
    x = ln(x + h @ params["w2"] + params["b2"][0], params["ln3_w"][0], params["ln3_b"][0])
    return jnp.transpose(x, (1, 0, 2))


if __name__ == "__main__":
    d_model, nhead, dim_ff = 32, 4, 64
    T, S, B = 8, 12, 2

    key = jax.random.PRNGKey(0)
    k_tgt, k_mem, k_par = jax.random.split(key, 3)
    tgt = jax.random.normal(k_tgt, (T, B, d_model), jnp.float32)     # (T, B, D)
    memory = jax.random.normal(k_mem, (S, B, d_model), jnp.float32)  # (S, B, D)

    raw_params = _make_params(k_par, d_model, nhead, dim_ff)
    packed_params = _pack_params(raw_params, d_model, nhead)

    out = transformer_decoder_layer(tgt, memory, packed_params, nhead)
    out = jax.block_until_ready(out)

    ref = _ref_forward(tgt, memory, raw_params, nhead)
    assert out.shape == (T, B, d_model)
    max_err = jnp.max(jnp.abs(out - ref))
    # Tolerance relaxed vs. exact softmax: pl.reciprocal(approx=True) is used
    # for the softmax denominator.
    assert jnp.allclose(out, ref, atol=2e-3, rtol=2e-3), \
        f"max abs err = {max_err}"

    print("KERNEL_OK")
</pallas_src>

<mosaic_0001>
module attributes {stable_mosaic.version = 11 : i64} {
  func.func @decoder_layer_kernel(%arg0: i32, %arg1: memref<1x8x32xf32, #tpu.memory_space<vmem>>, %arg2: memref<1x12x32xf32, #tpu.memory_space<vmem>>, %arg3: memref<32x96xf32, #tpu.memory_space<vmem>>, %arg4: memref<1x96xf32, #tpu.memory_space<vmem>>, %arg5: memref<32x32xf32, #tpu.memory_space<vmem>>, %arg6: memref<1x32xf32, #tpu.memory_space<vmem>>, %arg7: memref<1x32xf32, #tpu.memory_space<vmem>>, %arg8: memref<1x32xf32, #tpu.memory_space<vmem>>, %arg9: memref<32x32xf32, #tpu.memory_space<vmem>>, %arg10: memref<1x32xf32, #tpu.memory_space<vmem>>, %arg11: memref<32x64xf32, #tpu.memory_space<vmem>>, %arg12: memref<1x64xf32, #tpu.memory_space<vmem>>, %arg13: memref<32x32xf32, #tpu.memory_space<vmem>>, %arg14: memref<1x32xf32, #tpu.memory_space<vmem>>, %arg15: memref<1x32xf32, #tpu.memory_space<vmem>>, %arg16: memref<1x32xf32, #tpu.memory_space<vmem>>, %arg17: memref<32x64xf32, #tpu.memory_space<vmem>>, %arg18: memref<1x64xf32, #tpu.memory_space<vmem>>, %arg19: memref<64x32xf32, #tpu.memory_space<vmem>>, %arg20: memref<1x32xf32, #tpu.memory_space<vmem>>, %arg21: memref<1x32xf32, #tpu.memory_space<vmem>>, %arg22: memref<1x32xf32, #tpu.memory_space<vmem>>, %arg23: memref<1x8x32xf32, #tpu.memory_space<vmem>>) attributes {dimension_semantics = [#tpu.dimension_semantics<parallel>], iteration_bounds = array<i64: 2>, scalar_prefetch = 0 : i64, scratch_operands = 0 : i64, tpu.core_type = #tpu.core_type<tc>, window_params = [{transform_indices = @transform_0, window_bounds = array<i64: 1, 8, 32>}, {transform_indices = @transform_1, window_bounds = array<i64: 1, 12, 32>}, {pipeline_mode = #tpu.pipeline_mode<synchronous>, transform_indices = @transform_2, window_bounds = array<i64: 32, 96>}, {pipeline_mode = #tpu.pipeline_mode<synchronous>, transform_indices = @transform_3, window_bounds = array<i64: 1, 96>}, {pipeline_mode = #tpu.pipeline_mode<synchronous>, transform_indices = @transform_4, window_bounds = array<i64: 32, 32>}, {pipeline_mode = #tpu.pipeline_mode<synchronous>, transform_indices = @transform_5, window_bounds = array<i64: 1, 32>}, {pipeline_mode = #tpu.pipeline_mode<synchronous>, transform_indices = @transform_6, window_bounds = array<i64: 1, 32>}, {pipeline_mode = #tpu.pipeline_mode<synchronous>, transform_indices = @transform_7, window_bounds = array<i64: 1, 32>}, {pipeline_mode = #tpu.pipeline_mode<synchronous>, transform_indices = @transform_8, window_bounds = array<i64: 32, 32>}, {pipeline_mode = #tpu.pipeline_mode<synchronous>, transform_indices = @transform_9, window_bounds = array<i64: 1, 32>}, {pipeline_mode = #tpu.pipeline_mode<synchronous>, transform_indices = @transform_10, window_bounds = array<i64: 32, 64>}, {pipeline_mode = #tpu.pipeline_mode<synchronous>, transform_indices = @transform_11, window_bounds = array<i64: 1, 64>}, {pipeline_mode = #tpu.pipeline_mode<synchronous>, transform_indices = @transform_12, window_bounds = array<i64: 32, 32>}, {pipeline_mode = #tpu.pipeline_mode<synchronous>, transform_indices = @transform_13, window_bounds = array<i64: 1, 32>}, {pipeline_mode = #tpu.pipeline_mode<synchronous>, transform_indices = @transform_14, window_bounds = array<i64: 1, 32>}, {pipeline_mode = #tpu.pipeline_mode<synchronous>, transform_indices = @transform_15, window_bounds = array<i64: 1, 32>}, {pipeline_mode = #tpu.pipeline_mode<synchronous>, transform_indices = @transform_16, window_bounds = array<i64: 32, 64>}, {pipeline_mode = #tpu.pipeline_mode<synchronous>, transform_indices = @transform_17, window_bounds = array<i64: 1, 64>}, {pipeline_mode = #tpu.pipeline_mode<synchronous>, transform_indices = @transform_18, window_bounds = array<i64: 64, 32>}, {pipeline_mode = #tpu.pipeline_mode<synchronous>, transform_indices = @transform_19, window_bounds = array<i64: 1, 32>}, {pipeline_mode = #tpu.pipeline_mode<synchronous>, transform_indices = @transform_20, window_bounds = array<i64: 1, 32>}, {pipeline_mode = #tpu.pipeline_mode<synchronous>, transform_indices = @transform_21, window_bounds = array<i64: 1, 32>}, {transform_indices = @transform_22, window_bounds = array<i64: 1, 8, 32>}]} {
    %c0 = arith.constant 0 : index
    %c0_0 = arith.constant 0 : index
    %c0_1 = arith.constant 0 : index
    %0 = vector.load %arg1[%c0, %c0_0, %c0_1] : memref<1x8x32xf32, #tpu.memory_space<vmem>>, vector<1x8x32xf32>
    %1 = vector.shape_cast %0 : vector<1x8x32xf32> to vector<8x32xf32>
    %c0_2 = arith.constant 0 : index
    %c0_3 = arith.constant 0 : index
    %c0_4 = arith.constant 0 : index
    %2 = vector.load %arg2[%c0_2, %c0_3, %c0_4] : memref<1x12x32xf32, #tpu.memory_space<vmem>>, vector<1x12x32xf32>
    %3 = vector.shape_cast %2 : vector<1x12x32xf32> to vector<12x32xf32>
    %c0_5 = arith.constant 0 : index
    %c0_6 = arith.constant 0 : index
    %4 = vector.load %arg3[%c0_5, %c0_6] : memref<32x96xf32, #tpu.memory_space<vmem>>, vector<32x96xf32>
    %cst = arith.constant dense<0.000000e+00> : vector<8x96xf32>
    %5 = tpu.matmul %1, %4, %cst {dimension_numbers = #tpu.dot_dimension_numbers<[1], [0], [0], [1], [0, 0, 1, 1], [], []>} : vector<8x32xf32>, vector<32x96xf32>, vector<8x96xf32> -> vector<8x96xf32>
    %c0_7 = arith.constant 0 : index
    %c0_8 = arith.constant 0 : index
    %6 = vector.load %arg4[%c0_7, %c0_8] : memref<1x96xf32, #tpu.memory_space<vmem>>, vector<1x96xf32>
    %7 = vector.broadcast %6 : vector<1x96xf32> to vector<8x96xf32>
    %8 = arith.addf %5, %7 : vector<8x96xf32>
    %9 = vector.extract_strided_slice %8 {offsets = [0, 0], sizes = [8, 32], strides = [1, 1]} : vector<8x96xf32> to vector<8x32xf32>
    %10 = vector.extract_strided_slice %8 {offsets = [0, 32], sizes = [8, 32], strides = [1, 1]} : vector<8x96xf32> to vector<8x32xf32>
    %11 = vector.extract_strided_slice %8 {offsets = [0, 64], sizes = [8, 32], strides = [1, 1]} : vector<8x96xf32> to vector<8x32xf32>
    %c0_9 = arith.constant 0 : index
    %c0_10 = arith.constant 0 : index
    %12 = vector.load %arg5[%c0_9, %c0_10] : memref<32x32xf32, #tpu.memory_space<vmem>>, vector<32x32xf32>
    %c0_11 = arith.constant 0 : index
    %c0_12 = arith.constant 0 : index
    %13 = vector.load %arg6[%c0_11, %c0_12] : memref<1x32xf32, #tpu.memory_space<vmem>>, vector<1x32xf32>
    %14 = vector.extract_strided_slice %9 {offsets = [0, 0], sizes = [8, 8], strides = [1, 1]} : vector<8x32xf32> to vector<8x8xf32>
    %15 = vector.extract_strided_slice %10 {offsets = [0, 0], sizes = [8, 8], strides = [1, 1]} : vector<8x32xf32> to vector<8x8xf32>
    %16 = tpu.transpose %15, [1, 0] : vector<8x8xf32> -> vector<8x8xf32>
    %cst_13 = arith.constant dense<0.000000e+00> : vector<8x8xf32>
    %17 = tpu.matmul %14, %16, %cst_13 {dimension_numbers = #tpu.dot_dimension_numbers<[1], [0], [0], [1], [0, 0, 1, 1], [], []>} : vector<8x8xf32>, vector<8x8xf32>, vector<8x8xf32> -> vector<8x8xf32>
    %cst_14 = arith.constant dense<0xFF800000> : vector<8xf32>
    %18 = vector.multi_reduction <maximumf>, %17, %cst_14 [1] : vector<8x8xf32> to vector<8xf32>
    %19 = vector.shape_cast %18 : vector<8xf32> to vector<8x1xf32>
    %20 = vector.broadcast %19 : vector<8x1xf32> to vector<8x8xf32>
    %21 = arith.subf %17, %20 : vector<8x8xf32>
    %22 = math.exp %21 : vector<8x8xf32>
    %cst_15 = arith.constant dense<0.000000e+00> : vector<8xf32>
    %23 = vector.multi_reduction <add>, %22, %cst_15 [1] : vector<8x8xf32> to vector<8xf32>
    %24 = vector.shape_cast %23 : vector<8xf32> to vector<8x1xf32>
    %25 = tpu.reciprocal %24 {approx = true} : vector<8x1xf32> -> vector<8x1xf32>
    %26 = vector.broadcast %25 : vector<8x1xf32> to vector<8x8xf32>
    %27 = arith.mulf %22, %26 : vector<8x8xf32>
    %28 = vector.extract_strided_slice %11 {offsets = [0, 0], sizes = [8, 8], strides = [1, 1]} : vector<8x32xf32> to vector<8x8xf32>
    %cst_16 = arith.constant dense<0.000000e+00> : vector<8x8xf32>
    %29 = tpu.matmul %27, %28, %cst_16 {dimension_numbers = #tpu.dot_dimension_numbers<[1], [0], [0], [1], [0, 0, 1, 1], [], []>} : vector<8x8xf32>, vector<8x8xf32>, vector<8x8xf32> -> vector<8x8xf32>
    %30 = vector.extract_strided_slice %12 {offsets = [0, 0], sizes = [8, 32], strides = [1, 1]} : vector<32x32xf32> to vector<8x32xf32>
    %cst_17 = arith.constant dense<0.000000e+00> : vector<8x32xf32>
    %31 = tpu.matmul %29, %30, %cst_17 {dimension_numbers = #tpu.dot_dimension_numbers<[1], [0], [0], [1], [0, 0, 1, 1], [], []>} : vector<8x8xf32>, vector<8x32xf32>, vector<8x32xf32> -> vector<8x32xf32>
    %32 = vector.extract_strided_slice %9 {offsets = [0, 8], sizes = [8, 8], strides = [1, 1]} : vector<8x32xf32> to vector<8x8xf32>
    %33 = vector.extract_strided_slice %10 {offsets = [0, 8], sizes = [8, 8], strides = [1, 1]} : vector<8x32xf32> to vector<8x8xf32>
    %34 = tpu.transpose %33, [1, 0] : vector<8x8xf32> -> vector<8x8xf32>
    %cst_18 = arith.constant dense<0.000000e+00> : vector<8x8xf32>
    %35 = tpu.matmul %32, %34, %cst_18 {dimension_numbers = #tpu.dot_dimension_numbers<[1], [0], [0], [1], [0, 0, 1, 1], [], []>} : vector<8x8xf32>, vector<8x8xf32>, vector<8x8xf32> -> vector<8x8xf32>
    %cst_19 = arith.constant dense<0xFF800000> : vector<8xf32>
    %36 = vector.multi_reduction <maximumf>, %35, %cst_19 [1] : vector<8x8xf32> to vector<8xf32>
    %37 = vector.shape_cast %36 : vector<8xf32> to vector<8x1xf32>
    %38 = vector.broadcast %37 : vector<8x1xf32> to vector<8x8xf32>
    %39 = arith.subf %35, %38 : vector<8x8xf32>
    %40 = math.exp %39 : vector<8x8xf32>
    %cst_20 = arith.constant dense<0.000000e+00> : vector<8xf32>
    %41 = vector.multi_reduction <add>, %40, %cst_20 [1] : vector<8x8xf32> to vector<8xf32>
    %42 = vector.shape_cast %41 : vector<8xf32> to vector<8x1xf32>
    %43 = tpu.reciprocal %42 {approx = true} : vector<8x1xf32> -> vector<8x1xf32>
    %44 = vector.broadcast %43 : vector<8x1xf32> to vector<8x8xf32>
    %45 = arith.mulf %40, %44 : vector<8x8xf32>
    %46 = vector.extract_strided_slice %11 {offsets = [0, 8], sizes = [8, 8], strides = [1, 1]} : vector<8x32xf32> to vector<8x8xf32>
    %cst_21 = arith.constant dense<0.000000e+00> : vector<8x8xf32>
    %47 = tpu.matmul %45, %46, %cst_21 {dimension_numbers = #tpu.dot_dimension_numbers<[1], [0], [0], [1], [0, 0, 1, 1], [], []>} : vector<8x8xf32>, vector<8x8xf32>, vector<8x8xf32> -> vector<8x8xf32>
    %48 = vector.extract_strided_slice %12 {offsets = [8, 0], sizes = [8, 32], strides = [1, 1]} : vector<32x32xf32> to vector<8x32xf32>
    %cst_22 = arith.constant dense<0.000000e+00> : vector<8x32xf32>
    %49 = tpu.matmul %47, %48, %cst_22 {dimension_numbers = #tpu.dot_dimension_numbers<[1], [0], [0], [1], [0, 0, 1, 1], [], []>} : vector<8x8xf32>, vector<8x32xf32>, vector<8x32xf32> -> vector<8x32xf32>
    %50 = arith.addf %31, %49 : vector<8x32xf32>
    %51 = vector.extract_strided_slice %9 {offsets = [0, 16], sizes = [8, 8], strides = [1, 1]} : vector<8x32xf32> to vector<8x8xf32>
    %52 = vector.extract_strided_slice %10 {offsets = [0, 16], sizes = [8, 8], strides = [1, 1]} : vector<8x32xf32> to vector<8x8xf32>
    %53 = tpu.transpose %52, [1, 0] : vector<8x8xf32> -> vector<8x8xf32>
    %cst_23 = arith.constant dense<0.000000e+00> : vector<8x8xf32>
    %54 = tpu.matmul %51, %53, %cst_23 {dimension_numbers = #tpu.dot_dimension_numbers<[1], [0], [0], [1], [0, 0, 1, 1], [], []>} : vector<8x8xf32>, vector<8x8xf32>, vector<8x8xf32> -> vector<8x8xf32>
    %cst_24 = arith.constant dense<0xFF800000> : vector<8xf32>
    %55 = vector.multi_reduction <maximumf>, %54, %cst_24 [1] : vector<8x8xf32> to vector<8xf32>
    %56 = vector.shape_cast %55 : vector<8xf32> to vector<8x1xf32>
    %57 = vector.broadcast %56 : vector<8x1xf32> to vector<8x8xf32>
    %58 = arith.subf %54, %57 : vector<8x8xf32>
    %59 = math.exp %58 : vector<8x8xf32>
    %cst_25 = arith.constant dense<0.000000e+00> : vector<8xf32>
    %60 = vector.multi_reduction <add>, %59, %cst_25 [1] : vector<8x8xf32> to vector<8xf32>
    %61 = vector.shape_cast %60 : vector<8xf32> to vector<8x1xf32>
    %62 = tpu.reciprocal %61 {approx = true} : vector<8x1xf32> -> vector<8x1xf32>
    %63 = vector.broadcast %62 : vector<8x1xf32> to vector<8x8xf32>
    %64 = arith.mulf %59, %63 : vector<8x8xf32>
    %65 = vector.extract_strided_slice %11 {offsets = [0, 16], sizes = [8, 8], strides = [1, 1]} : vector<8x32xf32> to vector<8x8xf32>
    %cst_26 = arith.constant dense<0.000000e+00> : vector<8x8xf32>
    %66 = tpu.matmul %64, %65, %cst_26 {dimension_numbers = #tpu.dot_dimension_numbers<[1], [0], [0], [1], [0, 0, 1, 1], [], []>} : vector<8x8xf32>, vector<8x8xf32>, vector<8x8xf32> -> vector<8x8xf32>
    %67 = vector.extract_strided_slice %12 {offsets = [16, 0], sizes = [8, 32], strides = [1, 1]} : vector<32x32xf32> to vector<8x32xf32>
    %cst_27 = arith.constant dense<0.000000e+00> : vector<8x32xf32>
    %68 = tpu.matmul %66, %67, %cst_27 {dimension_numbers = #tpu.dot_dimension_numbers<[1], [0], [0], [1], [0, 0, 1, 1], [], []>} : vector<8x8xf32>, vector<8x32xf32>, vector<8x32xf32> -> vector<8x32xf32>
    %69 = arith.addf %50, %68 : vector<8x32xf32>
    %70 = vector.extract_strided_slice %9 {offsets = [0, 24], sizes = [8, 8], strides = [1, 1]} : vector<8x32xf32> to vector<8x8xf32>
    %71 = vector.extract_strided_slice %10 {offsets = [0, 24], sizes = [8, 8], strides = [1, 1]} : vector<8x32xf32> to vector<8x8xf32>
    %72 = tpu.transpose %71, [1, 0] : vector<8x8xf32> -> vector<8x8xf32>
    %cst_28 = arith.constant dense<0.000000e+00> : vector<8x8xf32>
    %73 = tpu.matmul %70, %72, %cst_28 {dimension_numbers = #tpu.dot_dimension_numbers<[1], [0], [0], [1], [0, 0, 1, 1], [], []>} : vector<8x8xf32>, vector<8x8xf32>, vector<8x8xf32> -> vector<8x8xf32>
    %cst_29 = arith.constant dense<0xFF800000> : vector<8xf32>
    %74 = vector.multi_reduction <maximumf>, %73, %cst_29 [1] : vector<8x8xf32> to vector<8xf32>
    %75 = vector.shape_cast %74 : vector<8xf32> to vector<8x1xf32>
    %76 = vector.broadcast %75 : vector<8x1xf32> to vector<8x8xf32>
    %77 = arith.subf %73, %76 : vector<8x8xf32>
    %78 = math.exp %77 : vector<8x8xf32>
    %cst_30 = arith.constant dense<0.000000e+00> : vector<8xf32>
    %79 = vector.multi_reduction <add>, %78, %cst_30 [1] : vector<8x8xf32> to vector<8xf32>
    %80 = vector.shape_cast %79 : vector<8xf32> to vector<8x1xf32>
    %81 = tpu.reciprocal %80 {approx = true} : vector<8x1xf32> -> vector<8x1xf32>
    %82 = vector.broadcast %81 : vector<8x1xf32> to vector<8x8xf32>
    %83 = arith.mulf %78, %82 : vector<8x8xf32>
    %84 = vector.extract_strided_slice %11 {offsets = [0, 24], sizes = [8, 8], strides = [1, 1]} : vector<8x32xf32> to vector<8x8xf32>
    %cst_31 = arith.constant dense<0.000000e+00> : vector<8x8xf32>
    %85 = tpu.matmul %83, %84, %cst_31 {dimension_numbers = #tpu.dot_dimension_numbers<[1], [0], [0], [1], [0, 0, 1, 1], [], []>} : vector<8x8xf32>, vector<8x8xf32>, vector<8x8xf32> -> vector<8x8xf32>
    %86 = vector.extract_strided_slice %12 {offsets = [24, 0], sizes = [8, 32], strides = [1, 1]} : vector<32x32xf32> to vector<8x32xf32>
    %cst_32 = arith.constant dense<0.000000e+00> : vector<8x32xf32>
    %87 = tpu.matmul %85, %86, %cst_32 {dimension_numbers = #tpu.dot_dimension_numbers<[1], [0], [0], [1], [0, 0, 1, 1], [], []>} : vector<8x8xf32>, vector<8x32xf32>, vector<8x32xf32> -> vector<8x32xf32>
    %88 = arith.addf %69, %87 : vector<8x32xf32>
    %89 = vector.broadcast %13 : vector<1x32xf32> to vector<8x32xf32>
    %90 = arith.addf %88, %89 : vector<8x32xf32>
    %91 = arith.addf %1, %90 : vector<8x32xf32>
    %c0_33 = arith.constant 0 : index
    %c0_34 = arith.constant 0 : index
    %92 = vector.load %arg7[%c0_33, %c0_34] : memref<1x32xf32, #tpu.memory_space<vmem>>, vector<1x32xf32>
    %c0_35 = arith.constant 0 : index
    %c0_36 = arith.constant 0 : index
    %93 = vector.load %arg8[%c0_35, %c0_36] : memref<1x32xf32, #tpu.memory_space<vmem>>, vector<1x32xf32>
    %cst_37 = arith.constant dense<0.000000e+00> : vector<8xf32>
    %94 = vector.multi_reduction <add>, %91, %cst_37 [1] : vector<8x32xf32> to vector<8xf32>
    %95 = vector.shape_cast %94 : vector<8xf32> to vector<8x1xf32>
    %cst_38 = arith.constant 3.200000e+01 : f32
    %96 = vector.broadcast %cst_38 : f32 to vector<8x1xf32>
    %97 = arith.divf %95, %96 : vector<8x1xf32>
    %98 = vector.broadcast %97 : vector<8x1xf32> to vector<8x32xf32>
    %99 = arith.subf %91, %98 : vector<8x32xf32>
    %100 = arith.mulf %99, %99 : vector<8x32xf32>
    %cst_39 = arith.constant dense<0.000000e+00> : vector<8xf32>
    %101 = vector.multi_reduction <add>, %100, %cst_39 [1] : vector<8x32xf32> to vector<8xf32>
    %102 = vector.shape_cast %101 : vector<8xf32> to vector<8x1xf32>
    %cst_40 = arith.constant 3.200000e+01 : f32
    %103 = vector.broadcast %cst_40 : f32 to vector<8x1xf32>
    %104 = arith.divf %102, %103 : vector<8x1xf32>
    %105 = vector.broadcast %97 : vector<8x1xf32> to vector<8x32xf32>
    %106 = arith.subf %91, %105 : vector<8x32xf32>
    %cst_41 = arith.constant 9.99999974E-6 : f32
    %107 = vector.broadcast %cst_41 : f32 to vector<8x1xf32>
    %108 = arith.addf %104, %107 : vector<8x1xf32>
    %109 = math.rsqrt %108 : vector<8x1xf32>
    %110 = vector.broadcast %109 : vector<8x1xf32> to vector<8x32xf32>
    %111 = arith.mulf %106, %110 : vector<8x32xf32>
    %112 = vector.broadcast %92 : vector<1x32xf32> to vector<8x32xf32>
    %113 = arith.mulf %111, %112 : vector<8x32xf32>
    %114 = vector.broadcast %93 : vector<1x32xf32> to vector<8x32xf32>
    %115 = arith.addf %113, %114 : vector<8x32xf32>
    %c0_42 = arith.constant 0 : index
    %c0_43 = arith.constant 0 : index
    %116 = vector.load %arg9[%c0_42, %c0_43] : memref<32x32xf32, #tpu.memory_space<vmem>>, vector<32x32xf32>
    %cst_44 = arith.constant dense<0.000000e+00> : vector<8x32xf32>
    %117 = tpu.matmul %115, %116, %cst_44 {dimension_numbers = #tpu.dot_dimension_numbers<[1], [0], [0], [1], [0, 0, 1, 1], [], []>} : vector<8x32xf32>, vector<32x32xf32>, vector<8x32xf32> -> vector<8x32xf32>
    %c0_45 = arith.constant 0 : index
    %c0_46 = arith.constant 0 : index
    %118 = vector.load %arg10[%c0_45, %c0_46] : memref<1x32xf32, #tpu.memory_space<vmem>>, vector<1x32xf32>
    %119 = vector.broadcast %118 : vector<1x32xf32> to vector<8x32xf32>
    %120 = arith.addf %117, %119 : vector<8x32xf32>
    %c0_47 = arith.constant 0 : index
    %c0_48 = arith.constant 0 : index
    %121 = vector.load %arg11[%c0_47, %c0_48] : memref<32x64xf32, #tpu.memory_space<vmem>>, vector<32x64xf32>
    %cst_49 = arith.constant dense<0.000000e+00> : vector<12x64xf32>
    %122 = tpu.matmul %3, %121, %cst_49 {dimension_numbers = #tpu.dot_dimension_numbers<[1], [0], [0], [1], [0, 0, 1, 1], [], []>} : vector<12x32xf32>, vector<32x64xf32>, vector<12x64xf32> -> vector<12x64xf32>
    %c0_50 = arith.constant 0 : index
    %c0_51 = arith.constant 0 : index
    %123 = vector.load %arg12[%c0_50, %c0_51] : memref<1x64xf32, #tpu.memory_space<vmem>>, vector<1x64xf32>
    %124 = vector.broadcast %123 : vector<1x64xf32> to vector<12x64xf32>
    %125 = arith.addf %122, %124 : vector<12x64xf32>
    %126 = vector.extract_strided_slice %125 {offsets = [0, 0], sizes = [12, 32], strides = [1, 1]} : vector<12x64xf32> to vector<12x32xf32>
    %127 = vector.extract_strided_slice %125 {offsets = [0, 32], sizes = [12, 32], strides = [1, 1]} : vector<12x64xf32> to vector<12x32xf32>
    %c0_52 = arith.constant 0 : index
    %c0_53 = arith.constant 0 : index
    %128 = vector.load %arg13[%c0_52, %c0_53] : memref<32x32xf32, #tpu.memory_space<vmem>>, vector<32x32xf32>
    %c0_54 = arith.constant 0 : index
    %c0_55 = arith.constant 0 : index
    %129 = vector.load %arg14[%c0_54, %c0_55] : memref<1x32xf32, #tpu.memory_space<vmem>>, vector<1x32xf32>
    %130 = vector.extract_strided_slice %120 {offsets = [0, 0], sizes = [8, 8], strides = [1, 1]} : vector<8x32xf32> to vector<8x8xf32>
    %131 = vector.extract_strided_slice %126 {offsets = [0, 0], sizes = [12, 8], strides = [1, 1]} : vector<12x32xf32> to vector<12x8xf32>
    %132 = tpu.transpose %131, [1, 0] : vector<12x8xf32> -> vector<8x12xf32>
    %cst_56 = arith.constant dense<0.000000e+00> : vector<8x12xf32>
    %133 = tpu.matmul %130, %132, %cst_56 {dimension_numbers = #tpu.dot_dimension_numbers<[1], [0], [0], [1], [0, 0, 1, 1], [], []>} : vector<8x8xf32>, vector<8x12xf32>, vector<8x12xf32> -> vector<8x12xf32>
    %cst_57 = arith.constant dense<0xFF800000> : vector<8xf32>
    %134 = vector.multi_reduction <maximumf>, %133, %cst_57 [1] : vector<8x12xf32> to vector<8xf32>
    %135 = vector.shape_cast %134 : vector<8xf32> to vector<8x1xf32>
    %136 = vector.broadcast %135 : vector<8x1xf32> to vector<8x12xf32>
    %137 = arith.subf %133, %136 : vector<8x12xf32>
    %138 = math.exp %137 : vector<8x12xf32>
    %cst_58 = arith.constant dense<0.000000e+00> : vector<8xf32>
    %139 = vector.multi_reduction <add>, %138, %cst_58 [1] : vector<8x12xf32> to vector<8xf32>
    %140 = vector.shape_cast %139 : vector<8xf32> to vector<8x1xf32>
    %141 = tpu.reciprocal %140 {approx = true} : vector<8x1xf32> -> vector<8x1xf32>
    %142 = vector.broadcast %141 : vector<8x1xf32> to vector<8x12xf32>
    %143 = arith.mulf %138, %142 : vector<8x12xf32>
    %144 = vector.extract_strided_slice %127 {offsets = [0, 0], sizes = [12, 8], strides = [1, 1]} : vector<12x32xf32> to vector<12x8xf32>
    %cst_59 = arith.constant dense<0.000000e+00> : vector<8x8xf32>
    %145 = tpu.matmul %143, %144, %cst_59 {dimension_numbers = #tpu.dot_dimension_numbers<[1], [0], [0], [1], [0, 0, 1, 1], [], []>} : vector<8x12xf32>, vector<12x8xf32>, vector<8x8xf32> -> vector<8x8xf32>
    %146 = vector.extract_strided_slice %128 {offsets = [0, 0], sizes = [8, 32], strides = [1, 1]} : vector<32x32xf32> to vector<8x32xf32>
    %cst_60 = arith.constant dense<0.000000e+00> : vector<8x32xf32>
    %147 = tpu.matmul %145, %146, %cst_60 {dimension_numbers = #tpu.dot_dimension_numbers<[1], [0], [0], [1], [0, 0, 1, 1], [], []>} : vector<8x8xf32>, vector<8x32xf32>, vector<8x32xf32> -> vector<8x32xf32>
    %148 = vector.extract_strided_slice %120 {offsets = [0, 8], sizes = [8, 8], strides = [1, 1]} : vector<8x32xf32> to vector<8x8xf32>
    %149 = vector.extract_strided_slice %126 {offsets = [0, 8], sizes = [12, 8], strides = [1, 1]} : vector<12x32xf32> to vector<12x8xf32>
    %150 = tpu.transpose %149, [1, 0] : vector<12x8xf32> -> vector<8x12xf32>
    %cst_61 = arith.constant dense<0.000000e+00> : vector<8x12xf32>
    %151 = tpu.matmul %148, %150, %cst_61 {dimension_numbers = #tpu.dot_dimension_numbers<[1], [0], [0], [1], [0, 0, 1, 1], [], []>} : vector<8x8xf32>, vector<8x12xf32>, vector<8x12xf32> -> vector<8x12xf32>
    %cst_62 = arith.constant dense<0xFF800000> : vector<8xf32>
    %152 = vector.multi_reduction <maximumf>, %151, %cst_62 [1] : vector<8x12xf32> to vector<8xf32>
    %153 = vector.shape_cast %152 : vector<8xf32> to vector<8x1xf32>
    %154 = vector.broadcast %153 : vector<8x1xf32> to vector<8x12xf32>
    %155 = arith.subf %151, %154 : vector<8x12xf32>
    %156 = math.exp %155 : vector<8x12xf32>
    %cst_63 = arith.constant dense<0.000000e+00> : vector<8xf32>
    %157 = vector.multi_reduction <add>, %156, %cst_63 [1] : vector<8x12xf32> to vector<8xf32>
    %158 = vector.shape_cast %157 : vector<8xf32> to vector<8x1xf32>
    %159 = tpu.reciprocal %158 {approx = true} : vector<8x1xf32> -> vector<8x1xf32>
    %160 = vector.broadcast %159 : vector<8x1xf32> to vector<8x12xf32>
    %161 = arith.mulf %156, %160 : vector<8x12xf32>
    %162 = vector.extract_strided_slice %127 {offsets = [0, 8], sizes = [12, 8], strides = [1, 1]} : vector<12x32xf32> to vector<12x8xf32>
    %cst_64 = arith.constant dense<0.000000e+00> : vector<8x8xf32>
    %163 = tpu.matmul %161, %162, %cst_64 {dimension_numbers = #tpu.dot_dimension_numbers<[1], [0], [0], [1], [0, 0, 1, 1], [], []>} : vector<8x12xf32>, vector<12x8xf32>, vector<8x8xf32> -> vector<8x8xf32>
    %164 = vector.extract_strided_slice %128 {offsets = [8, 0], sizes = [8, 32], strides = [1, 1]} : vector<32x32xf32> to vector<8x32xf32>
    %cst_65 = arith.constant dense<0.000000e+00> : vector<8x32xf32>
    %165 = tpu.matmul %163, %164, %cst_65 {dimension_numbers = #tpu.dot_dimension_numbers<[1], [0], [0], [1], [0, 0, 1, 1], [], []>} : vector<8x8xf32>, vector<8x32xf32>, vector<8x32xf32> -> vector<8x32xf32>
    %166 = arith.addf %147, %165 : vector<8x32xf32>
    %167 = vector.extract_strided_slice %120 {offsets = [0, 16], sizes = [8, 8], strides = [1, 1]} : vector<8x32xf32> to vector<8x8xf32>
    %168 = vector.extract_strided_slice %126 {offsets = [0, 16], sizes = [12, 8], strides = [1, 1]} : vector<12x32xf32> to vector<12x8xf32>
    %169 = tpu.transpose %168, [1, 0] : vector<12x8xf32> -> vector<8x12xf32>
    %cst_66 = arith.constant dense<0.000000e+00> : vector<8x12xf32>
    %170 = tpu.matmul %167, %169, %cst_66 {dimension_numbers = #tpu.dot_dimension_numbers<[1], [0], [0], [1], [0, 0, 1, 1], [], []>} : vector<8x8xf32>, vector<8x12xf32>, vector<8x12xf32> -> vector<8x12xf32>
    %cst_67 = arith.constant dense<0xFF800000> : vector<8xf32>
    %171 = vector.multi_reduction <maximumf>, %170, %cst_67 [1] : vector<8x12xf32> to vector<8xf32>
    %172 = vector.shape_cast %171 : vector<8xf32> to vector<8x1xf32>
    %173 = vector.broadcast %172 : vector<8x1xf32> to vector<8x12xf32>
    %174 = arith.subf %170, %173 : vector<8x12xf32>
    %175 = math.exp %174 : vector<8x12xf32>
    %cst_68 = arith.constant dense<0.000000e+00> : vector<8xf32>
    %176 = vector.multi_reduction <add>, %175, %cst_68 [1] : vector<8x12xf32> to vector<8xf32>
    %177 = vector.shape_cast %176 : vector<8xf32> to vector<8x1xf32>
    %178 = tpu.reciprocal %177 {approx = true} : vector<8x1xf32> -> vector<8x1xf32>
    %179 = vector.broadcast %178 : vector<8x1xf32> to vector<8x12xf32>
    %180 = arith.mulf %175, %179 : vector<8x12xf32>
    %181 = vector.extract_strided_slice %127 {offsets = [0, 16], sizes = [12, 8], strides = [1, 1]} : vector<12x32xf32> to vector<12x8xf32>
    %cst_69 = arith.constant dense<0.000000e+00> : vector<8x8xf32>
    %182 = tpu.matmul %180, %181, %cst_69 {dimension_numbers = #tpu.dot_dimension_numbers<[1], [0], [0], [1], [0, 0, 1, 1], [], []>} : vector<8x12xf32>, vector<12x8xf32>, vector<8x8xf32> -> vector<8x8xf32>
    %183 = vector.extract_strided_slice %128 {offsets = [16, 0], sizes = [8, 32], strides = [1, 1]} : vector<32x32xf32> to vector<8x32xf32>
    %cst_70 = arith.constant dense<0.000000e+00> : vector<8x32xf32>
    %184 = tpu.matmul %182, %183, %cst_70 {dimension_numbers = #tpu.dot_dimension_numbers<[1], [0], [0], [1], [0, 0, 1, 1], [], []>} : vector<8x8xf32>, vector<8x32xf32>, vector<8x32xf32> -> vector<8x32xf32>
    %185 = arith.addf %166, %184 : vector<8x32xf32>
    %186 = vector.extract_strided_slice %120 {offsets = [0, 24], sizes = [8, 8], strides = [1, 1]} : vector<8x32xf32> to vector<8x8xf32>
    %187 = vector.extract_strided_slice %126 {offsets = [0, 24], sizes = [12, 8], strides = [1, 1]} : vector<12x32xf32> to vector<12x8xf32>
    %188 = tpu.transpose %187, [1, 0] : vector<12x8xf32> -> vector<8x12xf32>
    %cst_71 = arith.constant dense<0.000000e+00> : vector<8x12xf32>
    %189 = tpu.matmul %186, %188, %cst_71 {dimension_numbers = #tpu.dot_dimension_numbers<[1], [0], [0], [1], [0, 0, 1, 1], [], []>} : vector<8x8xf32>, vector<8x12xf32>, vector<8x12xf32> -> vector<8x12xf32>
    %cst_72 = arith.constant dense<0xFF800000> : vector<8xf32>
    %190 = vector.multi_reduction <maximumf>, %189, %cst_72 [1] : vector<8x12xf32> to vector<8xf32>
    %191 = vector.shape_cast %190 : vector<8xf32> to vector<8x1xf32>
    %192 = vector.broadcast %191 : vector<8x1xf32> to vector<8x12xf32>
    %193 = arith.subf %189, %192 : vector<8x12xf32>
    %194 = math.exp %193 : vector<8x12xf32>
    %cst_73 = arith.constant dense<0.000000e+00> : vector<8xf32>
    %195 = vector.multi_reduction <add>, %194, %cst_73 [1] : vector<8x12xf32> to vector<8xf32>
    %196 = vector.shape_cast %195 : vector<8xf32> to vector<8x1xf32>
    %197 = tpu.reciprocal %196 {approx = true} : vector<8x1xf32> -> vector<8x1xf32>
    %198 = vector.broadcast %197 : vector<8x1xf32> to vector<8x12xf32>
    %199 = arith.mulf %194, %198 : vector<8x12xf32>
    %200 = vector.extract_strided_slice %127 {offsets = [0, 24], sizes = [12, 8], strides = [1, 1]} : vector<12x32xf32> to vector<12x8xf32>
    %cst_74 = arith.constant dense<0.000000e+00> : vector<8x8xf32>
    %201 = tpu.matmul %199, %200, %cst_74 {dimension_numbers = #tpu.dot_dimension_numbers<[1], [0], [0], [1], [0, 0, 1, 1], [], []>} : vector<8x12xf32>, vector<12x8xf32>, vector<8x8xf32> -> vector<8x8xf32>
    %202 = vector.extract_strided_slice %128 {offsets = [24, 0], sizes = [8, 32], strides = [1, 1]} : vector<32x32xf32> to vector<8x32xf32>
    %cst_75 = arith.constant dense<0.000000e+00> : vector<8x32xf32>
    %203 = tpu.matmul %201, %202, %cst_75 {dimension_numbers = #tpu.dot_dimension_numbers<[1], [0], [0], [1], [0, 0, 1, 1], [], []>} : vector<8x8xf32>, vector<8x32xf32>, vector<8x32xf32> -> vector<8x32xf32>
    %204 = arith.addf %185, %203 : vector<8x32xf32>
    %205 = vector.broadcast %129 : vector<1x32xf32> to vector<8x32xf32>
    %206 = arith.addf %204, %205 : vector<8x32xf32>
    %207 = arith.addf %115, %206 : vector<8x32xf32>
    %c0_76 = arith.constant 0 : index
    %c0_77 = arith.constant 0 : index
    %208 = vector.load %arg15[%c0_76, %c0_77] : memref<1x32xf32, #tpu.memory_space<vmem>>, vector<1x32xf32>
    %c0_78 = arith.constant 0 : index
    %c0_79 = arith.constant 0 : index
    %209 = vector.load %arg16[%c0_78, %c0_79] : memref<1x32xf32, #tpu.memory_space<vmem>>, vector<1x32xf32>
    %cst_80 = arith.constant dense<0.000000e+00> : vector<8xf32>
    %210 = vector.multi_reduction <add>, %207, %cst_80 [1] : vector<8x32xf32> to vector<8xf32>
    %211 = vector.shape_cast %210 : vector<8xf32> to vector<8x1xf32>
    %cst_81 = arith.constant 3.200000e+01 : f32
    %212 = vector.broadcast %cst_81 : f32 to vector<8x1xf32>
    %213 = arith.divf %211, %212 : vector<8x1xf32>
    %214 = vector.broadcast %213 : vector<8x1xf32> to vector<8x32xf32>
    %215 = arith.subf %207, %214 : vector<8x32xf32>
    %216 = arith.mulf %215, %215 : vector<8x32xf32>
    %cst_82 = arith.constant dense<0.000000e+00> : vector<8xf32>
    %217 = vector.multi_reduction <add>, %216, %cst_82 [1] : vector<8x32xf32> to vector<8xf32>
    %218 = vector.shape_cast %217 : vector<8xf32> to vector<8x1xf32>
    %cst_83 = arith.constant 3.200000e+01 : f32
    %219 = vector.broadcast %cst_83 : f32 to vector<8x1xf32>
    %220 = arith.divf %218, %219 : vector<8x1xf32>
    %221 = vector.broadcast %213 : vector<8x1xf32> to vector<8x32xf32>
    %222 = arith.subf %207, %221 : vector<8x32xf32>
    %cst_84 = arith.constant 9.99999974E-6 : f32
    %223 = vector.broadcast %cst_84 : f32 to vector<8x1xf32>
    %224 = arith.addf %220, %223 : vector<8x1xf32>
    %225 = math.rsqrt %224 : vector<8x1xf32>
    %226 = vector.broadcast %225 : vector<8x1xf32> to vector<8x32xf32>
    %227 = arith.mulf %222, %226 : vector<8x32xf32>
    %228 = vector.broadcast %208 : vector<1x32xf32> to vector<8x32xf32>
    %229 = arith.mulf %227, %228 : vector<8x32xf32>
    %230 = vector.broadcast %209 : vector<1x32xf32> to vector<8x32xf32>
    %231 = arith.addf %229, %230 : vector<8x32xf32>
    %c0_85 = arith.constant 0 : index
    %c0_86 = arith.constant 0 : index
    %232 = vector.load %arg17[%c0_85, %c0_86] : memref<32x64xf32, #tpu.memory_space<vmem>>, vector<32x64xf32>
    %cst_87 = arith.constant dense<0.000000e+00> : vector<8x64xf32>
    %233 = tpu.matmul %231, %232, %cst_87 {dimension_numbers = #tpu.dot_dimension_numbers<[1], [0], [0], [1], [0, 0, 1, 1], [], []>} : vector<8x32xf32>, vector<32x64xf32>, vector<8x64xf32> -> vector<8x64xf32>
    %c0_88 = arith.constant 0 : index
    %c0_89 = arith.constant 0 : index
    %234 = vector.load %arg18[%c0_88, %c0_89] : memref<1x64xf32, #tpu.memory_space<vmem>>, vector<1x64xf32>
    %235 = vector.broadcast %234 : vector<1x64xf32> to vector<8x64xf32>
    %236 = arith.addf %233, %235 : vector<8x64xf32>
    %cst_90 = arith.constant 0.000000e+00 : f32
    %237 = vector.broadcast %cst_90 : f32 to vector<8x64xf32>
    %238 = arith.maximumf %236, %237 : vector<8x64xf32>
    %c0_91 = arith.constant 0 : index
    %c0_92 = arith.constant 0 : index
    %239 = vector.load %arg19[%c0_91, %c0_92] : memref<64x32xf32, #tpu.memory_space<vmem>>, vector<64x32xf32>
    %cst_93 = arith.constant dense<0.000000e+00> : vector<8x32xf32>
    %240 = tpu.matmul %238, %239, %cst_93 {dimension_numbers = #tpu.dot_dimension_numbers<[1], [0], [0], [1], [0, 0, 1, 1], [], []>} : vector<8x64xf32>, vector<64x32xf32>, vector<8x32xf32> -> vector<8x32xf32>
    %c0_94 = arith.constant 0 : index
    %c0_95 = arith.constant 0 : index
    %241 = vector.load %arg20[%c0_94, %c0_95] : memref<1x32xf32, #tpu.memory_space<vmem>>, vector<1x32xf32>
    %242 = vector.broadcast %241 : vector<1x32xf32> to vector<8x32xf32>
    %243 = arith.addf %240, %242 : vector<8x32xf32>
    %244 = arith.addf %231, %243 : vector<8x32xf32>
    %c0_96 = arith.constant 0 : index
    %c0_97 = arith.constant 0 : index
    %245 = vector.load %arg21[%c0_96, %c0_97] : memref<1x32xf32, #tpu.memory_space<vmem>>, vector<1x32xf32>
    %c0_98 = arith.constant 0 : index
    %c0_99 = arith.constant 0 : index
    %246 = vector.load %arg22[%c0_98, %c0_99] : memref<1x32xf32, #tpu.memory_space<vmem>>, vector<1x32xf32>
    %cst_100 = arith.constant dense<0.000000e+00> : vector<8xf32>
    %247 = vector.multi_reduction <add>, %244, %cst_100 [1] : vector<8x32xf32> to vector<8xf32>
    %248 = vector.shape_cast %247 : vector<8xf32> to vector<8x1xf32>
    %cst_101 = arith.constant 3.200000e+01 : f32
    %249 = vector.broadcast %cst_101 : f32 to vector<8x1xf32>
    %250 = arith.divf %248, %249 : vector<8x1xf32>
    %251 = vector.broadcast %250 : vector<8x1xf32> to vector<8x32xf32>
    %252 = arith.subf %244, %251 : vector<8x32xf32>
    %253 = arith.mulf %252, %252 : vector<8x32xf32>
    %cst_102 = arith.constant dense<0.000000e+00> : vector<8xf32>
    %254 = vector.multi_reduction <add>, %253, %cst_102 [1] : vector<8x32xf32> to vector<8xf32>
    %255 = vector.shape_cast %254 : vector<8xf32> to vector<8x1xf32>
    %cst_103 = arith.constant 3.200000e+01 : f32
    %256 = vector.broadcast %cst_103 : f32 to vector<8x1xf32>
    %257 = arith.divf %255, %256 : vector<8x1xf32>
    %258 = vector.broadcast %250 : vector<8x1xf32> to vector<8x32xf32>
    %259 = arith.subf %244, %258 : vector<8x32xf32>
    %cst_104 = arith.constant 9.99999974E-6 : f32
    %260 = vector.broadcast %cst_104 : f32 to vector<8x1xf32>
    %261 = arith.addf %257, %260 : vector<8x1xf32>
    %262 = math.rsqrt %261 : vector<8x1xf32>
    %263 = vector.broadcast %262 : vector<8x1xf32> to vector<8x32xf32>
    %264 = arith.mulf %259, %263 : vector<8x32xf32>
    %265 = vector.broadcast %245 : vector<1x32xf32> to vector<8x32xf32>
    %266 = arith.mulf %264, %265 : vector<8x32xf32>
    %267 = vector.broadcast %246 : vector<1x32xf32> to vector<8x32xf32>
    %268 = arith.addf %266, %267 : vector<8x32xf32>
    %c0_105 = arith.constant 0 : index
    %c0_106 = arith.constant 0 : index
    %c0_107 = arith.constant 0 : index
    %269 = vector.load %arg23[%c0_105, %c0_106, %c0_107] : memref<1x8x32xf32, #tpu.memory_space<vmem>>, vector<1x8x32xf32>
    %270 = vector.shape_cast %269 : vector<1x8x32xf32> to vector<8x32xf32>
    %271 = vector.shape_cast %268 : vector<8x32xf32> to vector<1x8x32xf32>
    tpu.vector_store %arg23[%c0_105, %c0_106, %c0_107], %271 {strides = array<i32>} : memref<1x8x32xf32, #tpu.memory_space<vmem>>, vector<1x8x32xf32>,
    return
  }
  func.func @transform_0(%arg0: i32) -> (i32, i32, i32) {
    %c0_i32 = arith.constant 0 : i32
    %c0_i32_0 = arith.constant 0 : i32
    %c0_i32_1 = arith.constant 0 : i32
    return %arg0, %c0_i32, %c0_i32_0 : i32, i32, i32
  }
  func.func @transform_1(%arg0: i32) -> (i32, i32, i32) {
    %c0_i32 = arith.constant 0 : i32
    %c0_i32_0 = arith.constant 0 : i32
    %c0_i32_1 = arith.constant 0 : i32
    return %arg0, %c0_i32, %c0_i32_0 : i32, i32, i32
  }
  func.func @transform_2(%arg0: i32) -> (i32, i32) {
    %c0_i32 = arith.constant 0 : i32
    %c0_i32_0 = arith.constant 0 : i32
    %c0_i32_1 = arith.constant 0 : i32
    return %c0_i32, %c0_i32_0 : i32, i32
  }
  func.func @transform_3(%arg0: i32) -> (i32, i32) {
    %c0_i32 = arith.constant 0 : i32
    %c0_i32_0 = arith.constant 0 : i32
    %c0_i32_1 = arith.constant 0 : i32
    return %c0_i32, %c0_i32_0 : i32, i32
  }
  func.func @transform_4(%arg0: i32) -> (i32, i32) {
    %c0_i32 = arith.constant 0 : i32
    %c0_i32_0 = arith.constant 0 : i32
    %c0_i32_1 = arith.constant 0 : i32
    return %c0_i32, %c0_i32_0 : i32, i32
  }
  func.func @transform_5(%arg0: i32) -> (i32, i32) {
    %c0_i32 = arith.constant 0 : i32
    %c0_i32_0 = arith.constant 0 : i32
    %c0_i32_1 = arith.constant 0 : i32
    return %c0_i32, %c0_i32_0 : i32, i32
  }
  func.func @transform_6(%arg0: i32) -> (i32, i32) {
    %c0_i32 = arith.constant 0 : i32
    %c0_i32_0 = arith.constant 0 : i32
    %c0_i32_1 = arith.constant 0 : i32
    return %c0_i32, %c0_i32_0 : i32, i32
  }
  func.func @transform_7(%arg0: i32) -> (i32, i32) {
    %c0_i32 = arith.constant 0 : i32
    %c0_i32_0 = arith.constant 0 : i32
    %c0_i32_1 = arith.constant 0 : i32
    return %c0_i32, %c0_i32_0 : i32, i32
  }
  func.func @transform_8(%arg0: i32) -> (i32, i32) {
    %c0_i32 = arith.constant 0 : i32
    %c0_i32_0 = arith.constant 0 : i32
    %c0_i32_1 = arith.constant 0 : i32
    return %c0_i32, %c0_i32_0 : i32, i32
  }
  func.func @transform_9(%arg0: i32) -> (i32, i32) {
    %c0_i32 = arith.constant 0 : i32
    %c0_i32_0 = arith.constant 0 : i32
    %c0_i32_1 = arith.constant 0 : i32
    return %c0_i32, %c0_i32_0 : i32, i32
  }
  func.func @transform_10(%arg0: i32) -> (i32, i32) {
    %c0_i32 = arith.constant 0 : i32
    %c0_i32_0 = arith.constant 0 : i32
    %c0_i32_1 = arith.constant 0 : i32
    return %c0_i32, %c0_i32_0 : i32, i32
  }
  func.func @transform_11(%arg0: i32) -> (i32, i32) {
    %c0_i32 = arith.constant 0 : i32
    %c0_i32_0 = arith.constant 0 : i32
    %c0_i32_1 = arith.constant 0 : i32
    return %c0_i32, %c0_i32_0 : i32, i32
  }
  func.func @transform_12(%arg0: i32) -> (i32, i32) {
    %c0_i32 = arith.constant 0 : i32
    %c0_i32_0 = arith.constant 0 : i32
    %c0_i32_1 = arith.constant 0 : i32
    return %c0_i32, %c0_i32_0 : i32, i32
  }
  func.func @transform_13(%arg0: i32) -> (i32, i32) {
    %c0_i32 = arith.constant 0 : i32
    %c0_i32_0 = arith.constant 0 : i32
    %c0_i32_1 = arith.constant 0 : i32
    return %c0_i32, %c0_i32_0 : i32, i32
  }
  func.func @transform_14(%arg0: i32) -> (i32, i32) {
    %c0_i32 = arith.constant 0 : i32
    %c0_i32_0 = arith.constant 0 : i32
    %c0_i32_1 = arith.constant 0 : i32
    return %c0_i32, %c0_i32_0 : i32, i32
  }
  func.func @transform_15(%arg0: i32) -> (i32, i32) {
    %c0_i32 = arith.constant 0 : i32
    %c0_i32_0 = arith.constant 0 : i32
    %c0_i32_1 = arith.constant 0 : i32
    return %c0_i32, %c0_i32_0 : i32, i32
  }
  func.func @transform_16(%arg0: i32) -> (i32, i32) {
    %c0_i32 = arith.constant 0 : i32
    %c0_i32_0 = arith.constant 0 : i32
    %c0_i32_1 = arith.constant 0 : i32
    return %c0_i32, %c0_i32_0 : i32, i32
  }
  func.func @transform_17(%arg0: i32) -> (i32, i32) {
    %c0_i32 = arith.constant 0 : i32
    %c0_i32_0 = arith.constant 0 : i32
    %c0_i32_1 = arith.constant 0 : i32
    return %c0_i32, %c0_i32_0 : i32, i32
  }
  func.func @transform_18(%arg0: i32) -> (i32, i32) {
    %c0_i32 = arith.constant 0 : i32
    %c0_i32_0 = arith.constant 0 : i32
    %c0_i32_1 = arith.constant 0 : i32
    return %c0_i32, %c0_i32_0 : i32, i32
  }
  func.func @transform_19(%arg0: i32) -> (i32, i32) {
    %c0_i32 = arith.constant 0 : i32
    %c0_i32_0 = arith.constant 0 : i32
    %c0_i32_1 = arith.constant 0 : i32
    return %c0_i32, %c0_i32_0 : i32, i32
  }
  func.func @transform_20(%arg0: i32) -> (i32, i32) {
    %c0_i32 = arith.constant 0 : i32
    %c0_i32_0 = arith.constant 0 : i32
    %c0_i32_1 = arith.constant 0 : i32
    return %c0_i32, %c0_i32_0 : i32, i32
  }
  func.func @transform_21(%arg0: i32) -> (i32, i32) {
    %c0_i32 = arith.constant 0 : i32
    %c0_i32_0 = arith.constant 0 : i32
    %c0_i32_1 = arith.constant 0 : i32
    return %c0_i32, %c0_i32_0 : i32, i32
  }
  func.func @transform_22(%arg0: i32) -> (i32, i32, i32) {
    %c0_i32 = arith.constant 0 : i32
    %c0_i32_0 = arith.constant 0 : i32
    %c0_i32_1 = arith.constant 0 : i32
    return %arg0, %c0_i32, %c0_i32_0 : i32, i32, i32
  }
}

</mosaic_0001>

<llo_original>
// kernel: tpu_custom_call.1
$region0: #{tpu_custom_call.1}
  #allocation0 [shape = 'u32[]', space=smem, size = 0x4, offset = 0x4, fixed_abs, tag = 'smem constant byte address 0x4 - core index']
  #allocation1 [shape = 'u32[144,128]{1,0:T(1,128)}', space=vmem, size = 0x12000, scoped, tag = 'internal scratch']
  %s0 = inlined_call_operand.hbm [shape: f32[2,8,32], index: 0, kind: input, shape index: {}]
  %s1 = inlined_call_operand.vmem [shape: f32[2,12,32], index: 1, kind: input, shape index: {}]
  %s2 = inlined_call_operand.vmem [shape: f32[32,96], index: 2, kind: input, shape index: {}]
  %s3 = inlined_call_operand.vmem [shape: f32[1,96], index: 3, kind: input, shape index: {}]
  %s4 = inlined_call_operand.vmem [shape: f32[32,32], index: 4, kind: input, shape index: {}]
  %s5 = inlined_call_operand.hbm [shape: f32[1,32], index: 5, kind: input, shape index: {}]
  %s6 = inlined_call_operand.hbm [shape: f32[1,32], index: 6, kind: input, shape index: {}]
  %s7 = inlined_call_operand.hbm [shape: f32[1,32], index: 7, kind: input, shape index: {}]
  %s8 = inlined_call_operand.vmem [shape: f32[32,32], index: 8, kind: input, shape index: {}]
  %s9 = inlined_call_operand.hbm [shape: f32[1,32], index: 9, kind: input, shape index: {}]
  %s10 = inlined_call_operand.vmem [shape: f32[32,64], index: 10, kind: input, shape index: {}]
  %s11 = inlined_call_operand.hbm [shape: f32[1,64], index: 11, kind: input, shape index: {}]
  %s12 = inlined_call_operand.vmem [shape: f32[32,32], index: 12, kind: input, shape index: {}]
  %s13 = inlined_call_operand.vmem [shape: f32[1,32], index: 13, kind: input, shape index: {}]
  %s14 = inlined_call_operand.vmem [shape: f32[1,32], index: 14, kind: input, shape index: {}]
  %s15 = inlined_call_operand.vmem [shape: f32[1,32], index: 15, kind: input, shape index: {}]
  %s16 = inlined_call_operand.hbm [shape: f32[32,64], index: 16, kind: input, shape index: {}]
  %s17 = inlined_call_operand.vmem [shape: f32[1,64], index: 17, kind: input, shape index: {}]
  %s18 = inlined_call_operand.vmem [shape: f32[64,32], index: 18, kind: input, shape index: {}]
  %s19 = inlined_call_operand.vmem [shape: f32[1,32], index: 19, kind: input, shape index: {}]
  %s20 = inlined_call_operand.vmem [shape: f32[1,32], index: 20, kind: input, shape index: {}]
  %s21 = inlined_call_operand.vmem [shape: f32[1,32], index: 21, kind: input, shape index: {}]
  %s22 = inlined_call_operand.hbm [shape: f32[2,8,32], index: 22, kind: output, shape index: {}]
  %s23 = sld [smem:[#allocation0]]
  $region149: #{tpu_custom_call.1} parent=0
    _
  %s25 = ssub.s32 1, %s23
  %s26 = scalar_select 0, %s25, %s23
  $region1: #{tpu_custom_call.1} parent=0
    #allocation2 [shape = 'u8[8192]{0}', space=vmem, size = 0x2000, scoped, tag = 'input window, operand 0']
    #allocation3 [shape = 's32[2]{0}', space=sflag, size = 0x8, scoped, tag = 'scoped memory for tpu_custom_call.1']
    #allocation4 [shape = 's32[2]{0}', space=sflag, size = 0x8, scoped, tag = 'scoped memory for tpu_custom_call.1']
    #allocation5 [shape = 'u8[512]{0}', space=vmem, size = 0x400, scoped, tag = 'input window, operand 5, single buffered']
    #allocation6 [shape = 's32[1]{0}', space=sflag, size = 0x4, scoped, tag = 'scoped memory for tpu_custom_call.1']
    #allocation7 [shape = 'u8[512]{0}', space=vmem, size = 0x400, scoped, tag = 'input window, operand 6, single buffered']
    #allocation8 [shape = 'u8[512]{0}', space=vmem, size = 0x400, scoped, tag = 'input window, operand 7, single buffered']
    #allocation9 [shape = 's32[1]{0}', space=sflag, size = 0x4, scoped, tag = 'scoped memory for tpu_custom_call.1']
    #allocation10 [shape = 'u8[512]{0}', space=vmem, size = 0x400, scoped, tag = 'input window, operand 9, single buffered']
    #allocation11 [shape = 'u8[512]{0}', space=vmem, size = 0x400, scoped, tag = 'input window, operand 11, single buffered']
    #allocation12 [shape = 's32[1]{0}', space=sflag, size = 0x4, scoped, tag = 'scoped memory for tpu_custom_call.1']
    #allocation13 [shape = 'u8[16384]{0}', space=vmem, size = 0x4000, scoped, tag = 'input window, operand 16, single buffered']
    #allocation14 [shape = 'u8[8192]{0}', space=vmem, size = 0x2000, scoped, tag = 'output window, operand 0']
    %27 = vsyncpa [#allocation3], 0
    %s28 = scalar_lea.sflag [#allocation3], 1
    %29 = vsyncpa %s28, 0
    %30 = vsyncpa [#allocation6], 0
    %31 = vsyncpa [#allocation9], 0
    %32 = vsyncpa [#allocation12], 0
    %33 = vsyncpa [#allocation4], 0
    %s34 = scalar_lea.sflag [#allocation4], 1
    %35 = vsyncpa %s34, 0
    loop: start=0, step=1, limit=4
    $region2: #{tpu_custom_call.1} parent=1 // loop_pre_header
      _
    $region3: #{tpu_custom_call.1} parent=1 // loop_header
      %s37 = sphi 0, %s41
      %p38 = scmp.ge.s32.totalorder %s37, 4
      %s47 = sphi 0, %s49
      %s50 = sphi 0, %s47
      %s51 = sphi 0, %s50
      %s67 = sphi 0, %s51
      %s73 = sphi 0, %s75
      %s76 = sphi 0, %s73
      %s77 = sphi 0, %s76
      %s93 = sphi 0, %s77
      %s97 = sphi 0, %s97
      %s99 = sphi 0, %s97
      %s100 = sphi 0, %s99
      %s114 = sphi 0, %s100
      %s118 = sphi 0, %s118
      %s120 = sphi 0, %s118
      %s121 = sphi 0, %s120
      %s135 = sphi 0, %s121
      %s139 = sphi 0, %s139
      %s141 = sphi 0, %s139
      %s142 = sphi 0, %s141
      %s156 = sphi 0, %s142
      %s160 = sphi 0, %s160
      %s162 = sphi 0, %s160
      %s163 = sphi 0, %s162
      %s177 = sphi 0, %s163
      %s181 = sphi 0, %s181
      %s183 = sphi 0, %s181
      %s184 = sphi 0, %s183
      %s198 = sphi 0, %s184
      %s202 = sphi 0, %s202
      %s204 = sphi 0, %s202
      %s205 = sphi 0, %s204
      %s219 = sphi 0, %s205
      %s223 = sphi 0, %s223
      %s225 = sphi 0, %s223
      %s226 = sphi 0, %s225
      %s240 = sphi 0, %s226
      %s244 = sphi 0, %s244
      %s246 = sphi 0, %s244
      %s247 = sphi 0, %s246
      %s261 = sphi 0, %s247
      %s265 = sphi 0, %s265
      %s267 = sphi 0, %s265
      %s268 = sphi 0, %s267
      %s282 = sphi 0, %s268
      %s286 = sphi 0, %s286
      %s288 = sphi 0, %s286
      %s289 = sphi 0, %s288
      %s303 = sphi 0, %s289
      %s307 = sphi 0, %s307
      %s309 = sphi 0, %s307
      %s310 = sphi 0, %s309
      %s324 = sphi 0, %s310
      %s328 = sphi 0, %s328
      %s330 = sphi 0, %s328
      %s331 = sphi 0, %s330
      %s345 = sphi 0, %s331
      %s349 = sphi 0, %s349
      %s351 = sphi 0, %s349
      %s352 = sphi 0, %s351
      %s366 = sphi 0, %s352
      %s370 = sphi 0, %s370
      %s372 = sphi 0, %s370
      %s373 = sphi 0, %s372
      %s387 = sphi 0, %s373
      %s391 = sphi 0, %s391
      %s393 = sphi 0, %s391
      %s394 = sphi 0, %s393
      %s408 = sphi 0, %s394
      %s412 = sphi 0, %s412
      %s414 = sphi 0, %s412
      %s415 = sphi 0, %s414
      %s429 = sphi 0, %s415
      %s433 = sphi 0, %s433
      %s435 = sphi 0, %s433
      %s436 = sphi 0, %s435
      %s450 = sphi 0, %s436
      %s454 = sphi 0, %s454
      %s456 = sphi 0, %s454
      %s457 = sphi 0, %s456
      %s471 = sphi 0, %s457
      %s475 = sphi 0, %s475
      %s477 = sphi 0, %s475
      %s478 = sphi 0, %s477
      %s492 = sphi 0, %s478
      %s496 = sphi 0, %s496
      %s498 = sphi 0, %s496
      %s499 = sphi 0, %s498
      %s513 = sphi 0, %s499
      %s519 = sphi 0, %s521
      %s522 = sphi 0, %s519
      %s523 = sphi 0, %s522
      %s539 = sphi 0, %s523
    $region4: #{tpu_custom_call.1} parent=1 // loop_header_branch
      %40 = sbr.rel (%p38) target = $region8
    $region5: #{tpu_custom_call.1} parent=1 // loop_body
      %s42 = ssub.s32 %s37, 1
      %s43 = ssub.s32 %s37, 2
      %s44 = sadd.s32 %s37, 1
      %s45 = ssub.s32 %s37, %s44
      %p46 = scmp.eq.s32.totalorder %s45, 0
      %s48 = sadd.s32 %s47, 1
      %s49 = scalar_select %p46, %s47, %s48
      %p52 = pneg %p46
      %p53 = scmp.eq.s32.totalorder %s37, 1
      %p54 = por %p52, %p53
      %p55 = scmp.ne.s32.totalorder %s47, %s50
      %p56 = scmp.eq.s32.totalorder %s37, 0
      %p57 = por %p55, %p56
      %p58 = scmp.ne.s32.totalorder %s47, %s50
      %p59 = scmp.eq.s32.totalorder %s42, 1
      %p60 = por %p58, %p59
      %p61 = scmp.ne.s32.totalorder %s50, %s51
      %p62 = scmp.eq.s32.totalorder %s42, 0
      %p63 = por %p61, %p62
      %p64 = scmp.ne.s32.totalorder %s50, %s51
      %p65 = scmp.eq.s32.totalorder %s43, 1
      %p66 = por %p64, %p65
      %p68 = scmp.ne.s32.totalorder %s51, %s67
      %p69 = scmp.eq.s32.totalorder %s43, 0
      %p70 = por %p68, %p69
      %s71 = ssub.s32 %s37, %s44
      %p72 = scmp.eq.s32.totalorder %s71, 0
      %s74 = sadd.s32 %s73, 1
      %s75 = scalar_select %p72, %s73, %s74
      %p78 = pneg %p72
      %p79 = scmp.eq.s32.totalorder %s37, 1
      %p80 = por %p78, %p79
      %p81 = scmp.ne.s32.totalorder %s73, %s76
      %p82 = scmp.eq.s32.totalorder %s37, 0
      %p83 = por %p81, %p82
      %p84 = scmp.ne.s32.totalorder %s73, %s76
      %p85 = scmp.eq.s32.totalorder %s42, 1
      %p86 = por %p84, %p85
      %p87 = scmp.ne.s32.totalorder %s76, %s77
      %p88 = scmp.eq.s32.totalorder %s42, 0
      %p89 = por %p87, %p88
      %p90 = scmp.ne.s32.totalorder %s76, %s77
      %p91 = scmp.eq.s32.totalorder %s43, 1
      %p92 = por %p90, %p91
      %p94 = scmp.ne.s32.totalorder %s77, %s93
      %p95 = scmp.eq.s32.totalorder %s43, 0
      %p96 = por %p94, %p95
      %s98 = sadd.s32 %s97, 1
      %p101 = scmp.eq.s32.totalorder %s37, 1
      %p102 = scmp.ne.s32.totalorder %s97, %s99
      %p103 = scmp.eq.s32.totalorder %s37, 0
      %p104 = por %p102, %p103
      %p105 = scmp.ne.s32.totalorder %s97, %s99
      %p106 = scmp.eq.s32.totalorder %s42, 1
      %p107 = por %p105, %p106
      %p108 = scmp.ne.s32.totalorder %s99, %s100
      %p109 = scmp.eq.s32.totalorder %s42, 0
      %p110 = por %p108, %p109
      %p111 = scmp.ne.s32.totalorder %s99, %s100
      %p112 = scmp.eq.s32.totalorder %s43, 1
      %p113 = por %p111, %p112
      %p115 = scmp.ne.s32.totalorder %s100, %s114
      %p116 = scmp.eq.s32.totalorder %s43, 0
      %p117 = por %p115, %p116
      %s119 = sadd.s32 %s118, 1
      %p122 = scmp.eq.s32.totalorder %s37, 1
      %p123 = scmp.ne.s32.totalorder %s118, %s120
      %p124 = scmp.eq.s32.totalorder %s37, 0
      %p125 = por %p123, %p124
      %p126 = scmp.ne.s32.totalorder %s118, %s120
      %p127 = scmp.eq.s32.totalorder %s42, 1
      %p128 = por %p126, %p127
      %p129 = scmp.ne.s32.totalorder %s120, %s121
      %p130 = scmp.eq.s32.totalorder %s42, 0
      %p131 = por %p129, %p130
      %p132 = scmp.ne.s32.totalorder %s120, %s121
      %p133 = scmp.eq.s32.totalorder %s43, 1
      %p134 = por %p132, %p133
      %p136 = scmp.ne.s32.totalorder %s121, %s135
      %p137 = scmp.eq.s32.totalorder %s43, 0
      %p138 = por %p136, %p137
      %s140 = sadd.s32 %s139, 1
      %p143 = scmp.eq.s32.totalorder %s37, 1
      %p144 = scmp.ne.s32.totalorder %s139, %s141
      %p145 = scmp.eq.s32.totalorder %s37, 0
      %p146 = por %p144, %p145
      %p147 = scmp.ne.s32.totalorder %s139, %s141
      %p148 = scmp.eq.s32.totalorder %s42, 1
      %p149 = por %p147, %p148
      %p150 = scmp.ne.s32.totalorder %s141, %s142
      %p151 = scmp.eq.s32.totalorder %s42, 0
      %p152 = por %p150, %p151
      %p153 = scmp.ne.s32.totalorder %s141, %s142
      %p154 = scmp.eq.s32.totalorder %s43, 1
      %p155 = por %p153, %p154
      %p157 = scmp.ne.s32.totalorder %s142, %s156
      %p158 = scmp.eq.s32.totalorder %s43, 0
      %p159 = por %p157, %p158
      %s161 = sadd.s32 %s160, 1
      %p164 = scmp.eq.s32.totalorder %s37, 1
      %p165 = scmp.ne.s32.totalorder %s160, %s162
      %p166 = scmp.eq.s32.totalorder %s37, 0
      %p167 = por %p165, %p166
      %p168 = scmp.ne.s32.totalorder %s160, %s162
      %p169 = scmp.eq.s32.totalorder %s42, 1
      %p170 = por %p168, %p169
      %p171 = scmp.ne.s32.totalorder %s162, %s163
      %p172 = scmp.eq.s32.totalorder %s42, 0
      %p173 = por %p171, %p172
      %p174 = scmp.ne.s32.totalorder %s162, %s163
      %p175 = scmp.eq.s32.totalorder %s43, 1
      %p176 = por %p174, %p175
      %p178 = scmp.ne.s32.totalorder %s163, %s177
      %p179 = scmp.eq.s32.totalorder %s43, 0
      %p180 = por %p178, %p179
      %s182 = sadd.s32 %s181, 1
      %p185 = scmp.eq.s32.totalorder %s37, 1
      %p186 = scmp.ne.s32.totalorder %s181, %s183
      %p187 = scmp.eq.s32.totalorder %s37, 0
      %p188 = por %p186, %p187
      %p189 = scmp.ne.s32.totalorder %s181, %s183
      %p190 = scmp.eq.s32.totalorder %s42, 1
      %p191 = por %p189, %p190
      %p192 = scmp.ne.s32.totalorder %s183, %s184
      %p193 = scmp.eq.s32.totalorder %s42, 0
      %p194 = por %p192, %p193
      %p195 = scmp.ne.s32.totalorder %s183, %s184
      %p196 = scmp.eq.s32.totalorder %s43, 1
      %p197 = por %p195, %p196
      %p199 = scmp.ne.s32.totalorder %s184, %s198
      %p200 = scmp.eq.s32.totalorder %s43, 0
      %p201 = por %p199, %p200
      %s203 = sadd.s32 %s202, 1
      %p206 = scmp.eq.s32.totalorder %s37, 1
      %p207 = scmp.ne.s32.totalorder %s202, %s204
      %p208 = scmp.eq.s32.totalorder %s37, 0
      %p209 = por %p207, %p208
      %p210 = scmp.ne.s32.totalorder %s202, %s204
      %p211 = scmp.eq.s32.totalorder %s42, 1
      %p212 = por %p210, %p211
      %p213 = scmp.ne.s32.totalorder %s204, %s205
      %p214 = scmp.eq.s32.totalorder %s42, 0
      %p215 = por %p213, %p214
      %p216 = scmp.ne.s32.totalorder %s204, %s205
      %p217 = scmp.eq.s32.totalorder %s43, 1
      %p218 = por %p216, %p217
      %p220 = scmp.ne.s32.totalorder %s205, %s219
      %p221 = scmp.eq.s32.totalorder %s43, 0
      %p222 = por %p220, %p221
      %s224 = sadd.s32 %s223, 1
      %p227 = scmp.eq.s32.totalorder %s37, 1
      %p228 = scmp.ne.s32.totalorder %s223, %s225
      %p229 = scmp.eq.s32.totalorder %s37, 0
      %p230 = por %p228, %p229
      %p231 = scmp.ne.s32.totalorder %s223, %s225
      %p232 = scmp.eq.s32.totalorder %s42, 1
      %p233 = por %p231, %p232
      %p234 = scmp.ne.s32.totalorder %s225, %s226
      %p235 = scmp.eq.s32.totalorder %s42, 0
      %p236 = por %p234, %p235
      %p237 = scmp.ne.s32.totalorder %s225, %s226
      %p238 = scmp.eq.s32.totalorder %s43, 1
      %p239 = por %p237, %p238
      %p241 = scmp.ne.s32.totalorder %s226, %s240
      %p242 = scmp.eq.s32.totalorder %s43, 0
      %p243 = por %p241, %p242
      %s245 = sadd.s32 %s244, 1
      %p248 = scmp.eq.s32.totalorder %s37, 1
      %p249 = scmp.ne.s32.totalorder %s244, %s246
      %p250 = scmp.eq.s32.totalorder %s37, 0
      %p251 = por %p249, %p250
      %p252 = scmp.ne.s32.totalorder %s244, %s246
      %p253 = scmp.eq.s32.totalorder %s42, 1
      %p254 = por %p252, %p253
      %p255 = scmp.ne.s32.totalorder %s246, %s247
      %p256 = scmp.eq.s32.totalorder %s42, 0
      %p257 = por %p255, %p256
      %p258 = scmp.ne.s32.totalorder %s246, %s247
      %p259 = scmp.eq.s32.totalorder %s43, 1
      %p260 = por %p258, %p259
      %p262 = scmp.ne.s32.totalorder %s247, %s261
      %p263 = scmp.eq.s32.totalorder %s43, 0
      %p264 = por %p262, %p263
      %s266 = sadd.s32 %s265, 1
      %p269 = scmp.eq.s32.totalorder %s37, 1
      %p270 = scmp.ne.s32.totalorder %s265, %s267
      %p271 = scmp.eq.s32.totalorder %s37, 0
      %p272 = por %p270, %p271
      %p273 = scmp.ne.s32.totalorder %s265, %s267
      %p274 = scmp.eq.s32.totalorder %s42, 1
      %p275 = por %p273, %p274
      %p276 = scmp.ne.s32.totalorder %s267, %s268
      %p277 = scmp.eq.s32.totalorder %s42, 0
      %p278 = por %p276, %p277
      %p279 = scmp.ne.s32.totalorder %s267, %s268
      %p280 = scmp.eq.s32.totalorder %s43, 1
      %p281 = por %p279, %p280
      %p283 = scmp.ne.s32.totalorder %s268, %s282
      %p284 = scmp.eq.s32.totalorder %s43, 0
      %p285 = por %p283, %p284
      %s287 = sadd.s32 %s286, 1
      %p290 = scmp.eq.s32.totalorder %s37, 1
      %p291 = scmp.ne.s32.totalorder %s286, %s288
      %p292 = scmp.eq.s32.totalorder %s37, 0
      %p293 = por %p291, %p292
      %p294 = scmp.ne.s32.totalorder %s286, %s288
      %p295 = scmp.eq.s32.totalorder %s42, 1
      %p296 = por %p294, %p295
      %p297 = scmp.ne.s32.totalorder %s288, %s289
      %p298 = scmp.eq.s32.totalorder %s42, 0
      %p299 = por %p297, %p298
      %p300 = scmp.ne.s32.totalorder %s288, %s289
      %p301 = scmp.eq.s32.totalorder %s43, 1
      %p302 = por %p300, %p301
      %p304 = scmp.ne.s32.totalorder %s289, %s303
      %p305 = scmp.eq.s32.totalorder %s43, 0
      %p306 = por %p304, %p305
      %s308 = sadd.s32 %s307, 1
      %p311 = scmp.eq.s32.totalorder %s37, 1
      %p312 = scmp.ne.s32.totalorder %s307, %s309
      %p313 = scmp.eq.s32.totalorder %s37, 0
      %p314 = por %p312, %p313
      %p315 = scmp.ne.s32.totalorder %s307, %s309
      %p316 = scmp.eq.s32.totalorder %s42, 1
      %p317 = por %p315, %p316
      %p318 = scmp.ne.s32.totalorder %s309, %s310
      %p319 = scmp.eq.s32.totalorder %s42, 0
      %p320 = por %p318, %p319
      %p321 = scmp.ne.s32.totalorder %s309, %s310
      %p322 = scmp.eq.s32.totalorder %s43, 1
      %p323 = por %p321, %p322
      %p325 = scmp.ne.s32.totalorder %s310, %s324
      %p326 = scmp.eq.s32.totalorder %s43, 0
      %p327 = por %p325, %p326
      %s329 = sadd.s32 %s328, 1
      %p332 = scmp.eq.s32.totalorder %s37, 1
      %p333 = scmp.ne.s32.totalorder %s328, %s330
      %p334 = scmp.eq.s32.totalorder %s37, 0
      %p335 = por %p333, %p334
      %p336 = scmp.ne.s32.totalorder %s328, %s330
      %p337 = scmp.eq.s32.totalorder %s42, 1
      %p338 = por %p336, %p337
      %p339 = scmp.ne.s32.totalorder %s330, %s331
      %p340 = scmp.eq.s32.totalorder %s42, 0
      %p341 = por %p339, %p340
      %p342 = scmp.ne.s32.totalorder %s330, %s331
      %p343 = scmp.eq.s32.totalorder %s43, 1
      %p344 = por %p342, %p343
      %p346 = scmp.ne.s32.totalorder %s331, %s345
      %p347 = scmp.eq.s32.totalorder %s43, 0
      %p348 = por %p346, %p347
      %s350 = sadd.s32 %s349, 1
      %p353 = scmp.eq.s32.totalorder %s37, 1
      %p354 = scmp.ne.s32.totalorder %s349, %s351
      %p355 = scmp.eq.s32.totalorder %s37, 0
      %p356 = por %p354, %p355
      %p357 = scmp.ne.s32.totalorder %s349, %s351
      %p358 = scmp.eq.s32.totalorder %s42, 1
      %p359 = por %p357, %p358
      %p360 = scmp.ne.s32.totalorder %s351, %s352
      %p361 = scmp.eq.s32.totalorder %s42, 0
      %p362 = por %p360, %p361
      %p363 = scmp.ne.s32.totalorder %s351, %s352
      %p364 = scmp.eq.s32.totalorder %s43, 1
      %p365 = por %p363, %p364
      %p367 = scmp.ne.s32.totalorder %s352, %s366
      %p368 = scmp.eq.s32.totalorder %s43, 0
      %p369 = por %p367, %p368
      %s371 = sadd.s32 %s370, 1
      %p374 = scmp.eq.s32.totalorder %s37, 1
      %p375 = scmp.ne.s32.totalorder %s370, %s372
      %p376 = scmp.eq.s32.totalorder %s37, 0
      %p377 = por %p375, %p376
      %p378 = scmp.ne.s32.totalorder %s370, %s372
      %p379 = scmp.eq.s32.totalorder %s42, 1
      %p380 = por %p378, %p379
      %p381 = scmp.ne.s32.totalorder %s372, %s373
      %p382 = scmp.eq.s32.totalorder %s42, 0
      %p383 = por %p381, %p382
      %p384 = scmp.ne.s32.totalorder %s372, %s373
      %p385 = scmp.eq.s32.totalorder %s43, 1
      %p386 = por %p384, %p385
      %p388 = scmp.ne.s32.totalorder %s373, %s387
      %p389 = scmp.eq.s32.totalorder %s43, 0
      %p390 = por %p388, %p389
      %s392 = sadd.s32 %s391, 1
      %p395 = scmp.eq.s32.totalorder %s37, 1
      %p396 = scmp.ne.s32.totalorder %s391, %s393
      %p397 = scmp.eq.s32.totalorder %s37, 0
      %p398 = por %p396, %p397
      %p399 = scmp.ne.s32.totalorder %s391, %s393
      %p400 = scmp.eq.s32.totalorder %s42, 1
      %p401 = por %p399, %p400
      %p402 = scmp.ne.s32.totalorder %s393, %s394
      %p403 = scmp.eq.s32.totalorder %s42, 0
      %p404 = por %p402, %p403
      %p405 = scmp.ne.s32.totalorder %s393, %s394
      %p406 = scmp.eq.s32.totalorder %s43, 1
      %p407 = por %p405, %p406
      %p409 = scmp.ne.s32.totalorder %s394, %s408
      %p410 = scmp.eq.s32.totalorder %s43, 0
      %p411 = por %p409, %p410
      %s413 = sadd.s32 %s412, 1
      %p416 = scmp.eq.s32.totalorder %s37, 1
      %p417 = scmp.ne.s32.totalorder %s412, %s414
      %p418 = scmp.eq.s32.totalorder %s37, 0
      %p419 = por %p417, %p418
      %p420 = scmp.ne.s32.totalorder %s412, %s414
      %p421 = scmp.eq.s32.totalorder %s42, 1
      %p422 = por %p420, %p421
      %p423 = scmp.ne.s32.totalorder %s414, %s415
      %p424 = scmp.eq.s32.totalorder %s42, 0
      %p425 = por %p423, %p424
      %p426 = scmp.ne.s32.totalorder %s414, %s415
      %p427 = scmp.eq.s32.totalorder %s43, 1
      %p428 = por %p426, %p427
      %p430 = scmp.ne.s32.totalorder %s415, %s429
      %p431 = scmp.eq.s32.totalorder %s43, 0
      %p432 = por %p430, %p431
      %s434 = sadd.s32 %s433, 1
      %p437 = scmp.eq.s32.totalorder %s37, 1
      %p438 = scmp.ne.s32.totalorder %s433, %s435
      %p439 = scmp.eq.s32.totalorder %s37, 0
      %p440 = por %p438, %p439
      %p441 = scmp.ne.s32.totalorder %s433, %s435
      %p442 = scmp.eq.s32.totalorder %s42, 1
      %p443 = por %p441, %p442
      %p444 = scmp.ne.s32.totalorder %s435, %s436
      %p445 = scmp.eq.s32.totalorder %s42, 0
      %p446 = por %p444, %p445
      %p447 = scmp.ne.s32.totalorder %s435, %s436
      %p448 = scmp.eq.s32.totalorder %s43, 1
      %p449 = por %p447, %p448
      %p451 = scmp.ne.s32.totalorder %s436, %s450
      %p452 = scmp.eq.s32.totalorder %s43, 0
      %p453 = por %p451, %p452
      %s455 = sadd.s32 %s454, 1
      %p458 = scmp.eq.s32.totalorder %s37, 1
      %p459 = scmp.ne.s32.totalorder %s454, %s456
      %p460 = scmp.eq.s32.totalorder %s37, 0
      %p461 = por %p459, %p460
      %p462 = scmp.ne.s32.totalorder %s454, %s456
      %p463 = scmp.eq.s32.totalorder %s42, 1
      %p464 = por %p462, %p463
      %p465 = scmp.ne.s32.totalorder %s456, %s457
      %p466 = scmp.eq.s32.totalorder %s42, 0
      %p467 = por %p465, %p466
      %p468 = scmp.ne.s32.totalorder %s456, %s457
      %p469 = scmp.eq.s32.totalorder %s43, 1
      %p470 = por %p468, %p469
      %p472 = scmp.ne.s32.totalorder %s457, %s471
      %p473 = scmp.eq.s32.totalorder %s43, 0
      %p474 = por %p472, %p473
      %s476 = sadd.s32 %s475, 1
      %p479 = scmp.eq.s32.totalorder %s37, 1
      %p480 = scmp.ne.s32.totalorder %s475, %s477
      %p481 = scmp.eq.s32.totalorder %s37, 0
      %p482 = por %p480, %p481
      %p483 = scmp.ne.s32.totalorder %s475, %s477
      %p484 = scmp.eq.s32.totalorder %s42, 1
      %p485 = por %p483, %p484
      %p486 = scmp.ne.s32.totalorder %s477, %s478
      %p487 = scmp.eq.s32.totalorder %s42, 0
      %p488 = por %p486, %p487
      %p489 = scmp.ne.s32.totalorder %s477, %s478
      %p490 = scmp.eq.s32.totalorder %s43, 1
      %p491 = por %p489, %p490
      %p493 = scmp.ne.s32.totalorder %s478, %s492
      %p494 = scmp.eq.s32.totalorder %s43, 0
      %p495 = por %p493, %p494
      %s497 = sadd.s32 %s496, 1
      %p500 = scmp.eq.s32.totalorder %s37, 1
      %p501 = scmp.ne.s32.totalorder %s496, %s498
      %p502 = scmp.eq.s32.totalorder %s37, 0
      %p503 = por %p501, %p502
      %p504 = scmp.ne.s32.totalorder %s496, %s498
      %p505 = scmp.eq.s32.totalorder %s42, 1
      %p506 = por %p504, %p505
      %p507 = scmp.ne.s32.totalorder %s498, %s499
      %p508 = scmp.eq.s32.totalorder %s42, 0
      %p509 = por %p507, %p508
      %p510 = scmp.ne.s32.totalorder %s498, %s499
      %p511 = scmp.eq.s32.totalorder %s43, 1
      %p512 = por %p510, %p511
      %p514 = scmp.ne.s32.totalorder %s499, %s513
      %p515 = scmp.eq.s32.totalorder %s43, 0
      %p516 = por %p514, %p515
      %s517 = ssub.s32 %s37, %s44
      %p518 = scmp.eq.s32.totalorder %s517, 0
      %s520 = sadd.s32 %s519, 1
      %s521 = scalar_select %p518, %s519, %s520
      %p524 = pneg %p518
      %p525 = scmp.eq.s32.totalorder %s37, 1
      %p526 = por %p524, %p525
      %p527 = scmp.ne.s32.totalorder %s519, %s522
      %p528 = scmp.eq.s32.totalorder %s37, 0
      %p529 = por %p527, %p528
      %p530 = scmp.ne.s32.totalorder %s519, %s522
      %p531 = scmp.eq.s32.totalorder %s42, 1
      %p532 = por %p530, %p531
      %p533 = scmp.ne.s32.totalorder %s522, %s523
      %p534 = scmp.eq.s32.totalorder %s42, 0
      %p535 = por %p533, %p534
      %p536 = scmp.ne.s32.totalorder %s522, %s523
      %p537 = scmp.eq.s32.totalorder %s43, 1
      %p538 = por %p536, %p537
      %p540 = scmp.ne.s32.totalorder %s523, %s539
      %p541 = scmp.eq.s32.totalorder %s43, 0
      %p542 = por %p540, %p541
      %p543 = scmp.le.s32.totalorder 1, %s37
      %p544 = scmp.lt.s32.totalorder %s37, 3
      %p545 = pnand %p543, %p544
      %p546 = pneg %p545
      // Predicated region
      $region9: #{tpu_custom_call.1} parent=5 // pred_check
        _
      $region10: #{tpu_custom_call.1} parent=5 // pred_check_branch
        %548 = sbr.rel (%p545) target = $region12
      $region11: #{tpu_custom_call.1} parent=5 // pred_region
        %s549 = ssub.s32 %s37, 1
        // Predicated region
        $region13: #{tpu_custom_call.1} parent=11 // pred_check
          %p550 = pneg %p110
        $region14: #{tpu_custom_call.1} parent=11 // pred_check_branch
          %552 = sbr.rel (%p550) target = $region16
        $region15: #{tpu_custom_call.1} parent=11 // pred_region
          _
        $region16: #{tpu_custom_call.1} parent=11 // pred_fallthru
          _
        // Predicated region
        $region17: #{tpu_custom_call.1} parent=11 // pred_check
          %p553 = pneg %p131
        $region18: #{tpu_custom_call.1} parent=11 // pred_check_branch
          %555 = sbr.rel (%p553) target = $region20
        $region19: #{tpu_custom_call.1} parent=11 // pred_region
          _
        $region20: #{tpu_custom_call.1} parent=11 // pred_fallthru
          _
        // Predicated region
        $region21: #{tpu_custom_call.1} parent=11 // pred_check
          %p556 = pneg %p152
        $region22: #{tpu_custom_call.1} parent=11 // pred_check_branch
          %558 = sbr.rel (%p556) target = $region24
        $region23: #{tpu_custom_call.1} parent=11 // pred_region
          _
        $region24: #{tpu_custom_call.1} parent=11 // pred_fallthru
          _
        // Predicated region
        $region25: #{tpu_custom_call.1} parent=11 // pred_check
          %p559 = pneg %p173
        $region26: #{tpu_custom_call.1} parent=11 // pred_check_branch
          %561 = sbr.rel (%p559) target = $region28
        $region27: #{tpu_custom_call.1} parent=11 // pred_region
          %s563 = ssub.s32 16, 16
          %564 = vsyncadd [#allocation6], %s563
          %s566 = sshll.u32 [#allocation5], 4
          %s567 = int_to_ptr.vmem [resolvable:$true] %s566
          %569 = dma.hbm_to_vmem [thread:$0]  %s5, 16, %s567, [#allocation6]
        $region28: #{tpu_custom_call.1} parent=11 // pred_fallthru
          _
        // Predicated region
        $region29: #{tpu_custom_call.1} parent=11 // pred_check
          %p570 = pneg %p194
        $region30: #{tpu_custom_call.1} parent=11 // pred_check_branch
          %572 = sbr.rel (%p570) target = $region32
        $region31: #{tpu_custom_call.1} parent=11 // pred_region
          %s574 = ssub.s32 16, 16
          %575 = vsyncadd [#allocation6], %s574
          %s577 = sshll.u32 [#allocation7], 4
          %s578 = int_to_ptr.vmem [resolvable:$true] %s577
          %580 = dma.hbm_to_vmem [thread:$0]  %s6, 16, %s578, [#allocation6]
        $region32: #{tpu_custom_call.1} parent=11 // pred_fallthru
          _
        // Predicated region
        $region33: #{tpu_custom_call.1} parent=11 // pred_check
          %p581 = pneg %p215
        $region34: #{tpu_custom_call.1} parent=11 // pred_check_branch
          %583 = sbr.rel (%p581) target = $region36
        $region35: #{tpu_custom_call.1} parent=11 // pred_region
          %s585 = ssub.s32 16, 16
          %586 = vsyncadd [#allocation9], %s585
          %s588 = sshll.u32 [#allocation8], 4
          %s589 = int_to_ptr.vmem [resolvable:$true] %s588
          %591 = dma.hbm_to_vmem [thread:$0]  %s7, 16, %s589, [#allocation9]
        $region36: #{tpu_custom_call.1} parent=11 // pred_fallthru
          _
        // Predicated region
        $region37: #{tpu_custom_call.1} parent=11 // pred_check
          %p592 = pneg %p236
        $region38: #{tpu_custom_call.1} parent=11 // pred_check_branch
          %594 = sbr.rel (%p592) target = $region40
        $region39: #{tpu_custom_call.1} parent=11 // pred_region
          _
        $region40: #{tpu_custom_call.1} parent=11 // pred_fallthru
          _
        // Predicated region
        $region41: #{tpu_custom_call.1} parent=11 // pred_check
          %p595 = pneg %p257
        $region42: #{tpu_custom_call.1} parent=11 // pred_check_branch
          %597 = sbr.rel (%p595) target = $region44
        $region43: #{tpu_custom_call.1} parent=11 // pred_region
          %s599 = ssub.s32 16, 16
          %600 = vsyncadd [#allocation9], %s599
          %s602 = sshll.u32 [#allocation10], 4
          %s603 = int_to_ptr.vmem [resolvable:$true] %s602
          %605 = dma.hbm_to_vmem [thread:$0]  %s9, 16, %s603, [#allocation9]
        $region44: #{tpu_custom_call.1} parent=11 // pred_fallthru
          _
        // Predicated region
        $region45: #{tpu_custom_call.1} parent=11 // pred_check
          %p606 = pneg %p278
        $region46: #{tpu_custom_call.1} parent=11 // pred_check_branch
          %608 = sbr.rel (%p606) target = $region48
        $region47: #{tpu_custom_call.1} parent=11 // pred_region
          _
        $region48: #{tpu_custom_call.1} parent=11 // pred_fallthru
          _
        // Predicated region
        $region49: #{tpu_custom_call.1} parent=11 // pred_check
          %p609 = pneg %p299
        $region50: #{tpu_custom_call.1} parent=11 // pred_check_branch
          %611 = sbr.rel (%p609) target = $region52
        $region51: #{tpu_custom_call.1} parent=11 // pred_region
          %s613 = ssub.s32 16, 16
          %614 = vsyncadd [#allocation12], %s613
          %s616 = sshll.u32 [#allocation11], 4
          %s617 = int_to_ptr.vmem [resolvable:$true] %s616
          %619 = dma.hbm_to_vmem [thread:$0]  %s11, 16, %s617, [#allocation12]
        $region52: #{tpu_custom_call.1} parent=11 // pred_fallthru
          _
        // Predicated region
        $region53: #{tpu_custom_call.1} parent=11 // pred_check
          %p620 = pneg %p320
        $region54: #{tpu_custom_call.1} parent=11 // pred_check_branch
          %622 = sbr.rel (%p620) target = $region56
        $region55: #{tpu_custom_call.1} parent=11 // pred_region
          _
        $region56: #{tpu_custom_call.1} parent=11 // pred_fallthru
          _
        // Predicated region
        $region57: #{tpu_custom_call.1} parent=11 // pred_check
          %p623 = pneg %p341
        $region58: #{tpu_custom_call.1} parent=11 // pred_check_branch
          %625 = sbr.rel (%p623) target = $region60
        $region59: #{tpu_custom_call.1} parent=11 // pred_region
          _
        $region60: #{tpu_custom_call.1} parent=11 // pred_fallthru
          _
        // Predicated region
        $region61: #{tpu_custom_call.1} parent=11 // pred_check
          %p626 = pneg %p362
        $region62: #{tpu_custom_call.1} parent=11 // pred_check_branch
          %628 = sbr.rel (%p626) target = $region64
        $region63: #{tpu_custom_call.1} parent=11 // pred_region
          _
        $region64: #{tpu_custom_call.1} parent=11 // pred_fallthru
          _
        // Predicated region
        $region65: #{tpu_custom_call.1} parent=11 // pred_check
          %p629 = pneg %p383
        $region66: #{tpu_custom_call.1} parent=11 // pred_check_branch
          %631 = sbr.rel (%p629) target = $region68
        $region67: #{tpu_custom_call.1} parent=11 // pred_region
          _
        $region68: #{tpu_custom_call.1} parent=11 // pred_fallthru
          _
        // Predicated region
        $region69: #{tpu_custom_call.1} parent=11 // pred_check
          %p632 = pneg %p404
        $region70: #{tpu_custom_call.1} parent=11 // pred_check_branch
          %634 = sbr.rel (%p632) target = $region72
        $region71: #{tpu_custom_call.1} parent=11 // pred_region
          %s636 = ssub.s32 512, 512
          %637 = vsyncadd [#allocation12], %s636
          %s638 = sshll.u32 [#allocation13], 4
          %s639 = int_to_ptr.vmem [resolvable:$true] %s638
          %644 = dma.hbm_to_vmem [thread:$0]  %s16, 512, %s639, [#allocation12], 128, 128, 8
        $region72: #{tpu_custom_call.1} parent=11 // pred_fallthru
          _
        // Predicated region
        $region73: #{tpu_custom_call.1} parent=11 // pred_check
          %p645 = pneg %p425
        $region74: #{tpu_custom_call.1} parent=11 // pred_check_branch
          %647 = sbr.rel (%p645) target = $region76
        $region75: #{tpu_custom_call.1} parent=11 // pred_region
          _
        $region76: #{tpu_custom_call.1} parent=11 // pred_fallthru
          _
        // Predicated region
        $region77: #{tpu_custom_call.1} parent=11 // pred_check
          %p648 = pneg %p446
        $region78: #{tpu_custom_call.1} parent=11 // pred_check_branch
          %650 = sbr.rel (%p648) target = $region80
        $region79: #{tpu_custom_call.1} parent=11 // pred_region
          _
        $region80: #{tpu_custom_call.1} parent=11 // pred_fallthru
          _
        // Predicated region
        $region81: #{tpu_custom_call.1} parent=11 // pred_check
          %p651 = pneg %p467
        $region82: #{tpu_custom_call.1} parent=11 // pred_check_branch
          %653 = sbr.rel (%p651) target = $region84
        $region83: #{tpu_custom_call.1} parent=11 // pred_region
          _
        $region84: #{tpu_custom_call.1} parent=11 // pred_fallthru
          _
        // Predicated region
        $region85: #{tpu_custom_call.1} parent=11 // pred_check
          %p654 = pneg %p488
        $region86: #{tpu_custom_call.1} parent=11 // pred_check_branch
          %656 = sbr.rel (%p654) target = $region88
        $region87: #{tpu_custom_call.1} parent=11 // pred_region
          _
        $region88: #{tpu_custom_call.1} parent=11 // pred_fallthru
          _
        // Predicated region
        $region89: #{tpu_custom_call.1} parent=11 // pred_check
          %p657 = pneg %p509
        $region90: #{tpu_custom_call.1} parent=11 // pred_check_branch
          %659 = sbr.rel (%p657) target = $region92
        $region91: #{tpu_custom_call.1} parent=11 // pred_region
          _
        $region92: #{tpu_custom_call.1} parent=11 // pred_fallthru
          _
      $region12: #{tpu_custom_call.1} parent=5 // pred_fallthru
        _
      %p660 = scmp.lt.s32.totalorder %s37, 2
      // Predicated region
      $region93: #{tpu_custom_call.1} parent=5 // pred_check
        %p661 = pneg %p660
      $region94: #{tpu_custom_call.1} parent=5 // pred_check_branch
        %663 = sbr.rel (%p661) target = $region96
      $region95: #{tpu_custom_call.1} parent=5 // pred_region
        // Predicated region
        $region97: #{tpu_custom_call.1} parent=95 // pred_check
          %p664 = pneg %p57
        $region98: #{tpu_custom_call.1} parent=95 // pred_check_branch
          %666 = sbr.rel (%p664) target = $region100
        $region99: #{tpu_custom_call.1} parent=95 // pred_region
          %s667 = sand.u32 %s47, 1
          %s668 = scalar_lea.sflag [#allocation3], %s667
          %s669 = sand.u32 %s47, 1
          %s670 = smul.addr %s669, 8
          %s671 = scalar_lea.vmem [#allocation2], %s670
          %s673 = ssub.s32 128, 128
          %674 = vsyncadd %s668, %s673
          %s675 = smul.addr %s37, 128
          %s676 = scalar_lea.hbm %s0, %s675
          %s678 = sshll.u32 %s671, 4
          %s679 = int_to_ptr.vmem [resolvable:$true] %s678
          %681 = dma.hbm_to_vmem [thread:$0]  %s676, 128, %s679, %s668
        $region100: #{tpu_custom_call.1} parent=95 // pred_fallthru
          _
        // Predicated region
        $region101: #{tpu_custom_call.1} parent=95 // pred_check
          %p682 = pneg %p83
        $region102: #{tpu_custom_call.1} parent=95 // pred_check_branch
          %684 = sbr.rel (%p682) target = $region104
        $region103: #{tpu_custom_call.1} parent=95 // pred_region
          %p685 = scmp.lt.s32.totalorder %s37, 1
          %s686 = scalar_select %p685, %s37, 1
          %s687 = smul.addr %s686, 2
          %s688 = smul.addr %s687, 8
          %s689 = scalar_lea.vmem %s1, %s688
        $region104: #{tpu_custom_call.1} parent=95 // pred_fallthru
          _
      $region96: #{tpu_custom_call.1} parent=5 // pred_fallthru
        _
      %p690 = scmp.le.s32.totalorder 1, %s37
      %p691 = scmp.lt.s32.totalorder %s37, 3
      %p692 = pnand %p690, %p691
      %p693 = pneg %p692
      // Predicated region
      $region105: #{tpu_custom_call.1} parent=5 // pred_check
        _
      $region106: #{tpu_custom_call.1} parent=5 // pred_check_branch
        %695 = sbr.rel (%p692) target = $region108
      $region107: #{tpu_custom_call.1} parent=5 // pred_region
        %s696 = ssub.s32 %s37, 1
        %s697 = sand.u32 %s50, 1
        %s698 = scalar_lea.sflag [#allocation3], %s697
        %s699 = sand.u32 %s50, 1
        %s700 = smul.addr %s699, 8
        %s701 = scalar_lea.vmem [#allocation2], %s700
        // Predicated region
        $region109: #{tpu_custom_call.1} parent=107 // pred_check
          %p702 = pneg %p63
        $region110: #{tpu_custom_call.1} parent=107 // pred_check_branch
          %704 = sbr.rel (%p702) target = $region112
        $region111: #{tpu_custom_call.1} parent=107 // pred_region
          %705 = dma.done %s698, 128
        $region112: #{tpu_custom_call.1} parent=107 // pred_fallthru
          _
        // Predicated region
        $region113: #{tpu_custom_call.1} parent=107 // pred_check
          %p706 = pneg %p173
        $region114: #{tpu_custom_call.1} parent=107 // pred_check_branch
          %708 = sbr.rel (%p706) target = $region116
        $region115: #{tpu_custom_call.1} parent=107 // pred_region
          %709 = dma.done [#allocation6], 16
        $region116: #{tpu_custom_call.1} parent=107 // pred_fallthru
          _
        // Predicated region
        $region117: #{tpu_custom_call.1} parent=107 // pred_check
          %p710 = pneg %p194
        $region118: #{tpu_custom_call.1} parent=107 // pred_check_branch
          %712 = sbr.rel (%p710) target = $region120
        $region119: #{tpu_custom_call.1} parent=107 // pred_region
          %713 = dma.done [#allocation6], 16
        $region120: #{tpu_custom_call.1} parent=107 // pred_fallthru
          _
        // Predicated region
        $region121: #{tpu_custom_call.1} parent=107 // pred_check
          %p714 = pneg %p215
        $region122: #{tpu_custom_call.1} parent=107 // pred_check_branch
          %716 = sbr.rel (%p714) target = $region124
        $region123: #{tpu_custom_call.1} parent=107 // pred_region
          %717 = dma.done [#allocation9], 16
        $region124: #{tpu_custom_call.1} parent=107 // pred_fallthru
          _
        // Predicated region
        $region125: #{tpu_custom_call.1} parent=107 // pred_check
          %p718 = pneg %p257
        $region126: #{tpu_custom_call.1} parent=107 // pred_check_branch
          %720 = sbr.rel (%p718) target = $region128
        $region127: #{tpu_custom_call.1} parent=107 // pred_region
          %721 = dma.done [#allocation9], 16
        $region128: #{tpu_custom_call.1} parent=107 // pred_fallthru
          _
        // Predicated region
        $region129: #{tpu_custom_call.1} parent=107 // pred_check
          %p722 = pneg %p299
        $region130: #{tpu_custom_call.1} parent=107 // pred_check_branch
          %724 = sbr.rel (%p722) target = $region132
        $region131: #{tpu_custom_call.1} parent=107 // pred_region
          %725 = dma.done [#allocation12], 16
        $region132: #{tpu_custom_call.1} parent=107 // pred_fallthru
          _
        // Predicated region
        $region133: #{tpu_custom_call.1} parent=107 // pred_check
          %p726 = pneg %p404
        $region134: #{tpu_custom_call.1} parent=107 // pred_check_branch
          %728 = sbr.rel (%p726) target = $region136
        $region135: #{tpu_custom_call.1} parent=107 // pred_region
          %729 = dma.done [#allocation12], 512
        $region136: #{tpu_custom_call.1} parent=107 // pred_fallthru
          _
        %s730 = sand.u32 %s50, 1
        %s731 = scalar_lea.sflag [#allocation3], %s730
        %s732 = sand.u32 %s50, 1
        %s733 = smul.addr %s732, 8
        %s734 = scalar_lea.vmem [#allocation2], %s733
        %p735 = pneg %p63
        %p736 = pneg %p60
        %p737 = scmp.lt.s32.totalorder %s42, 1
        %s738 = scalar_select %p737, %s42, 1
        %s739 = smul.addr %s738, 2
        %s740 = smul.addr %s739, 8
        %s741 = scalar_lea.vmem %s1, %s740
        %p742 = pneg %p89
        %p743 = pneg %p86
        %p744 = pneg %p110
        %p745 = pneg %p107
        %p746 = pneg %p131
        %p747 = pneg %p128
        %p748 = pneg %p152
        %p749 = pneg %p149
        %p750 = pneg %p173
        %p751 = pneg %p170
        %p752 = pneg %p194
        %p753 = pneg %p191
        %p754 = pneg %p215
        %p755 = pneg %p212
        %p756 = pneg %p236
        %p757 = pneg %p233
        %p758 = pneg %p257
        %p759 = pneg %p254
        %p760 = pneg %p278
        %p761 = pneg %p275
        %p762 = pneg %p299
        %p763 = pneg %p296
        %p764 = pneg %p320
        %p765 = pneg %p317
        %p766 = pneg %p341
        %p767 = pneg %p338
        %p768 = pneg %p362
        %p769 = pneg %p359
        %p770 = pneg %p383
        %p771 = pneg %p380
        %p772 = pneg %p404
        %p773 = pneg %p401
        %p774 = pneg %p425
        %p775 = pneg %p422
        %p776 = pneg %p446
        %p777 = pneg %p443
        %p778 = pneg %p467
        %p779 = pneg %p464
        %p780 = pneg %p488
        %p781 = pneg %p485
        %p782 = pneg %p509
        %p783 = pneg %p506
        %p784 = pneg %p535
        %p785 = pneg %p532
        %s786 = sand.u32 %s522, 1
        %s787 = scalar_lea.sflag [#allocation4], %s786
        %s788 = sand.u32 %s522, 1
        %s789 = smul.addr %s788, 8
        %s790 = scalar_lea.vmem [#allocation14], %s789
        %p791 = scmp.lt.s32.totalorder %s42, 1
        %s792 = scalar_select %p791, %s42, 1
        %s793 = smul.addr %s792, 2
        %s794 = smul.addr %s793, 8
        %s795 = scalar_lea.vmem %s1, %s794
        %v796 = vld [vmem:[%s701] sm:$0xff]
        %v797 = vld [vmem:[%s795] sm:$0xff]
        %v798 = vld [vmem:[%s795 + $0x8] sm:$0xf]
        %v799 = vld [vmem:[%s2] sm:$0xff]
        %v800 = vld [vmem:[%s2 + $0x8] sm:$0xff]
        %v801 = vld [vmem:[%s2 + $0x10] sm:$0xff]
        %v802 = vld [vmem:[%s2 + $0x18] sm:$0xff]
        %v803 = vld [vmem:[%s3] sm:$0x1]
        %v805 = vlaneseq
        %v806 = vshrl.u32 %v805, 7
        %v807 = vsub.s32 0, %v806
        %v808 = vrot.slane %v803, %v807
        %vm810 = vcmask 261120
        %v812 = vsel %vm810, %v796, 0
        %814 = vmatprep.subr.mxu0 0.0
        %815 = vmatpush1.msra.mxu0 %v799
        %816 = vmatprep.subr.mxu0 0.0
        %817 = vmatpush1.msra.mxu0 %v800
        %818 = vmatprep.subr.mxu0 0.0
        %819 = vmatpush1.msra.mxu0 %v801
        %820 = vmatprep.subr.mxu0 0.0
        %821 = vmatpush1.msra.mxu0 %v802
        %822 = vmatprep.subr.mxu0 0.0
        %823 = vmatpush1.msra.mxu0 0.0
        %824 = vmatprep.subr.mxu0 0.0
        %825 = vmatpush1.msra.mxu0 0.0
        %826 = vmatprep.subr.mxu0 0.0
        %827 = vmatpush1.msra.mxu0 0.0
        %828 = vmatprep.subr.mxu0 0.0
        %829 = vmatpush1.msra.mxu0 0.0
        %830 = vmatprep.subr.mxu0 0.0
        %831 = vmatpush1.msra.mxu0 0.0
        %832 = vmatprep.subr.mxu0 0.0
        %833 = vmatpush1.msra.mxu0 0.0
        %834 = vmatprep.subr.mxu0 0.0
        %835 = vmatpush1.msra.mxu0 0.0
        %836 = vmatprep.subr.mxu0 0.0
        %837 = vmatpush1.msra.mxu0 0.0
        %838 = vmatprep.subr.mxu0 0.0
        %839 = vmatpush1.msra.mxu0 0.0
        %840 = vmatprep.subr.mxu0 0.0
        %841 = vmatpush1.msra.mxu0 0.0
        %842 = vmatprep.subr.mxu0 0.0
        %843 = vmatpush1.msra.mxu0 0.0
        %844 = vmatprep.subr.mxu0 0.0
        %845 = vmatpush1.msra.mxu0 0.0
        %846 = vmatprep.subr.mxu0 0.0
        %847 = vmatpush1.msra.mxu0 0.0
        %848 = vmatprep.subr.mxu0 0.0
        %849 = vmatpush1.msra.mxu0 0.0
        %850 = vmatprep.subr.mxu0 0.0
        %851 = vmatpush1.msra.mxu0 0.0
        %852 = vmatprep.subr.mxu0 0.0
        %853 = vmatpush1.msra.mxu0 0.0
        %854 = vmatprep.subr.mxu0 0.0
        %855 = vmatpush1.msra.mxu0 0.0
        %856 = vmatprep.subr.mxu0 0.0
        %857 = vmatpush1.msra.mxu0 0.0
        %858 = vmatprep.subr.mxu0 0.0
        %859 = vmatpush1.msra.mxu0 0.0
        %860 = vmatprep.subr.mxu0 0.0
        %861 = vmatpush1.msra.mxu0 0.0
        %862 = vmatprep.subr.mxu0 0.0
        %863 = vmatpush1.msra.mxu0 0.0
        %864 = vmatprep.subr.mxu0 0.0
        %865 = vmatpush1.msra.mxu0 0.0
        %866 = vmatprep.subr.mxu0 0.0
        %867 = vmatpush1.msra.mxu0 0.0
        %868 = vmatprep.subr.mxu0 0.0
        %869 = vmatpush1.msra.mxu0 0.0
        %870 = vmatprep.subr.mxu0 0.0
        %871 = vmatpush1.msra.mxu0 0.0
        %872 = vmatprep.subr.mxu0 0.0
        %873 = vmatpush1.msra.mxu0 0.0
        %874 = vmatprep.subr.mxu0 0.0
        %875 = vmatpush1.msra.mxu0 0.0
        %876 = vmatprep.subr.mxu0 0.0
        %877 = vmatpush1.msra.mxu0 0.0
        %878 = vmatprep.mubr.f32.mxu0 0.0
        %879 = vmatmul.mubr.f32.gmra.mrb[0].mxu0 %v812
        %v880 = vpop.f32.mrb[0].mxu0
        %v881 = vadd.f32 %v808, %v880
        %v882 = vpop.f32.mrb[0].mxu0
        %883 = vdwg.mxu0
        %v884 = vld [vmem:[%s4] sm:$0xff]
        %v885 = vld [vmem:[%s4 + $0x8] sm:$0xff]
        %v886 = vld [vmem:[%s4 + $0x10] sm:$0xff]
        %v887 = vld [vmem:[%s4 + $0x18] sm:$0xff]
        %v888 = vld [vmem:[#allocation5] sm:$0x1]
        %890 = vrot.lane.b32.xlu0 %v881, 96
        %v891 = vpop.permute.xlu0 %890
        %vm892 = vcmask 64512
        %v893 = vsel %vm892, %v881, 0
        %v895 = vsel %vm892, %v891, 0
        %897 = vmatprep.subr.mxu0 0.0
        %898 = vmatpush1.xpose.msra.mxu0 %v895
        %899 = vmatprep.subr.mxu0 0.0
        %900 = vmatpush1.xpose.msra.mxu0 0.0
        %901 = vmatprep.subr.mxu0 0.0
        %902 = vmatpush1.xpose.msra.mxu0 0.0
        %903 = vmatprep.subr.mxu0 0.0
        %904 = vmatpush1.xpose.msra.mxu0 0.0
        %905 = vmatprep.subr.mxu0 0.0
        %906 = vmatpush1.xpose.msra.mxu0 0.0
        %907 = vmatprep.subr.mxu0 0.0
        %908 = vmatpush1.xpose.msra.mxu0 0.0
        %909 = vmatprep.subr.mxu0 0.0
        %910 = vmatpush1.xpose.msra.mxu0 0.0
        %911 = vmatprep.subr.mxu0 0.0
        %912 = vmatpush1.xpose.msra.mxu0 0.0
        %913 = vmatprep.subr.mxu0 0.0
        %914 = vmatpush1.xpose.msra.mxu0 0.0
        %915 = vmatprep.subr.mxu0 0.0
        %916 = vmatpush1.xpose.msra.mxu0 0.0
        %917 = vmatprep.subr.mxu0 0.0
        %918 = vmatpush1.xpose.msra.mxu0 0.0
        %919 = vmatprep.subr.mxu0 0.0
        %920 = vmatpush1.xpose.msra.mxu0 0.0
        %921 = vmatprep.subr.mxu0 0.0
        %922 = vmatpush1.xpose.msra.mxu0 0.0
        %923 = vmatprep.subr.mxu0 0.0
        %924 = vmatpush1.xpose.msra.mxu0 0.0
        %925 = vmatprep.subr.mxu0 0.0
        %926 = vmatpush1.xpose.msra.mxu0 0.0
        %927 = vmatprep.subr.mxu0 0.0
        %928 = vmatpush1.xpose.msra.mxu0 0.0
        %929 = vmatprep.subr.mxu0 0.0
        %930 = vmatpush1.xpose.msra.mxu0 0.0
        %931 = vmatprep.subr.mxu0 0.0
        %932 = vmatpush1.xpose.msra.mxu0 0.0
        %933 = vmatprep.subr.mxu0 0.0
        %934 = vmatpush1.xpose.msra.mxu0 0.0
        %935 = vmatprep.subr.mxu0 0.0
        %936 = vmatpush1.xpose.msra.mxu0 0.0
        %937 = vmatprep.subr.mxu0 0.0
        %938 = vmatpush1.xpose.msra.mxu0 0.0
        %939 = vmatprep.subr.mxu0 0.0
        %940 = vmatpush1.xpose.msra.mxu0 0.0
        %941 = vmatprep.subr.mxu0 0.0
        %942 = vmatpush1.xpose.msra.mxu0 0.0
        %943 = vmatprep.subr.mxu0 0.0
        %944 = vmatpush1.xpose.msra.mxu0 0.0
        %945 = vmatprep.subr.mxu0 0.0
        %946 = vmatpush1.xpose.msra.mxu0 0.0
        %947 = vmatprep.subr.mxu0 0.0
        %948 = vmatpush1.xpose.msra.mxu0 0.0
        %949 = vmatprep.subr.mxu0 0.0
        %950 = vmatpush1.xpose.msra.mxu0 0.0
        %951 = vmatprep.subr.mxu0 0.0
        %952 = vmatpush1.xpose.msra.mxu0 0.0
        %953 = vmatprep.subr.mxu0 0.0
        %954 = vmatpush1.xpose.msra.mxu0 0.0
        %955 = vmatprep.subr.mxu0 0.0
        %956 = vmatpush1.xpose.msra.mxu0 0.0
        %957 = vmatprep.subr.mxu0 0.0
        %958 = vmatpush1.xpose.msra.mxu0 0.0
        %959 = vmatprep.subr.mxu0 0.0
        %960 = vmatpush1.xpose.msra.mxu0 0.0
        %961 = vmatprep.mubr.f32.mxu0 0.0
        %962 = vmatmul.mubr.f32.gmra.mrb[0].mxu0 %v893
        %v963 = vpop.f32.mrb[0].mxu0
        %v964 = vadd.f32 0.0, %v963
        %v965 = vpop.f32.mrb[0].mxu0
        %966 = vdwg.mxu0
        %v967 = vsel %vm892, %v964, -inf
        %968 = vmax.xlane.f32.xlu0 %v967
        %v969 = vpop.xlane.xlu0 %968
        %v970 = vsub.f32 %v964, %v969
        %v971 = vmul.f32 %v970, 1.442695
        %v972 = vpow.pop %v971
        %v973 = vsel %vm892, %v972, 0.0
        %974 = vadd.xlane.f32.xlu0 %v973
        %v975 = vpop.xlane.xlu0 %974
        %v976 = vrcp.pop %v975
        %v977 = vmul.f32 %v972, %v976
        %978 = vrot.lane.b32.xlu0 %v881, 64
        %v979 = vpop.permute.xlu0 %978
        %v982 = vsel %vm892, %v977, 0
        %984 = vmatprep.subr.mxu0 0.0
        %985 = vmatpush1.msra.mxu0 %v979
        %986 = vmatprep.subr.mxu0 0.0
        %987 = vmatpush1.msra.mxu0 0.0
        %988 = vmatprep.subr.mxu0 0.0
        %989 = vmatpush1.msra.mxu0 0.0
        %990 = vmatprep.subr.mxu0 0.0
        %991 = vmatpush1.msra.mxu0 0.0
        %992 = vmatprep.subr.mxu0 0.0
        %993 = vmatpush1.msra.mxu0 0.0
        %994 = vmatprep.subr.mxu0 0.0
        %995 = vmatpush1.msra.mxu0 0.0
        %996 = vmatprep.subr.mxu0 0.0
        %997 = vmatpush1.msra.mxu0 0.0
        %998 = vmatprep.subr.mxu0 0.0
        %999 = vmatpush1.msra.mxu0 0.0
        %1000 = vmatprep.subr.mxu0 0.0
        %1001 = vmatpush1.msra.mxu0 0.0
        %1002 = vmatprep.subr.mxu0 0.0
        %1003 = vmatpush1.msra.mxu0 0.0
        %1004 = vmatprep.subr.mxu0 0.0
        %1005 = vmatpush1.msra.mxu0 0.0
        %1006 = vmatprep.subr.mxu0 0.0
        %1007 = vmatpush1.msra.mxu0 0.0
        %1008 = vmatprep.subr.mxu0 0.0
        %1009 = vmatpush1.msra.mxu0 0.0
        %1010 = vmatprep.subr.mxu0 0.0
        %1011 = vmatpush1.msra.mxu0 0.0
        %1012 = vmatprep.subr.mxu0 0.0
        %1013 = vmatpush1.msra.mxu0 0.0
        %1014 = vmatprep.subr.mxu0 0.0
        %1015 = vmatpush1.msra.mxu0 0.0
        %1016 = vmatprep.subr.mxu0 0.0
        %1017 = vmatpush1.msra.mxu0 0.0
        %1018 = vmatprep.subr.mxu0 0.0
        %1019 = vmatpush1.msra.mxu0 0.0
        %1020 = vmatprep.subr.mxu0 0.0
        %1021 = vmatpush1.msra.mxu0 0.0
        %1022 = vmatprep.subr.mxu0 0.0
        %1023 = vmatpush1.msra.mxu0 0.0
        %1024 = vmatprep.subr.mxu0 0.0
        %1025 = vmatpush1.msra.mxu0 0.0
        %1026 = vmatprep.subr.mxu0 0.0
        %1027 = vmatpush1.msra.mxu0 0.0
        %1028 = vmatprep.subr.mxu0 0.0
        %1029 = vmatpush1.msra.mxu0 0.0
        %1030 = vmatprep.subr.mxu0 0.0
        %1031 = vmatpush1.msra.mxu0 0.0
        %1032 = vmatprep.subr.mxu0 0.0
        %1033 = vmatpush1.msra.mxu0 0.0
        %1034 = vmatprep.subr.mxu0 0.0
        %1035 = vmatpush1.msra.mxu0 0.0
        %1036 = vmatprep.subr.mxu0 0.0
        %1037 = vmatpush1.msra.mxu0 0.0
        %1038 = vmatprep.subr.mxu0 0.0
        %1039 = vmatpush1.msra.mxu0 0.0
        %1040 = vmatprep.subr.mxu0 0.0
        %1041 = vmatpush1.msra.mxu0 0.0
        %1042 = vmatprep.subr.mxu0 0.0
        %1043 = vmatpush1.msra.mxu0 0.0
        %1044 = vmatprep.subr.mxu0 0.0
        %1045 = vmatpush1.msra.mxu0 0.0
        %1046 = vmatprep.subr.mxu0 0.0
        %1047 = vmatpush1.msra.mxu0 0.0
        %1048 = vmatprep.mubr.f32.mxu0 0.0
        %1049 = vmatmul.mubr.f32.gmra.mrb[0].mxu0 %v982
        %v1050 = vpop.f32.mrb[0].mxu0
        %v1051 = vadd.f32 0.0, %v1050
        %v1052 = vpop.f32.mrb[0].mxu0
        %1053 = vdwg.mxu0
        %1054 = vrot.lane.b32.xlu0 %v881, 120
        %v1055 = vpop.permute.xlu0 %1054
        %1056 = vrot.lane.b32.xlu0 %v881, 88
        %v1057 = vpop.permute.xlu0 %1056
        %v1058 = vsel %vm892, %v1055, 0
        %v1060 = vsel %vm892, %v1057, 0
        %1062 = vmatprep.subr.mxu0 0.0
        %1063 = vmatpush1.xpose.msra.mxu0 %v1060
        %1064 = vmatprep.subr.mxu0 0.0
        %1065 = vmatpush1.xpose.msra.mxu0 0.0
        %1066 = vmatprep.subr.mxu0 0.0
        %1067 = vmatpush1.xpose.msra.mxu0 0.0
        %1068 = vmatprep.subr.mxu0 0.0
        %1069 = vmatpush1.xpose.msra.mxu0 0.0
        %1070 = vmatprep.subr.mxu0 0.0
        %1071 = vmatpush1.xpose.msra.mxu0 0.0
        %1072 = vmatprep.subr.mxu0 0.0
        %1073 = vmatpush1.xpose.msra.mxu0 0.0
        %1074 = vmatprep.subr.mxu0 0.0
        %1075 = vmatpush1.xpose.msra.mxu0 0.0
        %1076 = vmatprep.subr.mxu0 0.0
        %1077 = vmatpush1.xpose.msra.mxu0 0.0
        %1078 = vmatprep.subr.mxu0 0.0
        %1079 = vmatpush1.xpose.msra.mxu0 0.0
        %1080 = vmatprep.subr.mxu0 0.0
        %1081 = vmatpush1.xpose.msra.mxu0 0.0
        %1082 = vmatprep.subr.mxu0 0.0
        %1083 = vmatpush1.xpose.msra.mxu0 0.0
        %1084 = vmatprep.subr.mxu0 0.0
        %1085 = vmatpush1.xpose.msra.mxu0 0.0
        %1086 = vmatprep.subr.mxu0 0.0
        %1087 = vmatpush1.xpose.msra.mxu0 0.0
        %1088 = vmatprep.subr.mxu0 0.0
        %1089 = vmatpush1.xpose.msra.mxu0 0.0
        %1090 = vmatprep.subr.mxu0 0.0
        %1091 = vmatpush1.xpose.msra.mxu0 0.0
        %1092 = vmatprep.subr.mxu0 0.0
        %1093 = vmatpush1.xpose.msra.mxu0 0.0
        %1094 = vmatprep.subr.mxu0 0.0
        %1095 = vmatpush1.xpose.msra.mxu0 0.0
        %1096 = vmatprep.subr.mxu0 0.0
        %1097 = vmatpush1.xpose.msra.mxu0 0.0
        %1098 = vmatprep.subr.mxu0 0.0
        %1099 = vmatpush1.xpose.msra.mxu0 0.0
        %1100 = vmatprep.subr.mxu0 0.0
        %1101 = vmatpush1.xpose.msra.mxu0 0.0
        %1102 = vmatprep.subr.mxu0 0.0
        %1103 = vmatpush1.xpose.msra.mxu0 0.0
        %1104 = vmatprep.subr.mxu0 0.0
        %1105 = vmatpush1.xpose.msra.mxu0 0.0
        %1106 = vmatprep.subr.mxu0 0.0
        %1107 = vmatpush1.xpose.msra.mxu0 0.0
        %1108 = vmatprep.subr.mxu0 0.0
        %1109 = vmatpush1.xpose.msra.mxu0 0.0
        %1110 = vmatprep.subr.mxu0 0.0
        %1111 = vmatpush1.xpose.msra.mxu0 0.0
        %1112 = vmatprep.subr.mxu0 0.0
        %1113 = vmatpush1.xpose.msra.mxu0 0.0
        %1114 = vmatprep.subr.mxu0 0.0
        %1115 = vmatpush1.xpose.msra.mxu0 0.0
        %1116 = vmatprep.subr.mxu0 0.0
        %1117 = vmatpush1.xpose.msra.mxu0 0.0
        %1118 = vmatprep.subr.mxu0 0.0
        %1119 = vmatpush1.xpose.msra.mxu0 0.0
        %1120 = vmatprep.subr.mxu0 0.0
        %1121 = vmatpush1.xpose.msra.mxu0 0.0
        %1122 = vmatprep.subr.mxu0 0.0
        %1123 = vmatpush1.xpose.msra.mxu0 0.0
        %1124 = vmatprep.subr.mxu0 0.0
        %1125 = vmatpush1.xpose.msra.mxu0 0.0
        %1126 = vmatprep.mubr.f32.mxu0 0.0
        %1127 = vmatmul.mubr.f32.gmra.mrb[0].mxu0 %v1058
        %v1128 = vpop.f32.mrb[0].mxu0
        %v1129 = vadd.f32 0.0, %v1128
        %v1130 = vpop.f32.mrb[0].mxu0
        %1131 = vdwg.mxu0
        %v1132 = vsel %vm892, %v1129, -inf
        %1133 = vmax.xlane.f32.xlu0 %v1132
        %v1134 = vpop.xlane.xlu0 %1133
        %v1135 = vsub.f32 %v1129, %v1134
        %v1136 = vmul.f32 %v1135, 1.442695
        %v1137 = vpow.pop %v1136
        %v1138 = vsel %vm892, %v1137, 0.0
        %1139 = vadd.xlane.f32.xlu0 %v1138
        %v1140 = vpop.xlane.xlu0 %1139
        %v1141 = vrcp.pop %v1140
        %v1142 = vmul.f32 %v1137, %v1141
        %1143 = vrot.lane.b32.xlu0 %v881, 56
        %v1144 = vpop.permute.xlu0 %1143
        %v1147 = vsel %vm892, %v1142, 0
        %1149 = vmatprep.subr.mxu0 0.0
        %1150 = vmatpush1.msra.mxu0 %v1144
        %1151 = vmatprep.subr.mxu0 0.0
        %1152 = vmatpush1.msra.mxu0 0.0
        %1153 = vmatprep.subr.mxu0 0.0
        %1154 = vmatpush1.msra.mxu0 0.0
        %1155 = vmatprep.subr.mxu0 0.0
        %1156 = vmatpush1.msra.mxu0 0.0
        %1157 = vmatprep.subr.mxu0 0.0
        %1158 = vmatpush1.msra.mxu0 0.0
        %1159 = vmatprep.subr.mxu0 0.0
        %1160 = vmatpush1.msra.mxu0 0.0
        %1161 = vmatprep.subr.mxu0 0.0
        %1162 = vmatpush1.msra.mxu0 0.0
        %1163 = vmatprep.subr.mxu0 0.0
        %1164 = vmatpush1.msra.mxu0 0.0
        %1165 = vmatprep.subr.mxu0 0.0
        %1166 = vmatpush1.msra.mxu0 0.0
        %1167 = vmatprep.subr.mxu0 0.0
        %1168 = vmatpush1.msra.mxu0 0.0
        %1169 = vmatprep.subr.mxu0 0.0
        %1170 = vmatpush1.msra.mxu0 0.0
        %1171 = vmatprep.subr.mxu0 0.0
        %1172 = vmatpush1.msra.mxu0 0.0
        %1173 = vmatprep.subr.mxu0 0.0
        %1174 = vmatpush1.msra.mxu0 0.0
        %1175 = vmatprep.subr.mxu0 0.0
        %1176 = vmatpush1.msra.mxu0 0.0
        %1177 = vmatprep.subr.mxu0 0.0
        %1178 = vmatpush1.msra.mxu0 0.0
        %1179 = vmatprep.subr.mxu0 0.0
        %1180 = vmatpush1.msra.mxu0 0.0
        %1181 = vmatprep.subr.mxu0 0.0
        %1182 = vmatpush1.msra.mxu0 0.0
        %1183 = vmatprep.subr.mxu0 0.0
        %1184 = vmatpush1.msra.mxu0 0.0
        %1185 = vmatprep.subr.mxu0 0.0
        %1186 = vmatpush1.msra.mxu0 0.0
        %1187 = vmatprep.subr.mxu0 0.0
        %1188 = vmatpush1.msra.mxu0 0.0
        %1189 = vmatprep.subr.mxu0 0.0
        %1190 = vmatpush1.msra.mxu0 0.0
        %1191 = vmatprep.subr.mxu0 0.0
        %1192 = vmatpush1.msra.mxu0 0.0
        %1193 = vmatprep.subr.mxu0 0.0
        %1194 = vmatpush1.msra.mxu0 0.0
        %1195 = vmatprep.subr.mxu0 0.0
        %1196 = vmatpush1.msra.mxu0 0.0
        %1197 = vmatprep.subr.mxu0 0.0
        %1198 = vmatpush1.msra.mxu0 0.0
        %1199 = vmatprep.subr.mxu0 0.0
        %1200 = vmatpush1.msra.mxu0 0.0
        %1201 = vmatprep.subr.mxu0 0.0
        %1202 = vmatpush1.msra.mxu0 0.0
        %1203 = vmatprep.subr.mxu0 0.0
        %1204 = vmatpush1.msra.mxu0 0.0
        %1205 = vmatprep.subr.mxu0 0.0
        %1206 = vmatpush1.msra.mxu0 0.0
        %1207 = vmatprep.subr.mxu0 0.0
        %1208 = vmatpush1.msra.mxu0 0.0
        %1209 = vmatprep.subr.mxu0 0.0
        %1210 = vmatpush1.msra.mxu0 0.0
        %1211 = vmatprep.subr.mxu0 0.0
        %1212 = vmatpush1.msra.mxu0 0.0
        %1213 = vmatprep.mubr.f32.mxu0 0.0
        %1214 = vmatmul.mubr.f32.gmra.mrb[0].mxu0 %v1147
        %v1215 = vpop.f32.mrb[0].mxu0
        %v1216 = vadd.f32 0.0, %v1215
        %v1217 = vpop.f32.mrb[0].mxu0
        %1218 = vdwg.mxu0
        %v1220 = vsel %vm892, %v1216, 0
        %1222 = vmatprep.subr.mxu0 0.0
        %1223 = vmatpush1.msra.mxu0 %v885
        %1224 = vmatprep.subr.mxu0 0.0
        %1225 = vmatpush1.msra.mxu0 0.0
        %1226 = vmatprep.subr.mxu0 0.0
        %1227 = vmatpush1.msra.mxu0 0.0
        %1228 = vmatprep.subr.mxu0 0.0
        %1229 = vmatpush1.msra.mxu0 0.0
        %1230 = vmatprep.subr.mxu0 0.0
        %1231 = vmatpush1.msra.mxu0 0.0
        %1232 = vmatprep.subr.mxu0 0.0
        %1233 = vmatpush1.msra.mxu0 0.0
        %1234 = vmatprep.subr.mxu0 0.0
        %1235 = vmatpush1.msra.mxu0 0.0
        %1236 = vmatprep.subr.mxu0 0.0
        %1237 = vmatpush1.msra.mxu0 0.0
        %1238 = vmatprep.subr.mxu0 0.0
        %1239 = vmatpush1.msra.mxu0 0.0
        %1240 = vmatprep.subr.mxu0 0.0
        %1241 = vmatpush1.msra.mxu0 0.0
        %1242 = vmatprep.subr.mxu0 0.0
        %1243 = vmatpush1.msra.mxu0 0.0
        %1244 = vmatprep.subr.mxu0 0.0
        %1245 = vmatpush1.msra.mxu0 0.0
        %1246 = vmatprep.subr.mxu0 0.0
        %1247 = vmatpush1.msra.mxu0 0.0
        %1248 = vmatprep.subr.mxu0 0.0
        %1249 = vmatpush1.msra.mxu0 0.0
        %1250 = vmatprep.subr.mxu0 0.0
        %1251 = vmatpush1.msra.mxu0 0.0
        %1252 = vmatprep.subr.mxu0 0.0
        %1253 = vmatpush1.msra.mxu0 0.0
        %1254 = vmatprep.subr.mxu0 0.0
        %1255 = vmatpush1.msra.mxu0 0.0
        %1256 = vmatprep.subr.mxu0 0.0
        %1257 = vmatpush1.msra.mxu0 0.0
        %1258 = vmatprep.subr.mxu0 0.0
        %1259 = vmatpush1.msra.mxu0 0.0
        %1260 = vmatprep.subr.mxu0 0.0
        %1261 = vmatpush1.msra.mxu0 0.0
        %1262 = vmatprep.subr.mxu0 0.0
        %1263 = vmatpush1.msra.mxu0 0.0
        %1264 = vmatprep.subr.mxu0 0.0
        %1265 = vmatpush1.msra.mxu0 0.0
        %1266 = vmatprep.subr.mxu0 0.0
        %1267 = vmatpush1.msra.mxu0 0.0
        %1268 = vmatprep.subr.mxu0 0.0
        %1269 = vmatpush1.msra.mxu0 0.0
        %1270 = vmatprep.subr.mxu0 0.0
        %1271 = vmatpush1.msra.mxu0 0.0
        %1272 = vmatprep.subr.mxu0 0.0
        %1273 = vmatpush1.msra.mxu0 0.0
        %1274 = vmatprep.subr.mxu0 0.0
        %1275 = vmatpush1.msra.mxu0 0.0
        %1276 = vmatprep.subr.mxu0 0.0
        %1277 = vmatpush1.msra.mxu0 0.0
        %1278 = vmatprep.subr.mxu0 0.0
        %1279 = vmatpush1.msra.mxu0 0.0
        %1280 = vmatprep.subr.mxu0 0.0
        %1281 = vmatpush1.msra.mxu0 0.0
        %1282 = vmatprep.subr.mxu0 0.0
        %1283 = vmatpush1.msra.mxu0 0.0
        %1284 = vmatprep.subr.mxu0 0.0
        %1285 = vmatpush1.msra.mxu0 0.0
        %1286 = vmatprep.mubr.f32.mxu0 0.0
        %1287 = vmatmul.mubr.f32.gmra.mrb[0].mxu0 %v1220
        %v1288 = vpop.f32.mrb[0].mxu0
        %v1289 = vadd.f32 0.0, %v1288
        %v1290 = vpop.f32.mrb[0].mxu0
        %1291 = vdwg.mxu0
        %v1293 = vsel %vm892, %v1051, 0
        %1295 = vmatprep.subr.mxu0 0.0
        %1296 = vmatpush1.msra.mxu0 %v884
        %1297 = vmatprep.subr.mxu0 0.0
        %1298 = vmatpush1.msra.mxu0 0.0
        %1299 = vmatprep.subr.mxu0 0.0
        %1300 = vmatpush1.msra.mxu0 0.0
        %1301 = vmatprep.subr.mxu0 0.0
        %1302 = vmatpush1.msra.mxu0 0.0
        %1303 = vmatprep.subr.mxu0 0.0
        %1304 = vmatpush1.msra.mxu0 0.0
        %1305 = vmatprep.subr.mxu0 0.0
        %1306 = vmatpush1.msra.mxu0 0.0
        %1307 = vmatprep.subr.mxu0 0.0
        %1308 = vmatpush1.msra.mxu0 0.0
        %1309 = vmatprep.subr.mxu0 0.0
        %1310 = vmatpush1.msra.mxu0 0.0
        %1311 = vmatprep.subr.mxu0 0.0
        %1312 = vmatpush1.msra.mxu0 0.0
        %1313 = vmatprep.subr.mxu0 0.0
        %1314 = vmatpush1.msra.mxu0 0.0
        %1315 = vmatprep.subr.mxu0 0.0
        %1316 = vmatpush1.msra.mxu0 0.0
        %1317 = vmatprep.subr.mxu0 0.0
        %1318 = vmatpush1.msra.mxu0 0.0
        %1319 = vmatprep.subr.mxu0 0.0
        %1320 = vmatpush1.msra.mxu0 0.0
        %1321 = vmatprep.subr.mxu0 0.0
        %1322 = vmatpush1.msra.mxu0 0.0
        %1323 = vmatprep.subr.mxu0 0.0
        %1324 = vmatpush1.msra.mxu0 0.0
        %1325 = vmatprep.subr.mxu0 0.0
        %1326 = vmatpush1.msra.mxu0 0.0
        %1327 = vmatprep.subr.mxu0 0.0
        %1328 = vmatpush1.msra.mxu0 0.0
        %1329 = vmatprep.subr.mxu0 0.0
        %1330 = vmatpush1.msra.mxu0 0.0
        %1331 = vmatprep.subr.mxu0 0.0
        %1332 = vmatpush1.msra.mxu0 0.0
        %1333 = vmatprep.subr.mxu0 0.0
        %1334 = vmatpush1.msra.mxu0 0.0
        %1335 = vmatprep.subr.mxu0 0.0
        %1336 = vmatpush1.msra.mxu0 0.0
        %1337 = vmatprep.subr.mxu0 0.0
        %1338 = vmatpush1.msra.mxu0 0.0
        %1339 = vmatprep.subr.mxu0 0.0
        %1340 = vmatpush1.msra.mxu0 0.0
        %1341 = vmatprep.subr.mxu0 0.0
        %1342 = vmatpush1.msra.mxu0 0.0
        %1343 = vmatprep.subr.mxu0 0.0
        %1344 = vmatpush1.msra.mxu0 0.0
        %1345 = vmatprep.subr.mxu0 0.0
        %1346 = vmatpush1.msra.mxu0 0.0
        %1347 = vmatprep.subr.mxu0 0.0
        %1348 = vmatpush1.msra.mxu0 0.0
        %1349 = vmatprep.subr.mxu0 0.0
        %1350 = vmatpush1.msra.mxu0 0.0
        %1351 = vmatprep.subr.mxu0 0.0
        %1352 = vmatpush1.msra.mxu0 0.0
        %1353 = vmatprep.subr.mxu0 0.0
        %1354 = vmatpush1.msra.mxu0 0.0
        %1355 = vmatprep.subr.mxu0 0.0
        %1356 = vmatpush1.msra.mxu0 0.0
        %1357 = vmatprep.subr.mxu0 0.0
        %1358 = vmatpush1.msra.mxu0 0.0
        %1359 = vmatprep.mubr.f32.mxu0 0.0
        %1360 = vmatmul.mubr.f32.gmra.mrb[0].mxu0 %v1293
        %v1361 = vpop.f32.mrb[0].mxu0
        %v1362 = vadd.f32 %v1289, %v1361
        %v1363 = vpop.f32.mrb[0].mxu0
        %1364 = vdwg.mxu0
        %1365 = vrot.lane.b32.xlu0 %v881, 112
        %v1366 = vpop.permute.xlu0 %1365
        %1367 = vrot.lane.b32.xlu0 %v881, 80
        %v1368 = vpop.permute.xlu0 %1367
        %v1369 = vsel %vm892, %v1366, 0
        %v1371 = vsel %vm892, %v1368, 0
        %1373 = vmatprep.subr.mxu0 0.0
        %1374 = vmatpush1.xpose.msra.mxu0 %v1371
        %1375 = vmatprep.subr.mxu0 0.0
        %1376 = vmatpush1.xpose.msra.mxu0 0.0
        %1377 = vmatprep.subr.mxu0 0.0
        %1378 = vmatpush1.xpose.msra.mxu0 0.0
        %1379 = vmatprep.subr.mxu0 0.0
        %1380 = vmatpush1.xpose.msra.mxu0 0.0
        %1381 = vmatprep.subr.mxu0 0.0
        %1382 = vmatpush1.xpose.msra.mxu0 0.0
        %1383 = vmatprep.subr.mxu0 0.0
        %1384 = vmatpush1.xpose.msra.mxu0 0.0
        %1385 = vmatprep.subr.mxu0 0.0
        %1386 = vmatpush1.xpose.msra.mxu0 0.0
        %1387 = vmatprep.subr.mxu0 0.0
        %1388 = vmatpush1.xpose.msra.mxu0 0.0
        %1389 = vmatprep.subr.mxu0 0.0
        %1390 = vmatpush1.xpose.msra.mxu0 0.0
        %1391 = vmatprep.subr.mxu0 0.0
        %1392 = vmatpush1.xpose.msra.mxu0 0.0
        %1393 = vmatprep.subr.mxu0 0.0
        %1394 = vmatpush1.xpose.msra.mxu0 0.0
        %1395 = vmatprep.subr.mxu0 0.0
        %1396 = vmatpush1.xpose.msra.mxu0 0.0
        %1397 = vmatprep.subr.mxu0 0.0
        %1398 = vmatpush1.xpose.msra.mxu0 0.0
        %1399 = vmatprep.subr.mxu0 0.0
        %1400 = vmatpush1.xpose.msra.mxu0 0.0
        %1401 = vmatprep.subr.mxu0 0.0
        %1402 = vmatpush1.xpose.msra.mxu0 0.0
        %1403 = vmatprep.subr.mxu0 0.0
        %1404 = vmatpush1.xpose.msra.mxu0 0.0
        %1405 = vmatprep.subr.mxu0 0.0
        %1406 = vmatpush1.xpose.msra.mxu0 0.0
        %1407 = vmatprep.subr.mxu0 0.0
        %1408 = vmatpush1.xpose.msra.mxu0 0.0
        %1409 = vmatprep.subr.mxu0 0.0
        %1410 = vmatpush1.xpose.msra.mxu0 0.0
        %1411 = vmatprep.subr.mxu0 0.0
        %1412 = vmatpush1.xpose.msra.mxu0 0.0
        %1413 = vmatprep.subr.mxu0 0.0
        %1414 = vmatpush1.xpose.msra.mxu0 0.0
        %1415 = vmatprep.subr.mxu0 0.0
        %1416 = vmatpush1.xpose.msra.mxu0 0.0
        %1417 = vmatprep.subr.mxu0 0.0
        %1418 = vmatpush1.xpose.msra.mxu0 0.0
        %1419 = vmatprep.subr.mxu0 0.0
        %1420 = vmatpush1.xpose.msra.mxu0 0.0
        %1421 = vmatprep.subr.mxu0 0.0
        %1422 = vmatpush1.xpose.msra.mxu0 0.0
        %1423 = vmatprep.subr.mxu0 0.0
        %1424 = vmatpush1.xpose.msra.mxu0 0.0
        %1425 = vmatprep.subr.mxu0 0.0
        %1426 = vmatpush1.xpose.msra.mxu0 0.0
        %1427 = vmatprep.subr.mxu0 0.0
        %1428 = vmatpush1.xpose.msra.mxu0 0.0
        %1429 = vmatprep.subr.mxu0 0.0
        %1430 = vmatpush1.xpose.msra.mxu0 0.0
        %1431 = vmatprep.subr.mxu0 0.0
        %1432 = vmatpush1.xpose.msra.mxu0 0.0
        %1433 = vmatprep.subr.mxu0 0.0
        %1434 = vmatpush1.xpose.msra.mxu0 0.0
        %1435 = vmatprep.subr.mxu0 0.0
        %1436 = vmatpush1.xpose.msra.mxu0 0.0
        %1437 = vmatprep.mubr.f32.mxu0 0.0
        %1438 = vmatmul.mubr.f32.gmra.mrb[0].mxu0 %v1369
        %v1439 = vpop.f32.mrb[0].mxu0
        %v1440 = vadd.f32 0.0, %v1439
        %v1441 = vpop.f32.mrb[0].mxu0
        %1442 = vdwg.mxu0
        %v1443 = vsel %vm892, %v1440, -inf
        %1444 = vmax.xlane.f32.xlu0 %v1443
        %v1445 = vpop.xlane.xlu0 %1444
        %v1446 = vsub.f32 %v1440, %v1445
        %v1447 = vmul.f32 %v1446, 1.442695
        %v1448 = vpow.pop %v1447
        %v1449 = vsel %vm892, %v1448, 0.0
        %1450 = vadd.xlane.f32.xlu0 %v1449
        %v1451 = vpop.xlane.xlu0 %1450
        %v1452 = vrcp.pop %v1451
        %v1453 = vmul.f32 %v1448, %v1452
        %1454 = vrot.lane.b32.xlu0 %v881, 48
        %v1455 = vpop.permute.xlu0 %1454
        %v1458 = vsel %vm892, %v1453, 0
        %1460 = vmatprep.subr.mxu0 0.0
        %1461 = vmatpush1.msra.mxu0 %v1455
        %1462 = vmatprep.subr.mxu0 0.0
        %1463 = vmatpush1.msra.mxu0 0.0
        %1464 = vmatprep.subr.mxu0 0.0
        %1465 = vmatpush1.msra.mxu0 0.0
        %1466 = vmatprep.subr.mxu0 0.0
        %1467 = vmatpush1.msra.mxu0 0.0
        %1468 = vmatprep.subr.mxu0 0.0
        %1469 = vmatpush1.msra.mxu0 0.0
        %1470 = vmatprep.subr.mxu0 0.0
        %1471 = vmatpush1.msra.mxu0 0.0
        %1472 = vmatprep.subr.mxu0 0.0
        %1473 = vmatpush1.msra.mxu0 0.0
        %1474 = vmatprep.subr.mxu0 0.0
        %1475 = vmatpush1.msra.mxu0 0.0
        %1476 = vmatprep.subr.mxu0 0.0
        %1477 = vmatpush1.msra.mxu0 0.0
        %1478 = vmatprep.subr.mxu0 0.0
        %1479 = vmatpush1.msra.mxu0 0.0
        %1480 = vmatprep.subr.mxu0 0.0
        %1481 = vmatpush1.msra.mxu0 0.0
        %1482 = vmatprep.subr.mxu0 0.0
        %1483 = vmatpush1.msra.mxu0 0.0
        %1484 = vmatprep.subr.mxu0 0.0
        %1485 = vmatpush1.msra.mxu0 0.0
        %1486 = vmatprep.subr.mxu0 0.0
        %1487 = vmatpush1.msra.mxu0 0.0
        %1488 = vmatprep.subr.mxu0 0.0
        %1489 = vmatpush1.msra.mxu0 0.0
        %1490 = vmatprep.subr.mxu0 0.0
        %1491 = vmatpush1.msra.mxu0 0.0
        %1492 = vmatprep.subr.mxu0 0.0
        %1493 = vmatpush1.msra.mxu0 0.0
        %1494 = vmatprep.subr.mxu0 0.0
        %1495 = vmatpush1.msra.mxu0 0.0
        %1496 = vmatprep.subr.mxu0 0.0
        %1497 = vmatpush1.msra.mxu0 0.0
        %1498 = vmatprep.subr.mxu0 0.0
        %1499 = vmatpush1.msra.mxu0 0.0
        %1500 = vmatprep.subr.mxu0 0.0
        %1501 = vmatpush1.msra.mxu0 0.0
        %1502 = vmatprep.subr.mxu0 0.0
        %1503 = vmatpush1.msra.mxu0 0.0
        %1504 = vmatprep.subr.mxu0 0.0
        %1505 = vmatpush1.msra.mxu0 0.0
        %1506 = vmatprep.subr.mxu0 0.0
        %1507 = vmatpush1.msra.mxu0 0.0
        %1508 = vmatprep.subr.mxu0 0.0
        %1509 = vmatpush1.msra.mxu0 0.0
        %1510 = vmatprep.subr.mxu0 0.0
        %1511 = vmatpush1.msra.mxu0 0.0
        %1512 = vmatprep.subr.mxu0 0.0
        %1513 = vmatpush1.msra.mxu0 0.0
        %1514 = vmatprep.subr.mxu0 0.0
        %1515 = vmatpush1.msra.mxu0 0.0
        %1516 = vmatprep.subr.mxu0 0.0
        %1517 = vmatpush1.msra.mxu0 0.0
        %1518 = vmatprep.subr.mxu0 0.0
        %1519 = vmatpush1.msra.mxu0 0.0
        %1520 = vmatprep.subr.mxu0 0.0
        %1521 = vmatpush1.msra.mxu0 0.0
        %1522 = vmatprep.subr.mxu0 0.0
        %1523 = vmatpush1.msra.mxu0 0.0
        %1524 = vmatprep.mubr.f32.mxu0 0.0
        %1525 = vmatmul.mubr.f32.gmra.mrb[0].mxu0 %v1458
        %v1526 = vpop.f32.mrb[0].mxu0
        %v1527 = vadd.f32 0.0, %v1526
        %v1528 = vpop.f32.mrb[0].mxu0
        %1529 = vdwg.mxu0
        %v1531 = vsel %vm892, %v1527, 0
        %1533 = vmatprep.subr.mxu0 0.0
        %1534 = vmatpush1.msra.mxu0 %v886
        %1535 = vmatprep.subr.mxu0 0.0
        %1536 = vmatpush1.msra.mxu0 0.0
        %1537 = vmatprep.subr.mxu0 0.0
        %1538 = vmatpush1.msra.mxu0 0.0
        %1539 = vmatprep.subr.mxu0 0.0
        %1540 = vmatpush1.msra.mxu0 0.0
        %1541 = vmatprep.subr.mxu0 0.0
        %1542 = vmatpush1.msra.mxu0 0.0
        %1543 = vmatprep.subr.mxu0 0.0
        %1544 = vmatpush1.msra.mxu0 0.0
        %1545 = vmatprep.subr.mxu0 0.0
        %1546 = vmatpush1.msra.mxu0 0.0
        %1547 = vmatprep.subr.mxu0 0.0
        %1548 = vmatpush1.msra.mxu0 0.0
        %1549 = vmatprep.subr.mxu0 0.0
        %1550 = vmatpush1.msra.mxu0 0.0
        %1551 = vmatprep.subr.mxu0 0.0
        %1552 = vmatpush1.msra.mxu0 0.0
        %1553 = vmatprep.subr.mxu0 0.0
        %1554 = vmatpush1.msra.mxu0 0.0
        %1555 = vmatprep.subr.mxu0 0.0
        %1556 = vmatpush1.msra.mxu0 0.0
        %1557 = vmatprep.subr.mxu0 0.0
        %1558 = vmatpush1.msra.mxu0 0.0
        %1559 = vmatprep.subr.mxu0 0.0
        %1560 = vmatpush1.msra.mxu0 0.0
        %1561 = vmatprep.subr.mxu0 0.0
        %1562 = vmatpush1.msra.mxu0 0.0
        %1563 = vmatprep.subr.mxu0 0.0
        %1564 = vmatpush1.msra.mxu0 0.0
        %1565 = vmatprep.subr.mxu0 0.0
        %1566 = vmatpush1.msra.mxu0 0.0
        %1567 = vmatprep.subr.mxu0 0.0
        %1568 = vmatpush1.msra.mxu0 0.0
        %1569 = vmatprep.subr.mxu0 0.0
        %1570 = vmatpush1.msra.mxu0 0.0
        %1571 = vmatprep.subr.mxu0 0.0
        %1572 = vmatpush1.msra.mxu0 0.0
        %1573 = vmatprep.subr.mxu0 0.0
        %1574 = vmatpush1.msra.mxu0 0.0
        %1575 = vmatprep.subr.mxu0 0.0
        %1576 = vmatpush1.msra.mxu0 0.0
        %1577 = vmatprep.subr.mxu0 0.0
        %1578 = vmatpush1.msra.mxu0 0.0
        %1579 = vmatprep.subr.mxu0 0.0
        %1580 = vmatpush1.msra.mxu0 0.0
        %1581 = vmatprep.subr.mxu0 0.0
        %1582 = vmatpush1.msra.mxu0 0.0
        %1583 = vmatprep.subr.mxu0 0.0
        %1584 = vmatpush1.msra.mxu0 0.0
        %1585 = vmatprep.subr.mxu0 0.0
        %1586 = vmatpush1.msra.mxu0 0.0
        %1587 = vmatprep.subr.mxu0 0.0
        %1588 = vmatpush1.msra.mxu0 0.0
        %1589 = vmatprep.subr.mxu0 0.0
        %1590 = vmatpush1.msra.mxu0 0.0
        %1591 = vmatprep.subr.mxu0 0.0
        %1592 = vmatpush1.msra.mxu0 0.0
        %1593 = vmatprep.subr.mxu0 0.0
        %1594 = vmatpush1.msra.mxu0 0.0
        %1595 = vmatprep.subr.mxu0 0.0
        %1596 = vmatpush1.msra.mxu0 0.0
        %1597 = vmatprep.mubr.f32.mxu0 0.0
        %1598 = vmatmul.mubr.f32.gmra.mrb[0].mxu0 %v1531
        %v1599 = vpop.f32.mrb[0].mxu0
        %v1600 = vadd.f32 0.0, %v1599
        %v1601 = vpop.f32.mrb[0].mxu0
        %1602 = vdwg.mxu0
        %v1603 = vadd.f32 %v1362, %v1600
        %1604 = vrot.lane.b32.xlu0 %v881, 104
        %v1605 = vpop.permute.xlu0 %1604
        %1606 = vrot.lane.b32.xlu0 %v881, 72
        %v1607 = vpop.permute.xlu0 %1606
        %v1608 = vsel %vm892, %v1605, 0
        %v1610 = vsel %vm892, %v1607, 0
        %1612 = vmatprep.subr.mxu0 0.0
        %1613 = vmatpush1.xpose.msra.mxu0 %v1610
        %1614 = vmatprep.subr.mxu0 0.0
        %1615 = vmatpush1.xpose.msra.mxu0 0.0
        %1616 = vmatprep.subr.mxu0 0.0
        %1617 = vmatpush1.xpose.msra.mxu0 0.0
        %1618 = vmatprep.subr.mxu0 0.0
        %1619 = vmatpush1.xpose.msra.mxu0 0.0
        %1620 = vmatprep.subr.mxu0 0.0
        %1621 = vmatpush1.xpose.msra.mxu0 0.0
        %1622 = vmatprep.subr.mxu0 0.0
        %1623 = vmatpush1.xpose.msra.mxu0 0.0
        %1624 = vmatprep.subr.mxu0 0.0
        %1625 = vmatpush1.xpose.msra.mxu0 0.0
        %1626 = vmatprep.subr.mxu0 0.0
        %1627 = vmatpush1.xpose.msra.mxu0 0.0
        %1628 = vmatprep.subr.mxu0 0.0
        %1629 = vmatpush1.xpose.msra.mxu0 0.0
        %1630 = vmatprep.subr.mxu0 0.0
        %1631 = vmatpush1.xpose.msra.mxu0 0.0
        %1632 = vmatprep.subr.mxu0 0.0
        %1633 = vmatpush1.xpose.msra.mxu0 0.0
        %1634 = vmatprep.subr.mxu0 0.0
        %1635 = vmatpush1.xpose.msra.mxu0 0.0
        %1636 = vmatprep.subr.mxu0 0.0
        %1637 = vmatpush1.xpose.msra.mxu0 0.0
        %1638 = vmatprep.subr.mxu0 0.0
        %1639 = vmatpush1.xpose.msra.mxu0 0.0
        %1640 = vmatprep.subr.mxu0 0.0
        %1641 = vmatpush1.xpose.msra.mxu0 0.0
        %1642 = vmatprep.subr.mxu0 0.0
        %1643 = vmatpush1.xpose.msra.mxu0 0.0
        %1644 = vmatprep.subr.mxu0 0.0
        %1645 = vmatpush1.xpose.msra.mxu0 0.0
        %1646 = vmatprep.subr.mxu0 0.0
        %1647 = vmatpush1.xpose.msra.mxu0 0.0
        %1648 = vmatprep.subr.mxu0 0.0
        %1649 = vmatpush1.xpose.msra.mxu0 0.0
        %1650 = vmatprep.subr.mxu0 0.0
        %1651 = vmatpush1.xpose.msra.mxu0 0.0
        %1652 = vmatprep.subr.mxu0 0.0
        %1653 = vmatpush1.xpose.msra.mxu0 0.0
        %1654 = vmatprep.subr.mxu0 0.0
        %1655 = vmatpush1.xpose.msra.mxu0 0.0
        %1656 = vmatprep.subr.mxu0 0.0
        %1657 = vmatpush1.xpose.msra.mxu0 0.0
        %1658 = vmatprep.subr.mxu0 0.0
        %1659 = vmatpush1.xpose.msra.mxu0 0.0
        %1660 = vmatprep.subr.mxu0 0.0
        %1661 = vmatpush1.xpose.msra.mxu0 0.0
        %1662 = vmatprep.subr.mxu0 0.0
        %1663 = vmatpush1.xpose.msra.mxu0 0.0
        %1664 = vmatprep.subr.mxu0 0.0
        %1665 = vmatpush1.xpose.msra.mxu0 0.0
        %1666 = vmatprep.subr.mxu0 0.0
        %1667 = vmatpush1.xpose.msra.mxu0 0.0
        %1668 = vmatprep.subr.mxu0 0.0
        %1669 = vmatpush1.xpose.msra.mxu0 0.0
        %1670 = vmatprep.subr.mxu0 0.0
        %1671 = vmatpush1.xpose.msra.mxu0 0.0
        %1672 = vmatprep.subr.mxu0 0.0
        %1673 = vmatpush1.xpose.msra.mxu0 0.0
        %1674 = vmatprep.subr.mxu0 0.0
        %1675 = vmatpush1.xpose.msra.mxu0 0.0
        %1676 = vmatprep.mubr.f32.mxu0 0.0
        %1677 = vmatmul.mubr.f32.gmra.mrb[0].mxu0 %v1608
        %v1678 = vpop.f32.mrb[0].mxu0
        %v1679 = vadd.f32 0.0, %v1678
        %v1680 = vpop.f32.mrb[0].mxu0
        %1681 = vdwg.mxu0
        %v1682 = vsel %vm892, %v1679, -inf
        %1683 = vmax.xlane.f32.xlu0 %v1682
        %v1684 = vpop.xlane.xlu0 %1683
        %v1685 = vsub.f32 %v1679, %v1684
        %v1686 = vmul.f32 %v1685, 1.442695
        %v1687 = vpow.pop %v1686
        %v1688 = vsel %vm892, %v1687, 0.0
        %1689 = vadd.xlane.f32.xlu0 %v1688
        %v1690 = vpop.xlane.xlu0 %1689
        %v1691 = vrcp.pop %v1690
        %v1692 = vmul.f32 %v1687, %v1691
        %1693 = vrot.lane.b32.xlu0 %v881, 40
        %v1694 = vpop.permute.xlu0 %1693
        %v1697 = vsel %vm892, %v1692, 0
        %1699 = vmatprep.subr.mxu0 0.0
        %1700 = vmatpush1.msra.mxu0 %v1694
        %1701 = vmatprep.subr.mxu0 0.0
        %1702 = vmatpush1.msra.mxu0 0.0
        %1703 = vmatprep.subr.mxu0 0.0
        %1704 = vmatpush1.msra.mxu0 0.0
        %1705 = vmatprep.subr.mxu0 0.0
        %1706 = vmatpush1.msra.mxu0 0.0
        %1707 = vmatprep.subr.mxu0 0.0
        %1708 = vmatpush1.msra.mxu0 0.0
        %1709 = vmatprep.subr.mxu0 0.0
        %1710 = vmatpush1.msra.mxu0 0.0
        %1711 = vmatprep.subr.mxu0 0.0
        %1712 = vmatpush1.msra.mxu0 0.0
        %1713 = vmatprep.subr.mxu0 0.0
        %1714 = vmatpush1.msra.mxu0 0.0
        %1715 = vmatprep.subr.mxu0 0.0
        %1716 = vmatpush1.msra.mxu0 0.0
        %1717 = vmatprep.subr.mxu0 0.0
        %1718 = vmatpush1.msra.mxu0 0.0
        %1719 = vmatprep.subr.mxu0 0.0
        %1720 = vmatpush1.msra.mxu0 0.0
        %1721 = vmatprep.subr.mxu0 0.0
        %1722 = vmatpush1.msra.mxu0 0.0
        %1723 = vmatprep.subr.mxu0 0.0
        %1724 = vmatpush1.msra.mxu0 0.0
        %1725 = vmatprep.subr.mxu0 0.0
        %1726 = vmatpush1.msra.mxu0 0.0
        %1727 = vmatprep.subr.mxu0 0.0
        %1728 = vmatpush1.msra.mxu0 0.0
        %1729 = vmatprep.subr.mxu0 0.0
        %1730 = vmatpush1.msra.mxu0 0.0
        %1731 = vmatprep.subr.mxu0 0.0
        %1732 = vmatpush1.msra.mxu0 0.0
        %1733 = vmatprep.subr.mxu0 0.0
        %1734 = vmatpush1.msra.mxu0 0.0
        %1735 = vmatprep.subr.mxu0 0.0
        %1736 = vmatpush1.msra.mxu0 0.0
        %1737 = vmatprep.subr.mxu0 0.0
        %1738 = vmatpush1.msra.mxu0 0.0
        %1739 = vmatprep.subr.mxu0 0.0
        %1740 = vmatpush1.msra.mxu0 0.0
        %1741 = vmatprep.subr.mxu0 0.0
        %1742 = vmatpush1.msra.mxu0 0.0
        %1743 = vmatprep.subr.mxu0 0.0
        %1744 = vmatpush1.msra.mxu0 0.0
        %1745 = vmatprep.subr.mxu0 0.0
        %1746 = vmatpush1.msra.mxu0 0.0
        %1747 = vmatprep.subr.mxu0 0.0
        %1748 = vmatpush1.msra.mxu0 0.0
        %1749 = vmatprep.subr.mxu0 0.0
        %1750 = vmatpush1.msra.mxu0 0.0
        %1751 = vmatprep.subr.mxu0 0.0
        %1752 = vmatpush1.msra.mxu0 0.0
        %1753 = vmatprep.subr.mxu0 0.0
        %1754 = vmatpush1.msra.mxu0 0.0
        %1755 = vmatprep.subr.mxu0 0.0
        %1756 = vmatpush1.msra.mxu0 0.0
        %1757 = vmatprep.subr.mxu0 0.0
        %1758 = vmatpush1.msra.mxu0 0.0
        %1759 = vmatprep.subr.mxu0 0.0
        %1760 = vmatpush1.msra.mxu0 0.0
        %1761 = vmatprep.subr.mxu0 0.0
        %1762 = vmatpush1.msra.mxu0 0.0
        %1763 = vmatprep.mubr.f32.mxu0 0.0
        %1764 = vmatmul.mubr.f32.gmra.mrb[0].mxu0 %v1697
        %v1765 = vpop.f32.mrb[0].mxu0
        %v1766 = vadd.f32 0.0, %v1765
        %v1767 = vpop.f32.mrb[0].mxu0
        %1768 = vdwg.mxu0
        %v1770 = vsel %vm892, %v1766, 0
        %1772 = vmatprep.subr.mxu0 0.0
        %1773 = vmatpush1.msra.mxu0 %v887
        %1774 = vmatprep.subr.mxu0 0.0
        %1775 = vmatpush1.msra.mxu0 0.0
        %1776 = vmatprep.subr.mxu0 0.0
        %1777 = vmatpush1.msra.mxu0 0.0
        %1778 = vmatprep.subr.mxu0 0.0
        %1779 = vmatpush1.msra.mxu0 0.0
        %1780 = vmatprep.subr.mxu0 0.0
        %1781 = vmatpush1.msra.mxu0 0.0
        %1782 = vmatprep.subr.mxu0 0.0
        %1783 = vmatpush1.msra.mxu0 0.0
        %1784 = vmatprep.subr.mxu0 0.0
        %1785 = vmatpush1.msra.mxu0 0.0
        %1786 = vmatprep.subr.mxu0 0.0
        %1787 = vmatpush1.msra.mxu0 0.0
        %1788 = vmatprep.subr.mxu0 0.0
        %1789 = vmatpush1.msra.mxu0 0.0
        %1790 = vmatprep.subr.mxu0 0.0
        %1791 = vmatpush1.msra.mxu0 0.0
        %1792 = vmatprep.subr.mxu0 0.0
        %1793 = vmatpush1.msra.mxu0 0.0
        %1794 = vmatprep.subr.mxu0 0.0
        %1795 = vmatpush1.msra.mxu0 0.0
        %1796 = vmatprep.subr.mxu0 0.0
        %1797 = vmatpush1.msra.mxu0 0.0
        %1798 = vmatprep.subr.mxu0 0.0
        %1799 = vmatpush1.msra.mxu0 0.0
        %1800 = vmatprep.subr.mxu0 0.0
        %1801 = vmatpush1.msra.mxu0 0.0
        %1802 = vmatprep.subr.mxu0 0.0
        %1803 = vmatpush1.msra.mxu0 0.0
        %1804 = vmatprep.subr.mxu0 0.0
        %1805 = vmatpush1.msra.mxu0 0.0
        %1806 = vmatprep.subr.mxu0 0.0
        %1807 = vmatpush1.msra.mxu0 0.0
        %1808 = vmatprep.subr.mxu0 0.0
        %1809 = vmatpush1.msra.mxu0 0.0
        %1810 = vmatprep.subr.mxu0 0.0
        %1811 = vmatpush1.msra.mxu0 0.0
        %1812 = vmatprep.subr.mxu0 0.0
        %1813 = vmatpush1.msra.mxu0 0.0
        %1814 = vmatprep.subr.mxu0 0.0
        %1815 = vmatpush1.msra.mxu0 0.0
        %1816 = vmatprep.subr.mxu0 0.0
        %1817 = vmatpush1.msra.mxu0 0.0
        %1818 = vmatprep.subr.mxu0 0.0
        %1819 = vmatpush1.msra.mxu0 0.0
        %1820 = vmatprep.subr.mxu0 0.0
        %1821 = vmatpush1.msra.mxu0 0.0
        %1822 = vmatprep.subr.mxu0 0.0
        %1823 = vmatpush1.msra.mxu0 0.0
        %1824 = vmatprep.subr.mxu0 0.0
        %1825 = vmatpush1.msra.mxu0 0.0
        %1826 = vmatprep.subr.mxu0 0.0
        %1827 = vmatpush1.msra.mxu0 0.0
        %1828 = vmatprep.subr.mxu0 0.0
        %1829 = vmatpush1.msra.mxu0 0.0
        %1830 = vmatprep.subr.mxu0 0.0
        %1831 = vmatpush1.msra.mxu0 0.0
        %1832 = vmatprep.subr.mxu0 0.0
        %1833 = vmatpush1.msra.mxu0 0.0
        %1834 = vmatprep.subr.mxu0 0.0
        %1835 = vmatpush1.msra.mxu0 0.0
        %1836 = vmatprep.mubr.f32.mxu0 0.0
        %1837 = vmatmul.mubr.f32.gmra.mrb[0].mxu0 %v1770
        %v1838 = vpop.f32.mrb[0].mxu0
        %v1839 = vadd.f32 0.0, %v1838
        %v1840 = vpop.f32.mrb[0].mxu0
        %1841 = vdwg.mxu0
        %v1842 = vadd.f32 %v1603, %v1839
        %v1844 = vlaneseq
        %v1845 = vshrl.u32 %v1844, 7
        %v1846 = vsub.s32 0, %v1845
        %v1847 = vrot.slane %v888, %v1846
        %v1849 = vadd.f32 %v1842, %v1847
        %v1850 = vadd.f32 %v796, %v1849
        %v1851 = vld [vmem:[#allocation7] sm:$0x1]
        %v1852 = vld [vmem:[#allocation8] sm:$0x1]
        %v1853 = vsel %vm810, %v1850, 0.0
        %1854 = vadd.xlane.f32.xlu0 %v1853
        %v1855 = vpop.xlane.xlu0 %1854
        %v1856 = vrcp.pop 32.0
        %v1857 = vmul.f32 %v1855, %v1856
        %v1858 = vsub.f32 %v1850, %v1857
        %v1859 = vmul.f32 %v1858, %v1858
        %v1860 = vsel %vm810, %v1859, 0.0
        %1861 = vadd.xlane.f32.xlu0 %v1860
        %v1862 = vpop.xlane.xlu0 %1861
        %v1863 = vmul.f32 %v1862, %v1856
        %v1864 = vadd.f32 %v1863, 1e-05
        %v1865 = vrsqrt.pop %v1864
        %v1866 = vmul.f32 %v1858, %v1865
        %v1868 = vlaneseq
        %v1869 = vshrl.u32 %v1868, 7
        %v1870 = vsub.s32 0, %v1869
        %v1871 = vrot.slane %v1851, %v1870
        %v1873 = vmul.f32 %v1866, %v1871
        %v1875 = vlaneseq
        %v1876 = vshrl.u32 %v1875, 7
        %v1877 = vsub.s32 0, %v1876
        %v1878 = vrot.slane %v1852, %v1877
        %v1880 = vadd.f32 %v1873, %v1878
        %v1881 = vld [vmem:[%s8] sm:$0xff]
        %v1882 = vld [vmem:[%s8 + $0x8] sm:$0xff]
        %v1883 = vld [vmem:[%s8 + $0x10] sm:$0xff]
        %v1884 = vld [vmem:[%s8 + $0x18] sm:$0xff]
        %v1885 = vld [vmem:[#allocation10] sm:$0x1]
        %v1887 = vlaneseq
        %v1888 = vshrl.u32 %v1887, 7
        %v1889 = vsub.s32 0, %v1888
        %v1890 = vrot.slane %v1885, %v1889
        %v1893 = vsel %vm810, %v1880, 0
        %1895 = vmatprep.subr.mxu0 0.0
        %1896 = vmatpush1.msra.mxu0 %v1881
        %1897 = vmatprep.subr.mxu0 0.0
        %1898 = vmatpush1.msra.mxu0 %v1882
        %1899 = vmatprep.subr.mxu0 0.0
        %1900 = vmatpush1.msra.mxu0 %v1883
        %1901 = vmatprep.subr.mxu0 0.0
        %1902 = vmatpush1.msra.mxu0 %v1884
        %1903 = vmatprep.subr.mxu0 0.0
        %1904 = vmatpush1.msra.mxu0 0.0
        %1905 = vmatprep.subr.mxu0 0.0
        %1906 = vmatpush1.msra.mxu0 0.0
        %1907 = vmatprep.subr.mxu0 0.0
        %1908 = vmatpush1.msra.mxu0 0.0
        %1909 = vmatprep.subr.mxu0 0.0
        %1910 = vmatpush1.msra.mxu0 0.0
        %1911 = vmatprep.subr.mxu0 0.0
        %1912 = vmatpush1.msra.mxu0 0.0
        %1913 = vmatprep.subr.mxu0 0.0
        %1914 = vmatpush1.msra.mxu0 0.0
        %1915 = vmatprep.subr.mxu0 0.0
        %1916 = vmatpush1.msra.mxu0 0.0
        %1917 = vmatprep.subr.mxu0 0.0
        %1918 = vmatpush1.msra.mxu0 0.0
        %1919 = vmatprep.subr.mxu0 0.0
        %1920 = vmatpush1.msra.mxu0 0.0
        %1921 = vmatprep.subr.mxu0 0.0
        %1922 = vmatpush1.msra.mxu0 0.0
        %1923 = vmatprep.subr.mxu0 0.0
        %1924 = vmatpush1.msra.mxu0 0.0
        %1925 = vmatprep.subr.mxu0 0.0
        %1926 = vmatpush1.msra.mxu0 0.0
        %1927 = vmatprep.subr.mxu0 0.0
        %1928 = vmatpush1.msra.mxu0 0.0
        %1929 = vmatprep.subr.mxu0 0.0
        %1930 = vmatpush1.msra.mxu0 0.0
        %1931 = vmatprep.subr.mxu0 0.0
        %1932 = vmatpush1.msra.mxu0 0.0
        %1933 = vmatprep.subr.mxu0 0.0
        %1934 = vmatpush1.msra.mxu0 0.0
        %1935 = vmatprep.subr.mxu0 0.0
        %1936 = vmatpush1.msra.mxu0 0.0
        %1937 = vmatprep.subr.mxu0 0.0
        %1938 = vmatpush1.msra.mxu0 0.0
        %1939 = vmatprep.subr.mxu0 0.0
        %1940 = vmatpush1.msra.mxu0 0.0
        %1941 = vmatprep.subr.mxu0 0.0
        %1942 = vmatpush1.msra.mxu0 0.0
        %1943 = vmatprep.subr.mxu0 0.0
        %1944 = vmatpush1.msra.mxu0 0.0
        %1945 = vmatprep.subr.mxu0 0.0
        %1946 = vmatpush1.msra.mxu0 0.0
        %1947 = vmatprep.subr.mxu0 0.0
        %1948 = vmatpush1.msra.mxu0 0.0
        %1949 = vmatprep.subr.mxu0 0.0
        %1950 = vmatpush1.msra.mxu0 0.0
        %1951 = vmatprep.subr.mxu0 0.0
        %1952 = vmatpush1.msra.mxu0 0.0
        %1953 = vmatprep.subr.mxu0 0.0
        %1954 = vmatpush1.msra.mxu0 0.0
        %1955 = vmatprep.subr.mxu0 0.0
        %1956 = vmatpush1.msra.mxu0 0.0
        %1957 = vmatprep.subr.mxu0 0.0
        %1958 = vmatpush1.msra.mxu0 0.0
        %1959 = vmatprep.mubr.f32.mxu0 0.0
        %1960 = vmatmul.mubr.f32.gmra.mrb[0].mxu0 %v1893
        %v1961 = vpop.f32.mrb[0].mxu0
        %v1962 = vadd.f32 %v1890, %v1961
        %v1963 = vpop.f32.mrb[0].mxu0
        %1964 = vdwg.mxu0
        %v1965 = vld [vmem:[%s10] sm:$0xff]
        %v1966 = vld [vmem:[%s10 + $0x8] sm:$0xff]
        %v1967 = vld [vmem:[%s10 + $0x10] sm:$0xff]
        %v1968 = vld [vmem:[%s10 + $0x18] sm:$0xff]
        %v1969 = vld [vmem:[#allocation11] sm:$0x1]
        %v1971 = vlaneseq
        %v1972 = vshrl.u32 %v1971, 7
        %v1973 = vsub.s32 0, %v1972
        %v1974 = vrot.slane %v1969, %v1973
        %v1977 = vsel %vm810, %v797, 0
        %v1980 = vsel %vm810, %v798, 0
        %1982 = vmatprep.subr.mxu0 0.0
        %1983 = vmatpush1.msra.mxu0 %v1965
        %1984 = vmatprep.subr.mxu0 0.0
        %1985 = vmatpush1.msra.mxu0 %v1966
        %1986 = vmatprep.subr.mxu0 0.0
        %1987 = vmatpush1.msra.mxu0 %v1967
        %1988 = vmatprep.subr.mxu0 0.0
        %1989 = vmatpush1.msra.mxu0 %v1968
        %1990 = vmatprep.subr.mxu0 0.0
        %1991 = vmatpush1.msra.mxu0 0.0
        %1992 = vmatprep.subr.mxu0 0.0
        %1993 = vmatpush1.msra.mxu0 0.0
        %1994 = vmatprep.subr.mxu0 0.0
        %1995 = vmatpush1.msra.mxu0 0.0
        %1996 = vmatprep.subr.mxu0 0.0
        %1997 = vmatpush1.msra.mxu0 0.0
        %1998 = vmatprep.subr.mxu0 0.0
        %1999 = vmatpush1.msra.mxu0 0.0
        %2000 = vmatprep.subr.mxu0 0.0
        %2001 = vmatpush1.msra.mxu0 0.0
        %2002 = vmatprep.subr.mxu0 0.0
        %2003 = vmatpush1.msra.mxu0 0.0
        %2004 = vmatprep.subr.mxu0 0.0
        %2005 = vmatpush1.msra.mxu0 0.0
        %2006 = vmatprep.subr.mxu0 0.0
        %2007 = vmatpush1.msra.mxu0 0.0
        %2008 = vmatprep.subr.mxu0 0.0
        %2009 = vmatpush1.msra.mxu0 0.0
        %2010 = vmatprep.subr.mxu0 0.0
        %2011 = vmatpush1.msra.mxu0 0.0
        %2012 = vmatprep.subr.mxu0 0.0
        %2013 = vmatpush1.msra.mxu0 0.0
        %2014 = vmatprep.subr.mxu0 0.0
        %2015 = vmatpush1.msra.mxu0 0.0
        %2016 = vmatprep.subr.mxu0 0.0
        %2017 = vmatpush1.msra.mxu0 0.0
        %2018 = vmatprep.subr.mxu0 0.0
        %2019 = vmatpush1.msra.mxu0 0.0
        %2020 = vmatprep.subr.mxu0 0.0
        %2021 = vmatpush1.msra.mxu0 0.0
        %2022 = vmatprep.subr.mxu0 0.0
        %2023 = vmatpush1.msra.mxu0 0.0
        %2024 = vmatprep.subr.mxu0 0.0
        %2025 = vmatpush1.msra.mxu0 0.0
        %2026 = vmatprep.subr.mxu0 0.0
        %2027 = vmatpush1.msra.mxu0 0.0
        %2028 = vmatprep.subr.mxu0 0.0
        %2029 = vmatpush1.msra.mxu0 0.0
        %2030 = vmatprep.subr.mxu0 0.0
        %2031 = vmatpush1.msra.mxu0 0.0
        %2032 = vmatprep.subr.mxu0 0.0
        %2033 = vmatpush1.msra.mxu0 0.0
        %2034 = vmatprep.subr.mxu0 0.0
        %2035 = vmatpush1.msra.mxu0 0.0
        %2036 = vmatprep.subr.mxu0 0.0
        %2037 = vmatpush1.msra.mxu0 0.0
        %2038 = vmatprep.subr.mxu0 0.0
        %2039 = vmatpush1.msra.mxu0 0.0
        %2040 = vmatprep.subr.mxu0 0.0
        %2041 = vmatpush1.msra.mxu0 0.0
        %2042 = vmatprep.subr.mxu0 0.0
        %2043 = vmatpush1.msra.mxu0 0.0
        %2044 = vmatprep.subr.mxu0 0.0
        %2045 = vmatpush1.msra.mxu0 0.0
        %2046 = vmatprep.mubr.f32.mxu0 0.0
        %2047 = vmatmul.mubr.f32.gmra.mrb[0].mxu0 %v1977
        %v2048 = vpop.f32.mrb[0].mxu0
        %v2049 = vadd.f32 %v1974, %v2048
        %v2050 = vpop.f32.mrb[0].mxu0
        %2051 = vmatprep.mubr.f32.mxu0 0.0
        %2052 = vmatmul.mubr.f32.gmra.mrb[0].mxu0 %v1980
        %v2053 = vpop.f32.mrb[0].mxu0
        %v2054 = vadd.f32 %v1974, %v2053
        %v2055 = vpop.f32.mrb[0].mxu0
        %2056 = vdwg.mxu0
        %v2057 = vld [vmem:[%s12] sm:$0xff]
        %v2058 = vld [vmem:[%s12 + $0x8] sm:$0xff]
        %v2059 = vld [vmem:[%s12 + $0x10] sm:$0xff]
        %v2060 = vld [vmem:[%s12 + $0x18] sm:$0xff]
        %v2061 = vld [vmem:[%s13] sm:$0x1]
        %v2063 = vsel %vm892, %v1962, 0
        %v2066 = vsel %vm892, %v2049, 0
        %v2069 = vsel %vm892, %v2054, 0
        %2071 = vmatprep.subr.mxu0 0.0
        %2072 = vmatpush1.xpose.msra.mxu0 %v2066
        %2073 = vmatprep.subr.mxu0 0.0
        %2074 = vmatpush1.xpose.msra.mxu0 %v2069
        %2075 = vmatprep.subr.mxu0 0.0
        %2076 = vmatpush1.xpose.msra.mxu0 0.0
        %2077 = vmatprep.subr.mxu0 0.0
        %2078 = vmatpush1.xpose.msra.mxu0 0.0
        %2079 = vmatprep.subr.mxu0 0.0
        %2080 = vmatpush1.xpose.msra.mxu0 0.0
        %2081 = vmatprep.subr.mxu0 0.0
        %2082 = vmatpush1.xpose.msra.mxu0 0.0
        %2083 = vmatprep.subr.mxu0 0.0
        %2084 = vmatpush1.xpose.msra.mxu0 0.0
        %2085 = vmatprep.subr.mxu0 0.0
        %2086 = vmatpush1.xpose.msra.mxu0 0.0
        %2087 = vmatprep.subr.mxu0 0.0
        %2088 = vmatpush1.xpose.msra.mxu0 0.0
        %2089 = vmatprep.subr.mxu0 0.0
        %2090 = vmatpush1.xpose.msra.mxu0 0.0
        %2091 = vmatprep.subr.mxu0 0.0
        %2092 = vmatpush1.xpose.msra.mxu0 0.0
        %2093 = vmatprep.subr.mxu0 0.0
        %2094 = vmatpush1.xpose.msra.mxu0 0.0
        %2095 = vmatprep.subr.mxu0 0.0
        %2096 = vmatpush1.xpose.msra.mxu0 0.0
        %2097 = vmatprep.subr.mxu0 0.0
        %2098 = vmatpush1.xpose.msra.mxu0 0.0
        %2099 = vmatprep.subr.mxu0 0.0
        %2100 = vmatpush1.xpose.msra.mxu0 0.0
        %2101 = vmatprep.subr.mxu0 0.0
        %2102 = vmatpush1.xpose.msra.mxu0 0.0
        %2103 = vmatprep.subr.mxu0 0.0
        %2104 = vmatpush1.xpose.msra.mxu0 0.0
        %2105 = vmatprep.subr.mxu0 0.0
        %2106 = vmatpush1.xpose.msra.mxu0 0.0
        %2107 = vmatprep.subr.mxu0 0.0
        %2108 = vmatpush1.xpose.msra.mxu0 0.0
        %2109 = vmatprep.subr.mxu0 0.0
        %2110 = vmatpush1.xpose.msra.mxu0 0.0
        %2111 = vmatprep.subr.mxu0 0.0
        %2112 = vmatpush1.xpose.msra.mxu0 0.0
        %2113 = vmatprep.subr.mxu0 0.0
        %2114 = vmatpush1.xpose.msra.mxu0 0.0
        %2115 = vmatprep.subr.mxu0 0.0
        %2116 = vmatpush1.xpose.msra.mxu0 0.0
        %2117 = vmatprep.subr.mxu0 0.0
        %2118 = vmatpush1.xpose.msra.mxu0 0.0
        %2119 = vmatprep.subr.mxu0 0.0
        %2120 = vmatpush1.xpose.msra.mxu0 0.0
        %2121 = vmatprep.subr.mxu0 0.0
        %2122 = vmatpush1.xpose.msra.mxu0 0.0
        %2123 = vmatprep.subr.mxu0 0.0
        %2124 = vmatpush1.xpose.msra.mxu0 0.0
        %2125 = vmatprep.subr.mxu0 0.0
        %2126 = vmatpush1.xpose.msra.mxu0 0.0
        %2127 = vmatprep.subr.mxu0 0.0
        %2128 = vmatpush1.xpose.msra.mxu0 0.0
        %2129 = vmatprep.subr.mxu0 0.0
        %2130 = vmatpush1.xpose.msra.mxu0 0.0
        %2131 = vmatprep.subr.mxu0 0.0
        %2132 = vmatpush1.xpose.msra.mxu0 0.0
        %2133 = vmatprep.subr.mxu0 0.0
        %2134 = vmatpush1.xpose.msra.mxu0 0.0
        %2135 = vmatprep.mubr.f32.mxu0 0.0
        %2136 = vmatmul.mubr.f32.gmra.mrb[0].mxu0 %v2063
        %v2137 = vpop.f32.mrb[0].mxu0
        %v2138 = vadd.f32 0.0, %v2137
        %v2139 = vpop.f32.mrb[0].mxu0
        %2140 = vdwg.mxu0
        %vm2141 = vcmask 97280
        %v2142 = vsel %vm2141, %v2138, -inf
        %2143 = vmax.xlane.f32.xlu0 %v2142
        %v2144 = vpop.xlane.xlu0 %2143
        %v2145 = vsub.f32 %v2138, %v2144
        %v2146 = vmul.f32 %v2145, 1.442695
        %v2147 = vpow.pop %v2146
        %v2148 = vsel %vm2141, %v2147, 0.0
        %2149 = vadd.xlane.f32.xlu0 %v2148
        %v2150 = vpop.xlane.xlu0 %2149
        %v2151 = vrcp.pop %v2150
        %v2152 = vmul.f32 %v2147, %v2151
        %2153 = vrot.lane.b32.xlu0 %v2049, 96
        %v2154 = vpop.permute.xlu0 %2153
        %2155 = vrot.lane.b32.xlu0 %v2054, 96
        %v2156 = vpop.permute.xlu0 %2155
        %v2159 = vsel %vm2141, %v2152, 0
        %vm2161 = vcmask 1043456
        %v2162 = vsel %vm2161, %v2156, 0
        %2164 = vmatprep.subr.mxu0 0.0
        %2165 = vmatpush1.msra.mxu0 %v2154
        %2166 = vmatprep.subr.mxu0 0.0
        %2167 = vmatpush1.msra.mxu0 %v2162
        %2168 = vmatprep.subr.mxu0 0.0
        %2169 = vmatpush1.msra.mxu0 0.0
        %2170 = vmatprep.subr.mxu0 0.0
        %2171 = vmatpush1.msra.mxu0 0.0
        %2172 = vmatprep.subr.mxu0 0.0
        %2173 = vmatpush1.msra.mxu0 0.0
        %2174 = vmatprep.subr.mxu0 0.0
        %2175 = vmatpush1.msra.mxu0 0.0
        %2176 = vmatprep.subr.mxu0 0.0
        %2177 = vmatpush1.msra.mxu0 0.0
        %2178 = vmatprep.subr.mxu0 0.0
        %2179 = vmatpush1.msra.mxu0 0.0
        %2180 = vmatprep.subr.mxu0 0.0
        %2181 = vmatpush1.msra.mxu0 0.0
        %2182 = vmatprep.subr.mxu0 0.0
        %2183 = vmatpush1.msra.mxu0 0.0
        %2184 = vmatprep.subr.mxu0 0.0
        %2185 = vmatpush1.msra.mxu0 0.0
        %2186 = vmatprep.subr.mxu0 0.0
        %2187 = vmatpush1.msra.mxu0 0.0
        %2188 = vmatprep.subr.mxu0 0.0
        %2189 = vmatpush1.msra.mxu0 0.0
        %2190 = vmatprep.subr.mxu0 0.0
        %2191 = vmatpush1.msra.mxu0 0.0
        %2192 = vmatprep.subr.mxu0 0.0
        %2193 = vmatpush1.msra.mxu0 0.0
        %2194 = vmatprep.subr.mxu0 0.0
        %2195 = vmatpush1.msra.mxu0 0.0
        %2196 = vmatprep.subr.mxu0 0.0
        %2197 = vmatpush1.msra.mxu0 0.0
        %2198 = vmatprep.subr.mxu0 0.0
        %2199 = vmatpush1.msra.mxu0 0.0
        %2200 = vmatprep.subr.mxu0 0.0
        %2201 = vmatpush1.msra.mxu0 0.0
        %2202 = vmatprep.subr.mxu0 0.0
        %2203 = vmatpush1.msra.mxu0 0.0
        %2204 = vmatprep.subr.mxu0 0.0
        %2205 = vmatpush1.msra.mxu0 0.0
        %2206 = vmatprep.subr.mxu0 0.0
        %2207 = vmatpush1.msra.mxu0 0.0
        %2208 = vmatprep.subr.mxu0 0.0
        %2209 = vmatpush1.msra.mxu0 0.0
        %2210 = vmatprep.subr.mxu0 0.0
        %2211 = vmatpush1.msra.mxu0 0.0
        %2212 = vmatprep.subr.mxu0 0.0
        %2213 = vmatpush1.msra.mxu0 0.0
        %2214 = vmatprep.subr.mxu0 0.0
        %2215 = vmatpush1.msra.mxu0 0.0
        %2216 = vmatprep.subr.mxu0 0.0
        %2217 = vmatpush1.msra.mxu0 0.0
        %2218 = vmatprep.subr.mxu0 0.0
        %2219 = vmatpush1.msra.mxu0 0.0
        %2220 = vmatprep.subr.mxu0 0.0
        %2221 = vmatpush1.msra.mxu0 0.0
        %2222 = vmatprep.subr.mxu0 0.0
        %2223 = vmatpush1.msra.mxu0 0.0
        %2224 = vmatprep.subr.mxu0 0.0
        %2225 = vmatpush1.msra.mxu0 0.0
        %2226 = vmatprep.subr.mxu0 0.0
        %2227 = vmatpush1.msra.mxu0 0.0
        %2228 = vmatprep.mubr.f32.mxu0 0.0
        %2229 = vmatmul.mubr.f32.gmra.mrb[0].mxu0 %v2159
        %v2230 = vpop.f32.mrb[0].mxu0
        %v2231 = vadd.f32 0.0, %v2230
        %v2232 = vpop.f32.mrb[0].mxu0
        %2233 = vdwg.mxu0
        %2234 = vrot.lane.b32.xlu0 %v1962, 120
        %v2235 = vpop.permute.xlu0 %2234
        %2236 = vrot.lane.b32.xlu0 %v2049, 120
        %v2237 = vpop.permute.xlu0 %2236
        %2238 = vrot.lane.b32.xlu0 %v2054, 120
        %v2239 = vpop.permute.xlu0 %2238
        %v2240 = vsel %vm892, %v2235, 0
        %v2242 = vsel %vm892, %v2237, 0
        %v2244 = vsel %vm892, %v2239, 0
        %2246 = vmatprep.subr.mxu0 0.0
        %2247 = vmatpush1.xpose.msra.mxu0 %v2242
        %2248 = vmatprep.subr.mxu0 0.0
        %2249 = vmatpush1.xpose.msra.mxu0 %v2244
        %2250 = vmatprep.subr.mxu0 0.0
        %2251 = vmatpush1.xpose.msra.mxu0 0.0
        %2252 = vmatprep.subr.mxu0 0.0
        %2253 = vmatpush1.xpose.msra.mxu0 0.0
        %2254 = vmatprep.subr.mxu0 0.0
        %2255 = vmatpush1.xpose.msra.mxu0 0.0
        %2256 = vmatprep.subr.mxu0 0.0
        %2257 = vmatpush1.xpose.msra.mxu0 0.0
        %2258 = vmatprep.subr.mxu0 0.0
        %2259 = vmatpush1.xpose.msra.mxu0 0.0
        %2260 = vmatprep.subr.mxu0 0.0
        %2261 = vmatpush1.xpose.msra.mxu0 0.0
        %2262 = vmatprep.subr.mxu0 0.0
        %2263 = vmatpush1.xpose.msra.mxu0 0.0
        %2264 = vmatprep.subr.mxu0 0.0
        %2265 = vmatpush1.xpose.msra.mxu0 0.0
        %2266 = vmatprep.subr.mxu0 0.0
        %2267 = vmatpush1.xpose.msra.mxu0 0.0
        %2268 = vmatprep.subr.mxu0 0.0
        %2269 = vmatpush1.xpose.msra.mxu0 0.0
        %2270 = vmatprep.subr.mxu0 0.0
        %2271 = vmatpush1.xpose.msra.mxu0 0.0
        %2272 = vmatprep.subr.mxu0 0.0
        %2273 = vmatpush1.xpose.msra.mxu0 0.0
        %2274 = vmatprep.subr.mxu0 0.0
        %2275 = vmatpush1.xpose.msra.mxu0 0.0
        %2276 = vmatprep.subr.mxu0 0.0
        %2277 = vmatpush1.xpose.msra.mxu0 0.0
        %2278 = vmatprep.subr.mxu0 0.0
        %2279 = vmatpush1.xpose.msra.mxu0 0.0
        %2280 = vmatprep.subr.mxu0 0.0
        %2281 = vmatpush1.xpose.msra.mxu0 0.0
        %2282 = vmatprep.subr.mxu0 0.0
        %2283 = vmatpush1.xpose.msra.mxu0 0.0
        %2284 = vmatprep.subr.mxu0 0.0
        %2285 = vmatpush1.xpose.msra.mxu0 0.0
        %2286 = vmatprep.subr.mxu0 0.0
        %2287 = vmatpush1.xpose.msra.mxu0 0.0
        %2288 = vmatprep.subr.mxu0 0.0
        %2289 = vmatpush1.xpose.msra.mxu0 0.0
        %2290 = vmatprep.subr.mxu0 0.0
        %2291 = vmatpush1.xpose.msra.mxu0 0.0
        %2292 = vmatprep.subr.mxu0 0.0
        %2293 = vmatpush1.xpose.msra.mxu0 0.0
        %2294 = vmatprep.subr.mxu0 0.0
        %2295 = vmatpush1.xpose.msra.mxu0 0.0
        %2296 = vmatprep.subr.mxu0 0.0
        %2297 = vmatpush1.xpose.msra.mxu0 0.0
        %2298 = vmatprep.subr.mxu0 0.0
        %2299 = vmatpush1.xpose.msra.mxu0 0.0
        %2300 = vmatprep.subr.mxu0 0.0
        %2301 = vmatpush1.xpose.msra.mxu0 0.0
        %2302 = vmatprep.subr.mxu0 0.0
        %2303 = vmatpush1.xpose.msra.mxu0 0.0
        %2304 = vmatprep.subr.mxu0 0.0
        %2305 = vmatpush1.xpose.msra.mxu0 0.0
        %2306 = vmatprep.subr.mxu0 0.0
        %2307 = vmatpush1.xpose.msra.mxu0 0.0
        %2308 = vmatprep.subr.mxu0 0.0
        %2309 = vmatpush1.xpose.msra.mxu0 0.0
        %2310 = vmatprep.mubr.f32.mxu0 0.0
        %2311 = vmatmul.mubr.f32.gmra.mrb[0].mxu0 %v2240
        %v2312 = vpop.f32.mrb[0].mxu0
        %v2313 = vadd.f32 0.0, %v2312
        %v2314 = vpop.f32.mrb[0].mxu0
        %2315 = vdwg.mxu0
        %v2316 = vsel %vm2141, %v2313, -inf
        %2317 = vmax.xlane.f32.xlu0 %v2316
        %v2318 = vpop.xlane.xlu0 %2317
        %v2319 = vsub.f32 %v2313, %v2318
        %v2320 = vmul.f32 %v2319, 1.442695
        %v2321 = vpow.pop %v2320
        %v2322 = vsel %vm2141, %v2321, 0.0
        %2323 = vadd.xlane.f32.xlu0 %v2322
        %v2324 = vpop.xlane.xlu0 %2323
        %v2325 = vrcp.pop %v2324
        %v2326 = vmul.f32 %v2321, %v2325
        %2327 = vrot.lane.b32.xlu0 %v2049, 88
        %v2328 = vpop.permute.xlu0 %2327
        %2329 = vrot.lane.b32.xlu0 %v2054, 88
        %v2330 = vpop.permute.xlu0 %2329
        %v2333 = vsel %vm2141, %v2326, 0
        %v2335 = vsel %vm2161, %v2330, 0
        %2337 = vmatprep.subr.mxu0 0.0
        %2338 = vmatpush1.msra.mxu0 %v2328
        %2339 = vmatprep.subr.mxu0 0.0
        %2340 = vmatpush1.msra.mxu0 %v2335
        %2341 = vmatprep.subr.mxu0 0.0
        %2342 = vmatpush1.msra.mxu0 0.0
        %2343 = vmatprep.subr.mxu0 0.0
        %2344 = vmatpush1.msra.mxu0 0.0
        %2345 = vmatprep.subr.mxu0 0.0
        %2346 = vmatpush1.msra.mxu0 0.0
        %2347 = vmatprep.subr.mxu0 0.0
        %2348 = vmatpush1.msra.mxu0 0.0
        %2349 = vmatprep.subr.mxu0 0.0
        %2350 = vmatpush1.msra.mxu0 0.0
        %2351 = vmatprep.subr.mxu0 0.0
        %2352 = vmatpush1.msra.mxu0 0.0
        %2353 = vmatprep.subr.mxu0 0.0
        %2354 = vmatpush1.msra.mxu0 0.0
        %2355 = vmatprep.subr.mxu0 0.0
        %2356 = vmatpush1.msra.mxu0 0.0
        %2357 = vmatprep.subr.mxu0 0.0
        %2358 = vmatpush1.msra.mxu0 0.0
        %2359 = vmatprep.subr.mxu0 0.0
        %2360 = vmatpush1.msra.mxu0 0.0
        %2361 = vmatprep.subr.mxu0 0.0
        %2362 = vmatpush1.msra.mxu0 0.0
        %2363 = vmatprep.subr.mxu0 0.0
        %2364 = vmatpush1.msra.mxu0 0.0
        %2365 = vmatprep.subr.mxu0 0.0
        %2366 = vmatpush1.msra.mxu0 0.0
        %2367 = vmatprep.subr.mxu0 0.0
        %2368 = vmatpush1.msra.mxu0 0.0
        %2369 = vmatprep.subr.mxu0 0.0
        %2370 = vmatpush1.msra.mxu0 0.0
        %2371 = vmatprep.subr.mxu0 0.0
        %2372 = vmatpush1.msra.mxu0 0.0
        %2373 = vmatprep.subr.mxu0 0.0
        %2374 = vmatpush1.msra.mxu0 0.0
        %2375 = vmatprep.subr.mxu0 0.0
        %2376 = vmatpush1.msra.mxu0 0.0
        %2377 = vmatprep.subr.mxu0 0.0
        %2378 = vmatpush1.msra.mxu0 0.0
        %2379 = vmatprep.subr.mxu0 0.0
        %2380 = vmatpush1.msra.mxu0 0.0
        %2381 = vmatprep.subr.mxu0 0.0
        %2382 = vmatpush1.msra.mxu0 0.0
        %2383 = vmatprep.subr.mxu0 0.0
        %2384 = vmatpush1.msra.mxu0 0.0
        %2385 = vmatprep.subr.mxu0 0.0
        %2386 = vmatpush1.msra.mxu0 0.0
        %2387 = vmatprep.subr.mxu0 0.0
        %2388 = vmatpush1.msra.mxu0 0.0
        %2389 = vmatprep.subr.mxu0 0.0
        %2390 = vmatpush1.msra.mxu0 0.0
        %2391 = vmatprep.subr.mxu0 0.0
        %2392 = vmatpush1.msra.mxu0 0.0
        %2393 = vmatprep.subr.mxu0 0.0
        %2394 = vmatpush1.msra.mxu0 0.0
        %2395 = vmatprep.subr.mxu0 0.0
        %2396 = vmatpush1.msra.mxu0 0.0
        %2397 = vmatprep.subr.mxu0 0.0
        %2398 = vmatpush1.msra.mxu0 0.0
        %2399 = vmatprep.subr.mxu0 0.0
        %2400 = vmatpush1.msra.mxu0 0.0
        %2401 = vmatprep.mubr.f32.mxu0 0.0
        %2402 = vmatmul.mubr.f32.gmra.mrb[0].mxu0 %v2333
        %v2403 = vpop.f32.mrb[0].mxu0
        %v2404 = vadd.f32 0.0, %v2403
        %v2405 = vpop.f32.mrb[0].mxu0
        %2406 = vdwg.mxu0
        %v2408 = vsel %vm892, %v2404, 0
        %2410 = vmatprep.subr.mxu0 0.0
        %2411 = vmatpush1.msra.mxu0 %v2058
        %2412 = vmatprep.subr.mxu0 0.0
        %2413 = vmatpush1.msra.mxu0 0.0
        %2414 = vmatprep.subr.mxu0 0.0
        %2415 = vmatpush1.msra.mxu0 0.0
        %2416 = vmatprep.subr.mxu0 0.0
        %2417 = vmatpush1.msra.mxu0 0.0
        %2418 = vmatprep.subr.mxu0 0.0
        %2419 = vmatpush1.msra.mxu0 0.0
        %2420 = vmatprep.subr.mxu0 0.0
        %2421 = vmatpush1.msra.mxu0 0.0
        %2422 = vmatprep.subr.mxu0 0.0
        %2423 = vmatpush1.msra.mxu0 0.0
        %2424 = vmatprep.subr.mxu0 0.0
        %2425 = vmatpush1.msra.mxu0 0.0
        %2426 = vmatprep.subr.mxu0 0.0
        %2427 = vmatpush1.msra.mxu0 0.0
        %2428 = vmatprep.subr.mxu0 0.0
        %2429 = vmatpush1.msra.mxu0 0.0
        %2430 = vmatprep.subr.mxu0 0.0
        %2431 = vmatpush1.msra.mxu0 0.0
        %2432 = vmatprep.subr.mxu0 0.0
        %2433 = vmatpush1.msra.mxu0 0.0
        %2434 = vmatprep.subr.mxu0 0.0
        %2435 = vmatpush1.msra.mxu0 0.0
        %2436 = vmatprep.subr.mxu0 0.0
        %2437 = vmatpush1.msra.mxu0 0.0
        %2438 = vmatprep.subr.mxu0 0.0
        %2439 = vmatpush1.msra.mxu0 0.0
        %2440 = vmatprep.subr.mxu0 0.0
        %2441 = vmatpush1.msra.mxu0 0.0
        %2442 = vmatprep.subr.mxu0 0.0
        %2443 = vmatpush1.msra.mxu0 0.0
        %2444 = vmatprep.subr.mxu0 0.0
        %2445 = vmatpush1.msra.mxu0 0.0
        %2446 = vmatprep.subr.mxu0 0.0
        %2447 = vmatpush1.msra.mxu0 0.0
        %2448 = vmatprep.subr.mxu0 0.0
        %2449 = vmatpush1.msra.mxu0 0.0
        %2450 = vmatprep.subr.mxu0 0.0
        %2451 = vmatpush1.msra.mxu0 0.0
        %2452 = vmatprep.subr.mxu0 0.0
        %2453 = vmatpush1.msra.mxu0 0.0
        %2454 = vmatprep.subr.mxu0 0.0
        %2455 = vmatpush1.msra.mxu0 0.0
        %2456 = vmatprep.subr.mxu0 0.0
        %2457 = vmatpush1.msra.mxu0 0.0
        %2458 = vmatprep.subr.mxu0 0.0
        %2459 = vmatpush1.msra.mxu0 0.0
        %2460 = vmatprep.subr.mxu0 0.0
        %2461 = vmatpush1.msra.mxu0 0.0
        %2462 = vmatprep.subr.mxu0 0.0
        %2463 = vmatpush1.msra.mxu0 0.0
        %2464 = vmatprep.subr.mxu0 0.0
        %2465 = vmatpush1.msra.mxu0 0.0
        %2466 = vmatprep.subr.mxu0 0.0
        %2467 = vmatpush1.msra.mxu0 0.0
        %2468 = vmatprep.subr.mxu0 0.0
        %2469 = vmatpush1.msra.mxu0 0.0
        %2470 = vmatprep.subr.mxu0 0.0
        %2471 = vmatpush1.msra.mxu0 0.0
        %2472 = vmatprep.subr.mxu0 0.0
        %2473 = vmatpush1.msra.mxu0 0.0
        %2474 = vmatprep.mubr.f32.mxu0 0.0
        %2475 = vmatmul.mubr.f32.gmra.mrb[0].mxu0 %v2408
        %v2476 = vpop.f32.mrb[0].mxu0
        %v2477 = vadd.f32 0.0, %v2476
        %v2478 = vpop.f32.mrb[0].mxu0
        %2479 = vdwg.mxu0
        %v2481 = vsel %vm892, %v2231, 0
        %2483 = vmatprep.subr.mxu0 0.0
        %2484 = vmatpush1.msra.mxu0 %v2057
        %2485 = vmatprep.subr.mxu0 0.0
        %2486 = vmatpush1.msra.mxu0 0.0
        %2487 = vmatprep.subr.mxu0 0.0
        %2488 = vmatpush1.msra.mxu0 0.0
        %2489 = vmatprep.subr.mxu0 0.0
        %2490 = vmatpush1.msra.mxu0 0.0
        %2491 = vmatprep.subr.mxu0 0.0
        %2492 = vmatpush1.msra.mxu0 0.0
        %2493 = vmatprep.subr.mxu0 0.0
        %2494 = vmatpush1.msra.mxu0 0.0
        %2495 = vmatprep.subr.mxu0 0.0
        %2496 = vmatpush1.msra.mxu0 0.0
        %2497 = vmatprep.subr.mxu0 0.0
        %2498 = vmatpush1.msra.mxu0 0.0
        %2499 = vmatprep.subr.mxu0 0.0
        %2500 = vmatpush1.msra.mxu0 0.0
        %2501 = vmatprep.subr.mxu0 0.0
        %2502 = vmatpush1.msra.mxu0 0.0
        %2503 = vmatprep.subr.mxu0 0.0
        %2504 = vmatpush1.msra.mxu0 0.0
        %2505 = vmatprep.subr.mxu0 0.0
        %2506 = vmatpush1.msra.mxu0 0.0
        %2507 = vmatprep.subr.mxu0 0.0
        %2508 = vmatpush1.msra.mxu0 0.0
        %2509 = vmatprep.subr.mxu0 0.0
        %2510 = vmatpush1.msra.mxu0 0.0
        %2511 = vmatprep.subr.mxu0 0.0
        %2512 = vmatpush1.msra.mxu0 0.0
        %2513 = vmatprep.subr.mxu0 0.0
        %2514 = vmatpush1.msra.mxu0 0.0
        %2515 = vmatprep.subr.mxu0 0.0
        %2516 = vmatpush1.msra.mxu0 0.0
        %2517 = vmatprep.subr.mxu0 0.0
        %2518 = vmatpush1.msra.mxu0 0.0
        %2519 = vmatprep.subr.mxu0 0.0
        %2520 = vmatpush1.msra.mxu0 0.0
        %2521 = vmatprep.subr.mxu0 0.0
        %2522 = vmatpush1.msra.mxu0 0.0
        %2523 = vmatprep.subr.mxu0 0.0
        %2524 = vmatpush1.msra.mxu0 0.0
        %2525 = vmatprep.subr.mxu0 0.0
        %2526 = vmatpush1.msra.mxu0 0.0
        %2527 = vmatprep.subr.mxu0 0.0
        %2528 = vmatpush1.msra.mxu0 0.0
        %2529 = vmatprep.subr.mxu0 0.0
        %2530 = vmatpush1.msra.mxu0 0.0
        %2531 = vmatprep.subr.mxu0 0.0
        %2532 = vmatpush1.msra.mxu0 0.0
        %2533 = vmatprep.subr.mxu0 0.0
        %2534 = vmatpush1.msra.mxu0 0.0
        %2535 = vmatprep.subr.mxu0 0.0
        %2536 = vmatpush1.msra.mxu0 0.0
        %2537 = vmatprep.subr.mxu0 0.0
        %2538 = vmatpush1.msra.mxu0 0.0
        %2539 = vmatprep.subr.mxu0 0.0
        %2540 = vmatpush1.msra.mxu0 0.0
        %2541 = vmatprep.subr.mxu0 0.0
        %2542 = vmatpush1.msra.mxu0 0.0
        %2543 = vmatprep.subr.mxu0 0.0
        %2544 = vmatpush1.msra.mxu0 0.0
        %2545 = vmatprep.subr.mxu0 0.0
        %2546 = vmatpush1.msra.mxu0 0.0
        %2547 = vmatprep.mubr.f32.mxu0 0.0
        %2548 = vmatmul.mubr.f32.gmra.mrb[0].mxu0 %v2481
        %v2549 = vpop.f32.mrb[0].mxu0
        %v2550 = vadd.f32 %v2477, %v2549
        %v2551 = vpop.f32.mrb[0].mxu0
        %2552 = vdwg.mxu0
        %2553 = vrot.lane.b32.xlu0 %v1962, 112
        %v2554 = vpop.permute.xlu0 %2553
        %2555 = vrot.lane.b32.xlu0 %v2049, 112
        %v2556 = vpop.permute.xlu0 %2555
        %2557 = vrot.lane.b32.xlu0 %v2054, 112
        %v2558 = vpop.permute.xlu0 %2557
        %v2559 = vsel %vm892, %v2554, 0
        %v2561 = vsel %vm892, %v2556, 0
        %v2563 = vsel %vm892, %v2558, 0
        %2565 = vmatprep.subr.mxu0 0.0
        %2566 = vmatpush1.xpose.msra.mxu0 %v2561
        %2567 = vmatprep.subr.mxu0 0.0
        %2568 = vmatpush1.xpose.msra.mxu0 %v2563
        %2569 = vmatprep.subr.mxu0 0.0
        %2570 = vmatpush1.xpose.msra.mxu0 0.0
        %2571 = vmatprep.subr.mxu0 0.0
        %2572 = vmatpush1.xpose.msra.mxu0 0.0
        %2573 = vmatprep.subr.mxu0 0.0
        %2574 = vmatpush1.xpose.msra.mxu0 0.0
        %2575 = vmatprep.subr.mxu0 0.0
        %2576 = vmatpush1.xpose.msra.mxu0 0.0
        %2577 = vmatprep.subr.mxu0 0.0
        %2578 = vmatpush1.xpose.msra.mxu0 0.0
        %2579 = vmatprep.subr.mxu0 0.0
        %2580 = vmatpush1.xpose.msra.mxu0 0.0
        %2581 = vmatprep.subr.mxu0 0.0
        %2582 = vmatpush1.xpose.msra.mxu0 0.0
        %2583 = vmatprep.subr.mxu0 0.0
        %2584 = vmatpush1.xpose.msra.mxu0 0.0
        %2585 = vmatprep.subr.mxu0 0.0
        %2586 = vmatpush1.xpose.msra.mxu0 0.0
        %2587 = vmatprep.subr.mxu0 0.0
        %2588 = vmatpush1.xpose.msra.mxu0 0.0
        %2589 = vmatprep.subr.mxu0 0.0
        %2590 = vmatpush1.xpose.msra.mxu0 0.0
        %2591 = vmatprep.subr.mxu0 0.0
        %2592 = vmatpush1.xpose.msra.mxu0 0.0
        %2593 = vmatprep.subr.mxu0 0.0
        %2594 = vmatpush1.xpose.msra.mxu0 0.0
        %2595 = vmatprep.subr.mxu0 0.0
        %2596 = vmatpush1.xpose.msra.mxu0 0.0
        %2597 = vmatprep.subr.mxu0 0.0
        %2598 = vmatpush1.xpose.msra.mxu0 0.0
        %2599 = vmatprep.subr.mxu0 0.0
        %2600 = vmatpush1.xpose.msra.mxu0 0.0
        %2601 = vmatprep.subr.mxu0 0.0
        %2602 = vmatpush1.xpose.msra.mxu0 0.0
        %2603 = vmatprep.subr.mxu0 0.0
        %2604 = vmatpush1.xpose.msra.mxu0 0.0
        %2605 = vmatprep.subr.mxu0 0.0
        %2606 = vmatpush1.xpose.msra.mxu0 0.0
        %2607 = vmatprep.subr.mxu0 0.0
        %2608 = vmatpush1.xpose.msra.mxu0 0.0
        %2609 = vmatprep.subr.mxu0 0.0
        %2610 = vmatpush1.xpose.msra.mxu0 0.0
        %2611 = vmatprep.subr.mxu0 0.0
        %2612 = vmatpush1.xpose.msra.mxu0 0.0
        %2613 = vmatprep.subr.mxu0 0.0
        %2614 = vmatpush1.xpose.msra.mxu0 0.0
        %2615 = vmatprep.subr.mxu0 0.0
        %2616 = vmatpush1.xpose.msra.mxu0 0.0
        %2617 = vmatprep.subr.mxu0 0.0
        %2618 = vmatpush1.xpose.msra.mxu0 0.0
        %2619 = vmatprep.subr.mxu0 0.0
        %2620 = vmatpush1.xpose.msra.mxu0 0.0
        %2621 = vmatprep.subr.mxu0 0.0
        %2622 = vmatpush1.xpose.msra.mxu0 0.0
        %2623 = vmatprep.subr.mxu0 0.0
        %2624 = vmatpush1.xpose.msra.mxu0 0.0
        %2625 = vmatprep.subr.mxu0 0.0
        %2626 = vmatpush1.xpose.msra.mxu0 0.0
        %2627 = vmatprep.subr.mxu0 0.0
        %2628 = vmatpush1.xpose.msra.mxu0 0.0
        %2629 = vmatprep.mubr.f32.mxu0 0.0
        %2630 = vmatmul.mubr.f32.gmra.mrb[0].mxu0 %v2559
        %v2631 = vpop.f32.mrb[0].mxu0
        %v2632 = vadd.f32 0.0, %v2631
        %v2633 = vpop.f32.mrb[0].mxu0
        %2634 = vdwg.mxu0
        %v2635 = vsel %vm2141, %v2632, -inf
        %2636 = vmax.xlane.f32.xlu0 %v2635
        %v2637 = vpop.xlane.xlu0 %2636
        %v2638 = vsub.f32 %v2632, %v2637
        %v2639 = vmul.f32 %v2638, 1.442695
        %v2640 = vpow.pop %v2639
        %v2641 = vsel %vm2141, %v2640, 0.0
        %2642 = vadd.xlane.f32.xlu0 %v2641
        %v2643 = vpop.xlane.xlu0 %2642
        %v2644 = vrcp.pop %v2643
        %v2645 = vmul.f32 %v2640, %v2644
        %2646 = vrot.lane.b32.xlu0 %v2049, 80
        %v2647 = vpop.permute.xlu0 %2646
        %2648 = vrot.lane.b32.xlu0 %v2054, 80
        %v2649 = vpop.permute.xlu0 %2648
        %v2652 = vsel %vm2141, %v2645, 0
        %v2654 = vsel %vm2161, %v2649, 0
        %2656 = vmatprep.subr.mxu0 0.0
        %2657 = vmatpush1.msra.mxu0 %v2647
        %2658 = vmatprep.subr.mxu0 0.0
        %2659 = vmatpush1.msra.mxu0 %v2654
        %2660 = vmatprep.subr.mxu0 0.0
        %2661 = vmatpush1.msra.mxu0 0.0
        %2662 = vmatprep.subr.mxu0 0.0
        %2663 = vmatpush1.msra.mxu0 0.0
        %2664 = vmatprep.subr.mxu0 0.0
        %2665 = vmatpush1.msra.mxu0 0.0
        %2666 = vmatprep.subr.mxu0 0.0
        %2667 = vmatpush1.msra.mxu0 0.0
        %2668 = vmatprep.subr.mxu0 0.0
        %2669 = vmatpush1.msra.mxu0 0.0
        %2670 = vmatprep.subr.mxu0 0.0
        %2671 = vmatpush1.msra.mxu0 0.0
        %2672 = vmatprep.subr.mxu0 0.0
        %2673 = vmatpush1.msra.mxu0 0.0
        %2674 = vmatprep.subr.mxu0 0.0
        %2675 = vmatpush1.msra.mxu0 0.0
        %2676 = vmatprep.subr.mxu0 0.0
        %2677 = vmatpush1.msra.mxu0 0.0
        %2678 = vmatprep.subr.mxu0 0.0
        %2679 = vmatpush1.msra.mxu0 0.0
        %2680 = vmatprep.subr.mxu0 0.0
        %2681 = vmatpush1.msra.mxu0 0.0
        %2682 = vmatprep.subr.mxu0 0.0
        %2683 = vmatpush1.msra.mxu0 0.0
        %2684 = vmatprep.subr.mxu0 0.0
        %2685 = vmatpush1.msra.mxu0 0.0
        %2686 = vmatprep.subr.mxu0 0.0
        %2687 = vmatpush1.msra.mxu0 0.0
        %2688 = vmatprep.subr.mxu0 0.0
        %2689 = vmatpush1.msra.mxu0 0.0
        %2690 = vmatprep.subr.mxu0 0.0
        %2691 = vmatpush1.msra.mxu0 0.0
        %2692 = vmatprep.subr.mxu0 0.0
        %2693 = vmatpush1.msra.mxu0 0.0
        %2694 = vmatprep.subr.mxu0 0.0
        %2695 = vmatpush1.msra.mxu0 0.0
        %2696 = vmatprep.subr.mxu0 0.0
        %2697 = vmatpush1.msra.mxu0 0.0
        %2698 = vmatprep.subr.mxu0 0.0
        %2699 = vmatpush1.msra.mxu0 0.0
        %2700 = vmatprep.subr.mxu0 0.0
        %2701 = vmatpush1.msra.mxu0 0.0
        %2702 = vmatprep.subr.mxu0 0.0
        %2703 = vmatpush1.msra.mxu0 0.0
        %2704 = vmatprep.subr.mxu0 0.0
        %2705 = vmatpush1.msra.mxu0 0.0
        %2706 = vmatprep.subr.mxu0 0.0
        %2707 = vmatpush1.msra.mxu0 0.0
        %2708 = vmatprep.subr.mxu0 0.0
        %2709 = vmatpush1.msra.mxu0 0.0
        %2710 = vmatprep.subr.mxu0 0.0
        %2711 = vmatpush1.msra.mxu0 0.0
        %2712 = vmatprep.subr.mxu0 0.0
        %2713 = vmatpush1.msra.mxu0 0.0
        %2714 = vmatprep.subr.mxu0 0.0
        %2715 = vmatpush1.msra.mxu0 0.0
        %2716 = vmatprep.subr.mxu0 0.0
        %2717 = vmatpush1.msra.mxu0 0.0
        %2718 = vmatprep.subr.mxu0 0.0
        %2719 = vmatpush1.msra.mxu0 0.0
        %2720 = vmatprep.mubr.f32.mxu0 0.0
        %2721 = vmatmul.mubr.f32.gmra.mrb[0].mxu0 %v2652
        %v2722 = vpop.f32.mrb[0].mxu0
        %v2723 = vadd.f32 0.0, %v2722
        %v2724 = vpop.f32.mrb[0].mxu0
        %2725 = vdwg.mxu0
        %v2727 = vsel %vm892, %v2723, 0
        %2729 = vmatprep.subr.mxu0 0.0
        %2730 = vmatpush1.msra.mxu0 %v2059
        %2731 = vmatprep.subr.mxu0 0.0
        %2732 = vmatpush1.msra.mxu0 0.0
        %2733 = vmatprep.subr.mxu0 0.0
        %2734 = vmatpush1.msra.mxu0 0.0
        %2735 = vmatprep.subr.mxu0 0.0
        %2736 = vmatpush1.msra.mxu0 0.0
        %2737 = vmatprep.subr.mxu0 0.0
        %2738 = vmatpush1.msra.mxu0 0.0
        %2739 = vmatprep.subr.mxu0 0.0
        %2740 = vmatpush1.msra.mxu0 0.0
        %2741 = vmatprep.subr.mxu0 0.0
        %2742 = vmatpush1.msra.mxu0 0.0
        %2743 = vmatprep.subr.mxu0 0.0
        %2744 = vmatpush1.msra.mxu0 0.0
        %2745 = vmatprep.subr.mxu0 0.0
        %2746 = vmatpush1.msra.mxu0 0.0
        %2747 = vmatprep.subr.mxu0 0.0
        %2748 = vmatpush1.msra.mxu0 0.0
        %2749 = vmatprep.subr.mxu0 0.0
        %2750 = vmatpush1.msra.mxu0 0.0
        %2751 = vmatprep.subr.mxu0 0.0
        %2752 = vmatpush1.msra.mxu0 0.0
        %2753 = vmatprep.subr.mxu0 0.0
        %2754 = vmatpush1.msra.mxu0 0.0
        %2755 = vmatprep.subr.mxu0 0.0
        %2756 = vmatpush1.msra.mxu0 0.0
        %2757 = vmatprep.subr.mxu0 0.0
        %2758 = vmatpush1.msra.mxu0 0.0
        %2759 = vmatprep.subr.mxu0 0.0
        %2760 = vmatpush1.msra.mxu0 0.0
        %2761 = vmatprep.subr.mxu0 0.0
        %2762 = vmatpush1.msra.mxu0 0.0
        %2763 = vmatprep.subr.mxu0 0.0
        %2764 = vmatpush1.msra.mxu0 0.0
        %2765 = vmatprep.subr.mxu0 0.0
        %2766 = vmatpush1.msra.mxu0 0.0
        %2767 = vmatprep.subr.mxu0 0.0
        %2768 = vmatpush1.msra.mxu0 0.0
        %2769 = vmatprep.subr.mxu0 0.0
        %2770 = vmatpush1.msra.mxu0 0.0
        %2771 = vmatprep.subr.mxu0 0.0
        %2772 = vmatpush1.msra.mxu0 0.0
        %2773 = vmatprep.subr.mxu0 0.0
        %2774 = vmatpush1.msra.mxu0 0.0
        %2775 = vmatprep.subr.mxu0 0.0
        %2776 = vmatpush1.msra.mxu0 0.0
        %2777 = vmatprep.subr.mxu0 0.0
        %2778 = vmatpush1.msra.mxu0 0.0
        %2779 = vmatprep.subr.mxu0 0.0
        %2780 = vmatpush1.msra.mxu0 0.0
        %2781 = vmatprep.subr.mxu0 0.0
        %2782 = vmatpush1.msra.mxu0 0.0
        %2783 = vmatprep.subr.mxu0 0.0
        %2784 = vmatpush1.msra.mxu0 0.0
        %2785 = vmatprep.subr.mxu0 0.0
        %2786 = vmatpush1.msra.mxu0 0.0
        %2787 = vmatprep.subr.mxu0 0.0
        %2788 = vmatpush1.msra.mxu0 0.0
        %2789 = vmatprep.subr.mxu0 0.0
        %2790 = vmatpush1.msra.mxu0 0.0
        %2791 = vmatprep.subr.mxu0 0.0
        %2792 = vmatpush1.msra.mxu0 0.0
        %2793 = vmatprep.mubr.f32.mxu0 0.0
        %2794 = vmatmul.mubr.f32.gmra.mrb[0].mxu0 %v2727
        %v2795 = vpop.f32.mrb[0].mxu0
        %v2796 = vadd.f32 0.0, %v2795
        %v2797 = vpop.f32.mrb[0].mxu0
        %2798 = vdwg.mxu0
        %v2799 = vadd.f32 %v2550, %v2796
        %2800 = vrot.lane.b32.xlu0 %v1962, 104
        %v2801 = vpop.permute.xlu0 %2800
        %2802 = vrot.lane.b32.xlu0 %v2049, 104
        %v2803 = vpop.permute.xlu0 %2802
        %2804 = vrot.lane.b32.xlu0 %v2054, 104
        %v2805 = vpop.permute.xlu0 %2804
        %v2806 = vsel %vm892, %v2801, 0
        %v2808 = vsel %vm892, %v2803, 0
        %v2810 = vsel %vm892, %v2805, 0
        %2812 = vmatprep.subr.mxu0 0.0
        %2813 = vmatpush1.xpose.msra.mxu0 %v2808
        %2814 = vmatprep.subr.mxu0 0.0
        %2815 = vmatpush1.xpose.msra.mxu0 %v2810
        %2816 = vmatprep.subr.mxu0 0.0
        %2817 = vmatpush1.xpose.msra.mxu0 0.0
        %2818 = vmatprep.subr.mxu0 0.0
        %2819 = vmatpush1.xpose.msra.mxu0 0.0
        %2820 = vmatprep.subr.mxu0 0.0
        %2821 = vmatpush1.xpose.msra.mxu0 0.0
        %2822 = vmatprep.subr.mxu0 0.0
        %2823 = vmatpush1.xpose.msra.mxu0 0.0
        %2824 = vmatprep.subr.mxu0 0.0
        %2825 = vmatpush1.xpose.msra.mxu0 0.0
        %2826 = vmatprep.subr.mxu0 0.0
        %2827 = vmatpush1.xpose.msra.mxu0 0.0
        %2828 = vmatprep.subr.mxu0 0.0
        %2829 = vmatpush1.xpose.msra.mxu0 0.0
        %2830 = vmatprep.subr.mxu0 0.0
        %2831 = vmatpush1.xpose.msra.mxu0 0.0
        %2832 = vmatprep.subr.mxu0 0.0
        %2833 = vmatpush1.xpose.msra.mxu0 0.0
        %2834 = vmatprep.subr.mxu0 0.0
        %2835 = vmatpush1.xpose.msra.mxu0 0.0
        %2836 = vmatprep.subr.mxu0 0.0
        %2837 = vmatpush1.xpose.msra.mxu0 0.0
        %2838 = vmatprep.subr.mxu0 0.0
        %2839 = vmatpush1.xpose.msra.mxu0 0.0
        %2840 = vmatprep.subr.mxu0 0.0
        %2841 = vmatpush1.xpose.msra.mxu0 0.0
        %2842 = vmatprep.subr.mxu0 0.0
        %2843 = vmatpush1.xpose.msra.mxu0 0.0
        %2844 = vmatprep.subr.mxu0 0.0
        %2845 = vmatpush1.xpose.msra.mxu0 0.0
        %2846 = vmatprep.subr.mxu0 0.0
        %2847 = vmatpush1.xpose.msra.mxu0 0.0
        %2848 = vmatprep.subr.mxu0 0.0
        %2849 = vmatpush1.xpose.msra.mxu0 0.0
        %2850 = vmatprep.subr.mxu0 0.0
        %2851 = vmatpush1.xpose.msra.mxu0 0.0
        %2852 = vmatprep.subr.mxu0 0.0
        %2853 = vmatpush1.xpose.msra.mxu0 0.0
        %2854 = vmatprep.subr.mxu0 0.0
        %2855 = vmatpush1.xpose.msra.mxu0 0.0
        %2856 = vmatprep.subr.mxu0 0.0
        %2857 = vmatpush1.xpose.msra.mxu0 0.0
        %2858 = vmatprep.subr.mxu0 0.0
        %2859 = vmatpush1.xpose.msra.mxu0 0.0
        %2860 = vmatprep.subr.mxu0 0.0
        %2861 = vmatpush1.xpose.msra.mxu0 0.0
        %2862 = vmatprep.subr.mxu0 0.0
        %2863 = vmatpush1.xpose.msra.mxu0 0.0
        %2864 = vmatprep.subr.mxu0 0.0
        %2865 = vmatpush1.xpose.msra.mxu0 0.0
        %2866 = vmatprep.subr.mxu0 0.0
        %2867 = vmatpush1.xpose.msra.mxu0 0.0
        %2868 = vmatprep.subr.mxu0 0.0
        %2869 = vmatpush1.xpose.msra.mxu0 0.0
        %2870 = vmatprep.subr.mxu0 0.0
        %2871 = vmatpush1.xpose.msra.mxu0 0.0
        %2872 = vmatprep.subr.mxu0 0.0
        %2873 = vmatpush1.xpose.msra.mxu0 0.0
        %2874 = vmatprep.subr.mxu0 0.0
        %2875 = vmatpush1.xpose.msra.mxu0 0.0
        %2876 = vmatprep.mubr.f32.mxu0 0.0
        %2877 = vmatmul.mubr.f32.gmra.mrb[0].mxu0 %v2806
        %v2878 = vpop.f32.mrb[0].mxu0
        %v2879 = vadd.f32 0.0, %v2878
        %v2880 = vpop.f32.mrb[0].mxu0
        %2881 = vdwg.mxu0
        %v2882 = vsel %vm2141, %v2879, -inf
        %2883 = vmax.xlane.f32.xlu0 %v2882
        %v2884 = vpop.xlane.xlu0 %2883
        %v2885 = vsub.f32 %v2879, %v2884
        %v2886 = vmul.f32 %v2885, 1.442695
        %v2887 = vpow.pop %v2886
        %v2888 = vsel %vm2141, %v2887, 0.0
        %2889 = vadd.xlane.f32.xlu0 %v2888
        %v2890 = vpop.xlane.xlu0 %2889
        %v2891 = vrcp.pop %v2890
        %v2892 = vmul.f32 %v2887, %v2891
        %2893 = vrot.lane.b32.xlu0 %v2049, 72
        %v2894 = vpop.permute.xlu0 %2893
        %2895 = vrot.lane.b32.xlu0 %v2054, 72
        %v2896 = vpop.permute.xlu0 %2895
        %v2899 = vsel %vm2141, %v2892, 0
        %v2901 = vsel %vm2161, %v2896, 0
        %2903 = vmatprep.subr.mxu0 0.0
        %2904 = vmatpush1.msra.mxu0 %v2894
        %2905 = vmatprep.subr.mxu0 0.0
        %2906 = vmatpush1.msra.mxu0 %v2901
        %2907 = vmatprep.subr.mxu0 0.0
        %2908 = vmatpush1.msra.mxu0 0.0
        %2909 = vmatprep.subr.mxu0 0.0
        %2910 = vmatpush1.msra.mxu0 0.0
        %2911 = vmatprep.subr.mxu0 0.0
        %2912 = vmatpush1.msra.mxu0 0.0
        %2913 = vmatprep.subr.mxu0 0.0
        %2914 = vmatpush1.msra.mxu0 0.0
        %2915 = vmatprep.subr.mxu0 0.0
        %2916 = vmatpush1.msra.mxu0 0.0
        %2917 = vmatprep.subr.mxu0 0.0
        %2918 = vmatpush1.msra.mxu0 0.0
        %2919 = vmatprep.subr.mxu0 0.0
        %2920 = vmatpush1.msra.mxu0 0.0
        %2921 = vmatprep.subr.mxu0 0.0
        %2922 = vmatpush1.msra.mxu0 0.0
        %2923 = vmatprep.subr.mxu0 0.0
        %2924 = vmatpush1.msra.mxu0 0.0
        %2925 = vmatprep.subr.mxu0 0.0
        %2926 = vmatpush1.msra.mxu0 0.0
        %2927 = vmatprep.subr.mxu0 0.0
        %2928 = vmatpush1.msra.mxu0 0.0
        %2929 = vmatprep.subr.mxu0 0.0
        %2930 = vmatpush1.msra.mxu0 0.0
        %2931 = vmatprep.subr.mxu0 0.0
        %2932 = vmatpush1.msra.mxu0 0.0
        %2933 = vmatprep.subr.mxu0 0.0
        %2934 = vmatpush1.msra.mxu0 0.0
        %2935 = vmatprep.subr.mxu0 0.0
        %2936 = vmatpush1.msra.mxu0 0.0
        %2937 = vmatprep.subr.mxu0 0.0
        %2938 = vmatpush1.msra.mxu0 0.0
        %2939 = vmatprep.subr.mxu0 0.0
        %2940 = vmatpush1.msra.mxu0 0.0
        %2941 = vmatprep.subr.mxu0 0.0
        %2942 = vmatpush1.msra.mxu0 0.0
        %2943 = vmatprep.subr.mxu0 0.0
        %2944 = vmatpush1.msra.mxu0 0.0
        %2945 = vmatprep.subr.mxu0 0.0
        %2946 = vmatpush1.msra.mxu0 0.0
        %2947 = vmatprep.subr.mxu0 0.0
        %2948 = vmatpush1.msra.mxu0 0.0
        %2949 = vmatprep.subr.mxu0 0.0
        %2950 = vmatpush1.msra.mxu0 0.0
        %2951 = vmatprep.subr.mxu0 0.0
        %2952 = vmatpush1.msra.mxu0 0.0
        %2953 = vmatprep.subr.mxu0 0.0
        %2954 = vmatpush1.msra.mxu0 0.0
        %2955 = vmatprep.subr.mxu0 0.0
        %2956 = vmatpush1.msra.mxu0 0.0
        %2957 = vmatprep.subr.mxu0 0.0
        %2958 = vmatpush1.msra.mxu0 0.0
        %2959 = vmatprep.subr.mxu0 0.0
        %2960 = vmatpush1.msra.mxu0 0.0
        %2961 = vmatprep.subr.mxu0 0.0
        %2962 = vmatpush1.msra.mxu0 0.0
        %2963 = vmatprep.subr.mxu0 0.0
        %2964 = vmatpush1.msra.mxu0 0.0
        %2965 = vmatprep.subr.mxu0 0.0
        %2966 = vmatpush1.msra.mxu0 0.0
        %2967 = vmatprep.mubr.f32.mxu0 0.0
        %2968 = vmatmul.mubr.f32.gmra.mrb[0].mxu0 %v2899
        %v2969 = vpop.f32.mrb[0].mxu0
        %v2970 = vadd.f32 0.0, %v2969
        %v2971 = vpop.f32.mrb[0].mxu0
        %2972 = vdwg.mxu0
        %v2974 = vsel %vm892, %v2970, 0
        %2976 = vmatprep.subr.mxu0 0.0
        %2977 = vmatpush1.msra.mxu0 %v2060
        %2978 = vmatprep.subr.mxu0 0.0
        %2979 = vmatpush1.msra.mxu0 0.0
        %2980 = vmatprep.subr.mxu0 0.0
        %2981 = vmatpush1.msra.mxu0 0.0
        %2982 = vmatprep.subr.mxu0 0.0
        %2983 = vmatpush1.msra.mxu0 0.0
        %2984 = vmatprep.subr.mxu0 0.0
        %2985 = vmatpush1.msra.mxu0 0.0
        %2986 = vmatprep.subr.mxu0 0.0
        %2987 = vmatpush1.msra.mxu0 0.0
        %2988 = vmatprep.subr.mxu0 0.0
        %2989 = vmatpush1.msra.mxu0 0.0
        %2990 = vmatprep.subr.mxu0 0.0
        %2991 = vmatpush1.msra.mxu0 0.0
        %2992 = vmatprep.subr.mxu0 0.0
        %2993 = vmatpush1.msra.mxu0 0.0
        %2994 = vmatprep.subr.mxu0 0.0
        %2995 = vmatpush1.msra.mxu0 0.0
        %2996 = vmatprep.subr.mxu0 0.0
        %2997 = vmatpush1.msra.mxu0 0.0
        %2998 = vmatprep.subr.mxu0 0.0
        %2999 = vmatpush1.msra.mxu0 0.0
        %3000 = vmatprep.subr.mxu0 0.0
        %3001 = vmatpush1.msra.mxu0 0.0
        %3002 = vmatprep.subr.mxu0 0.0
        %3003 = vmatpush1.msra.mxu0 0.0
        %3004 = vmatprep.subr.mxu0 0.0
        %3005 = vmatpush1.msra.mxu0 0.0
        %3006 = vmatprep.subr.mxu0 0.0
        %3007 = vmatpush1.msra.mxu0 0.0
        %3008 = vmatprep.subr.mxu0 0.0
        %3009 = vmatpush1.msra.mxu0 0.0
        %3010 = vmatprep.subr.mxu0 0.0
        %3011 = vmatpush1.msra.mxu0 0.0
        %3012 = vmatprep.subr.mxu0 0.0
        %3013 = vmatpush1.msra.mxu0 0.0
        %3014 = vmatprep.subr.mxu0 0.0
        %3015 = vmatpush1.msra.mxu0 0.0
        %3016 = vmatprep.subr.mxu0 0.0
        %3017 = vmatpush1.msra.mxu0 0.0
        %3018 = vmatprep.subr.mxu0 0.0
        %3019 = vmatpush1.msra.mxu0 0.0
        %3020 = vmatprep.subr.mxu0 0.0
        %3021 = vmatpush1.msra.mxu0 0.0
        %3022 = vmatprep.subr.mxu0 0.0
        %3023 = vmatpush1.msra.mxu0 0.0
        %3024 = vmatprep.subr.mxu0 0.0
        %3025 = vmatpush1.msra.mxu0 0.0
        %3026 = vmatprep.subr.mxu0 0.0
        %3027 = vmatpush1.msra.mxu0 0.0
        %3028 = vmatprep.subr.mxu0 0.0
        %3029 = vmatpush1.msra.mxu0 0.0
        %3030 = vmatprep.subr.mxu0 0.0
        %3031 = vmatpush1.msra.mxu0 0.0
        %3032 = vmatprep.subr.mxu0 0.0
        %3033 = vmatpush1.msra.mxu0 0.0
        %3034 = vmatprep.subr.mxu0 0.0
        %3035 = vmatpush1.msra.mxu0 0.0
        %3036 = vmatprep.subr.mxu0 0.0
        %3037 = vmatpush1.msra.mxu0 0.0
        %3038 = vmatprep.subr.mxu0 0.0
        %3039 = vmatpush1.msra.mxu0 0.0
        %3040 = vmatprep.mubr.f32.mxu0 0.0
        %3041 = vmatmul.mubr.f32.gmra.mrb[0].mxu0 %v2974
        %v3042 = vpop.f32.mrb[0].mxu0
        %v3043 = vadd.f32 0.0, %v3042
        %v3044 = vpop.f32.mrb[0].mxu0
        %3045 = vdwg.mxu0
        %v3046 = vadd.f32 %v2799, %v3043
        %v3048 = vlaneseq
        %v3049 = vshrl.u32 %v3048, 7
        %v3050 = vsub.s32 0, %v3049
        %v3051 = vrot.slane %v2061, %v3050
        %v3053 = vadd.f32 %v3046, %v3051
        %v3054 = vadd.f32 %v1880, %v3053
        %v3055 = vld [vmem:[%s14] sm:$0x1]
        %v3056 = vld [vmem:[%s15] sm:$0x1]
        %v3057 = vsel %vm810, %v3054, 0.0
        %3058 = vadd.xlane.f32.xlu0 %v3057
        %v3059 = vpop.xlane.xlu0 %3058
        %v3060 = vmul.f32 %v3059, %v1856
        %v3061 = vsub.f32 %v3054, %v3060
        %v3062 = vmul.f32 %v3061, %v3061
        %v3063 = vsel %vm810, %v3062, 0.0
        %3064 = vadd.xlane.f32.xlu0 %v3063
        %v3065 = vpop.xlane.xlu0 %3064
        %v3066 = vmul.f32 %v3065, %v1856
        %v3067 = vadd.f32 %v3066, 1e-05
        %v3068 = vrsqrt.pop %v3067
        %v3069 = vmul.f32 %v3061, %v3068
        %v3071 = vlaneseq
        %v3072 = vshrl.u32 %v3071, 7
        %v3073 = vsub.s32 0, %v3072
        %v3074 = vrot.slane %v3055, %v3073
        %v3076 = vmul.f32 %v3069, %v3074
        %v3078 = vlaneseq
        %v3079 = vshrl.u32 %v3078, 7
        %v3080 = vsub.s32 0, %v3079
        %v3081 = vrot.slane %v3056, %v3080
        %v3083 = vadd.f32 %v3076, %v3081
        %v3084 = vld [vmem:[#allocation13] sm:$0xff]
        %v3085 = vld [vmem:[#allocation13 + $0x8] sm:$0xff]
        %v3086 = vld [vmem:[#allocation13 + $0x10] sm:$0xff]
        %v3087 = vld [vmem:[#allocation13 + $0x18] sm:$0xff]
        %v3088 = vld [vmem:[%s17] sm:$0x1]
        %v3090 = vlaneseq
        %v3091 = vshrl.u32 %v3090, 7
        %v3092 = vsub.s32 0, %v3091
        %v3093 = vrot.slane %v3088, %v3092
        %v3096 = vsel %vm810, %v3083, 0
        %3098 = vmatprep.subr.mxu0 0.0
        %3099 = vmatpush1.msra.mxu0 %v3084
        %3100 = vmatprep.subr.mxu0 0.0
        %3101 = vmatpush1.msra.mxu0 %v3085
        %3102 = vmatprep.subr.mxu0 0.0
        %3103 = vmatpush1.msra.mxu0 %v3086
        %3104 = vmatprep.subr.mxu0 0.0
        %3105 = vmatpush1.msra.mxu0 %v3087
        %3106 = vmatprep.subr.mxu0 0.0
        %3107 = vmatpush1.msra.mxu0 0.0
        %3108 = vmatprep.subr.mxu0 0.0
        %3109 = vmatpush1.msra.mxu0 0.0
        %3110 = vmatprep.subr.mxu0 0.0
        %3111 = vmatpush1.msra.mxu0 0.0
        %3112 = vmatprep.subr.mxu0 0.0
        %3113 = vmatpush1.msra.mxu0 0.0
        %3114 = vmatprep.subr.mxu0 0.0
        %3115 = vmatpush1.msra.mxu0 0.0
        %3116 = vmatprep.subr.mxu0 0.0
        %3117 = vmatpush1.msra.mxu0 0.0
        %3118 = vmatprep.subr.mxu0 0.0
        %3119 = vmatpush1.msra.mxu0 0.0
        %3120 = vmatprep.subr.mxu0 0.0
        %3121 = vmatpush1.msra.mxu0 0.0
        %3122 = vmatprep.subr.mxu0 0.0
        %3123 = vmatpush1.msra.mxu0 0.0
        %3124 = vmatprep.subr.mxu0 0.0
        %3125 = vmatpush1.msra.mxu0 0.0
        %3126 = vmatprep.subr.mxu0 0.0
        %3127 = vmatpush1.msra.mxu0 0.0
        %3128 = vmatprep.subr.mxu0 0.0
        %3129 = vmatpush1.msra.mxu0 0.0
        %3130 = vmatprep.subr.mxu0 0.0
        %3131 = vmatpush1.msra.mxu0 0.0
        %3132 = vmatprep.subr.mxu0 0.0
        %3133 = vmatpush1.msra.mxu0 0.0
        %3134 = vmatprep.subr.mxu0 0.0
        %3135 = vmatpush1.msra.mxu0 0.0
        %3136 = vmatprep.subr.mxu0 0.0
        %3137 = vmatpush1.msra.mxu0 0.0
        %3138 = vmatprep.subr.mxu0 0.0
        %3139 = vmatpush1.msra.mxu0 0.0
        %3140 = vmatprep.subr.mxu0 0.0
        %3141 = vmatpush1.msra.mxu0 0.0
        %3142 = vmatprep.subr.mxu0 0.0
        %3143 = vmatpush1.msra.mxu0 0.0
        %3144 = vmatprep.subr.mxu0 0.0
        %3145 = vmatpush1.msra.mxu0 0.0
        %3146 = vmatprep.subr.mxu0 0.0
        %3147 = vmatpush1.msra.mxu0 0.0
        %3148 = vmatprep.subr.mxu0 0.0
        %3149 = vmatpush1.msra.mxu0 0.0
        %3150 = vmatprep.subr.mxu0 0.0
        %3151 = vmatpush1.msra.mxu0 0.0
        %3152 = vmatprep.subr.mxu0 0.0
        %3153 = vmatpush1.msra.mxu0 0.0
        %3154 = vmatprep.subr.mxu0 0.0
        %3155 = vmatpush1.msra.mxu0 0.0
        %3156 = vmatprep.subr.mxu0 0.0
        %3157 = vmatpush1.msra.mxu0 0.0
        %3158 = vmatprep.subr.mxu0 0.0
        %3159 = vmatpush1.msra.mxu0 0.0
        %3160 = vmatprep.subr.mxu0 0.0
        %3161 = vmatpush1.msra.mxu0 0.0
        %3162 = vmatprep.mubr.f32.mxu0 0.0
        %3163 = vmatmul.mubr.f32.gmra.mrb[0].mxu0 %v3096
        %v3164 = vpop.f32.mrb[0].mxu0
        %v3165 = vadd.f32 %v3093, %v3164
        %v3166 = vpop.f32.mrb[0].mxu0
        %3167 = vdwg.mxu0
        %v3168 = vmax.f32 %v3165, 0.0
        %v3169 = vld [vmem:[%s18] sm:$0xff]
        %v3170 = vld [vmem:[%s18 + $0x8] sm:$0xff]
        %v3171 = vld [vmem:[%s18 + $0x10] sm:$0xff]
        %v3172 = vld [vmem:[%s18 + $0x18] sm:$0xff]
        %v3173 = vld [vmem:[%s18 + $0x20] sm:$0xff]
        %v3174 = vld [vmem:[%s18 + $0x28] sm:$0xff]
        %v3175 = vld [vmem:[%s18 + $0x30] sm:$0xff]
        %v3176 = vld [vmem:[%s18 + $0x38] sm:$0xff]
        %v3177 = vld [vmem:[%s19] sm:$0x1]
        %v3179 = vlaneseq
        %v3180 = vshrl.u32 %v3179, 7
        %v3181 = vsub.s32 0, %v3180
        %v3182 = vrot.slane %v3177, %v3181
        %vm3184 = vcmask 523264
        %v3186 = vsel %vm3184, %v3168, 0
        %3188 = vmatprep.subr.mxu0 0.0
        %3189 = vmatpush1.msra.mxu0 %v3169
        %3190 = vmatprep.subr.mxu0 0.0
        %3191 = vmatpush1.msra.mxu0 %v3170
        %3192 = vmatprep.subr.mxu0 0.0
        %3193 = vmatpush1.msra.mxu0 %v3171
        %3194 = vmatprep.subr.mxu0 0.0
        %3195 = vmatpush1.msra.mxu0 %v3172
        %3196 = vmatprep.subr.mxu0 0.0
        %3197 = vmatpush1.msra.mxu0 %v3173
        %3198 = vmatprep.subr.mxu0 0.0
        %3199 = vmatpush1.msra.mxu0 %v3174
        %3200 = vmatprep.subr.mxu0 0.0
        %3201 = vmatpush1.msra.mxu0 %v3175
        %3202 = vmatprep.subr.mxu0 0.0
        %3203 = vmatpush1.msra.mxu0 %v3176
        %3204 = vmatprep.subr.mxu0 0.0
        %3205 = vmatpush1.msra.mxu0 0.0
        %3206 = vmatprep.subr.mxu0 0.0
        %3207 = vmatpush1.msra.mxu0 0.0
        %3208 = vmatprep.subr.mxu0 0.0
        %3209 = vmatpush1.msra.mxu0 0.0
        %3210 = vmatprep.subr.mxu0 0.0
        %3211 = vmatpush1.msra.mxu0 0.0
        %3212 = vmatprep.subr.mxu0 0.0
        %3213 = vmatpush1.msra.mxu0 0.0
        %3214 = vmatprep.subr.mxu0 0.0
        %3215 = vmatpush1.msra.mxu0 0.0
        %3216 = vmatprep.subr.mxu0 0.0
        %3217 = vmatpush1.msra.mxu0 0.0
        %3218 = vmatprep.subr.mxu0 0.0
        %3219 = vmatpush1.msra.mxu0 0.0
        %3220 = vmatprep.subr.mxu0 0.0
        %3221 = vmatpush1.msra.mxu0 0.0
        %3222 = vmatprep.subr.mxu0 0.0
        %3223 = vmatpush1.msra.mxu0 0.0
        %3224 = vmatprep.subr.mxu0 0.0
        %3225 = vmatpush1.msra.mxu0 0.0
        %3226 = vmatprep.subr.mxu0 0.0
        %3227 = vmatpush1.msra.mxu0 0.0
        %3228 = vmatprep.subr.mxu0 0.0
        %3229 = vmatpush1.msra.mxu0 0.0
        %3230 = vmatprep.subr.mxu0 0.0
        %3231 = vmatpush1.msra.mxu0 0.0
        %3232 = vmatprep.subr.mxu0 0.0
        %3233 = vmatpush1.msra.mxu0 0.0
        %3234 = vmatprep.subr.mxu0 0.0
        %3235 = vmatpush1.msra.mxu0 0.0
        %3236 = vmatprep.subr.mxu0 0.0
        %3237 = vmatpush1.msra.mxu0 0.0
        %3238 = vmatprep.subr.mxu0 0.0
        %3239 = vmatpush1.msra.mxu0 0.0
        %3240 = vmatprep.subr.mxu0 0.0
        %3241 = vmatpush1.msra.mxu0 0.0
        %3242 = vmatprep.subr.mxu0 0.0
        %3243 = vmatpush1.msra.mxu0 0.0
        %3244 = vmatprep.subr.mxu0 0.0
        %3245 = vmatpush1.msra.mxu0 0.0
        %3246 = vmatprep.subr.mxu0 0.0
        %3247 = vmatpush1.msra.mxu0 0.0
        %3248 = vmatprep.subr.mxu0 0.0
        %3249 = vmatpush1.msra.mxu0 0.0
        %3250 = vmatprep.subr.mxu0 0.0
        %3251 = vmatpush1.msra.mxu0 0.0
        %3252 = vmatprep.mubr.f32.mxu0 0.0
        %3253 = vmatmul.mubr.f32.gmra.mrb[0].mxu0 %v3186
        %v3254 = vpop.f32.mrb[0].mxu0
        %v3255 = vadd.f32 %v3182, %v3254
        %v3256 = vpop.f32.mrb[0].mxu0
        %3257 = vdwg.mxu0
        %v3258 = vadd.f32 %v3083, %v3255
        %v3259 = vld [vmem:[%s20] sm:$0x1]
        %v3260 = vld [vmem:[%s21] sm:$0x1]
        %v3261 = vsel %vm810, %v3258, 0.0
        %3262 = vadd.xlane.f32.xlu0 %v3261
        %v3263 = vpop.xlane.xlu0 %3262
        %v3264 = vmul.f32 %v3263, %v1856
        %v3265 = vsub.f32 %v3258, %v3264
        %v3266 = vmul.f32 %v3265, %v3265
        %v3267 = vsel %vm810, %v3266, 0.0
        %3268 = vadd.xlane.f32.xlu0 %v3267
        %v3269 = vpop.xlane.xlu0 %3268
        %v3270 = vmul.f32 %v3269, %v1856
        %v3271 = vadd.f32 %v3270, 1e-05
        %v3272 = vrsqrt.pop %v3271
        %v3273 = vmul.f32 %v3265, %v3272
        %v3275 = vlaneseq
        %v3276 = vshrl.u32 %v3275, 7
        %v3277 = vsub.s32 0, %v3276
        %v3278 = vrot.slane %v3259, %v3277
        %v3280 = vmul.f32 %v3273, %v3278
        %v3282 = vlaneseq
        %v3283 = vshrl.u32 %v3282, 7
        %v3284 = vsub.s32 0, %v3283
        %v3285 = vrot.slane %v3260, %v3284
        %v3287 = vadd.f32 %v3280, %v3285
        %3288 = vst.msk [vmem:[%s790] sm:$0xff] %vm810, %v3287
        %s3289 = sand.u32 %s522, 1
        %s3290 = scalar_lea.sflag [#allocation4], %s3289
        %s3291 = sand.u32 %s522, 1
        %s3292 = smul.addr %s3291, 8
        %s3293 = scalar_lea.vmem [#allocation14], %s3292
        // Predicated region
        $region137: #{tpu_custom_call.1} parent=107 // pred_check
          %p3294 = pneg %p532
        $region138: #{tpu_custom_call.1} parent=107 // pred_check_branch
          %3296 = sbr.rel (%p3294) target = $region140
        $region139: #{tpu_custom_call.1} parent=107 // pred_region
          %s3298 = ssub.s32 128, 128
          %3299 = vsyncadd %s3290, %s3298
          %s3300 = smul.addr %s42, 128
          %s3301 = scalar_lea.hbm %s22, %s3300
          %s3303 = sshll.u32 %s3293, 4
          %s3304 = int_to_ptr.vmem [resolvable:$true] %s3303
          %3306 = dma.vmem_to_hbm [thread:$0]  %s3304, 128, %s3301, %s3290
        $region140: #{tpu_custom_call.1} parent=107 // pred_fallthru
          _
      $region108: #{tpu_custom_call.1} parent=5 // pred_fallthru
        _
      %p3307 = scmp.le.s32.totalorder 2, %s37
      // Predicated region
      $region141: #{tpu_custom_call.1} parent=5 // pred_check
        %p3308 = pneg %p3307
      $region142: #{tpu_custom_call.1} parent=5 // pred_check_branch
        %3310 = sbr.rel (%p3308) target = $region144
      $region143: #{tpu_custom_call.1} parent=5 // pred_region
        %s3311 = ssub.s32 %s37, 2
        // Predicated region
        $region145: #{tpu_custom_call.1} parent=143 // pred_check
          %p3312 = pneg %p538
        $region146: #{tpu_custom_call.1} parent=143 // pred_check_branch
          %3314 = sbr.rel (%p3312) target = $region148
        $region147: #{tpu_custom_call.1} parent=143 // pred_region
          %s3315 = sand.u32 %s523, 1
          %s3316 = scalar_lea.sflag [#allocation4], %s3315
          %s3317 = sand.u32 %s523, 1
          %s3318 = smul.addr %s3317, 8
          %s3319 = scalar_lea.vmem [#allocation14], %s3318
          %3320 = dma.done %s3316, 128
        $region148: #{tpu_custom_call.1} parent=143 // pred_fallthru
          _
      $region144: #{tpu_custom_call.1} parent=5 // pred_fallthru
        _
    $region6: #{tpu_custom_call.1} parent=1 // loop_footer
      %s41 = sadd.s32 1, %s37
    $region7: #{tpu_custom_call.1} parent=1 // loop_footer_branch
      %36 = sbr.rel target = $region3
    $region8: #{tpu_custom_call.1} parent=1 // loop_exit
      _
    %3321 = vsyncpa [#allocation3], 1
    %s3322 = scalar_lea.sflag [#allocation3], 1
    %3323 = vsyncpa %s3322, 1
    %3324 = vsyncpa [#allocation6], 1
    %3325 = vsyncpa [#allocation9], 1
    %3326 = vsyncpa [#allocation12], 1
    %3327 = vsyncpa [#allocation4], 1
    %s3328 = scalar_lea.sflag [#allocation4], 1
    %3329 = vsyncpa %s3328, 1

</llo_original>
